<compile_context>
chip_gen: v6e
topology: v6e:2x2x1
jax: 0.10.0
libtpu: 0.0.40
codegen_flags: <defaults>
</compile_context>

<pallas_src>
import functools
import numpy as np
import jax
import jax.numpy as jnp
from jax.experimental import pallas as pl
from jax.experimental.pallas import tpu as pltpu

SMOOTH = 1e-5


# ---------------------------------------------------------------------------
# Kernel A: per block of P patches, recompute conv = relu(hi + rep(lo) + b),
#           fused q|k projection + sigmoid, per-patch mean pooling.
# Within-patch row order is replication-major: s = r*S_lo + l, so the low-res
# contribution is replicated by a simple sublane concatenation.
# ---------------------------------------------------------------------------
def _qkpool_kernel(xlo_ref, xc1_ref, alo_ref, ahi_ref, wqk_ref, bc_ref, bqk_ref,
                   qkp_ref, *, P, rep):
    alo = alo_ref[...]          # (Cin, F)  folded W1*s1 @ Wup*sup @ W3b*s3
    ahi = ahi_ref[...]          # (Cin, F)  folded W2*s2 @ W3a*s3
    wqk = wqk_ref[...]          # (F, 2F)   [Wq*sq | Wk*sk]
    bc = bc_ref[...]            # (1, F)    folded pre-relu bias
    bqk = bqk_ref[...]          # (1, 2F)
    dot = functools.partial(jnp.dot, preferred_element_type=jnp.float32)
    for p in range(P):                                   # small static unroll
        lo = dot(xlo_ref[p], alo)                        # (S_lo, F)
        hi = dot(xc1_ref[p], ahi)                        # (S, F)
        conv = jnp.maximum(hi + jnp.concatenate([lo] * rep, axis=0) + bc, 0.0)
        qk = jax.nn.sigmoid(dot(conv, wqk) + bqk)        # (S, 2F)
        qkp_ref[p] = jnp.mean(qk, axis=0, keepdims=True)  # pooled patch token


# ---------------------------------------------------------------------------
# Kernel B: fractal-Tanimoto similarities on pooled patch tokens, per batch.
# ---------------------------------------------------------------------------
def _ft_sim(q, k, axis, depth):
    def base(a, b):
        tpl = jnp.sum(a * b, axis=axis, keepdims=True)
        tpp = jnp.sum(a * a, axis=axis, keepdims=True)
        tll = jnp.sum(b * b, axis=axis, keepdims=True)
        den = jnp.zeros_like(tpl)
        for d in range(depth):
            aa = 2.0 ** d
            bb = -(2.0 * aa - 1.0)
            den = den + 1.0 / (aa * (tpp + tll) + bb * tpl + SMOOTH)  # keep exact
        return (tpl + SMOOTH) * den * (1.0 / depth)
    return 0.5 * (base(q, k) + base(1.0 - q, 1.0 - k))


def _att_kernel(qp_ref, kp_ref, asp_ref, ach_ref, *, depth):
    q = qp_ref[0]                                       # (Npb, F)
    k = kp_ref[0]                                       # (Npb, F)
    asp_ref[0] = _ft_sim(q, k, axis=1, depth=depth)     # (Npb, 1) spatial attention
    ach_ref[0] = _ft_sim(q, k, axis=0, depth=depth)     # (1, F)  channel attention


# ---------------------------------------------------------------------------
# Kernel C: recompute conv and v (no HBM round trip), apply attention gate:
#           out = conv * (1 + BN(0.5*(att_sp + att_ch) * v))
# ---------------------------------------------------------------------------
def _combine_kernel(xlo_ref, xc1_ref, asp_ref, ach_ref, alo_ref, ahi_ref,
                    wv_ref, cvec_ref, out_ref, *, P, rep):
    alo = alo_ref[...]
    ahi = ahi_ref[...]
    wv = wv_ref[...]
    cv = cvec_ref[...]          # (4, F) rows: bias_c, bv, satt, batt
    bc = cv[0:1, :]
    bv = cv[1:2, :]
    satt = cv[2:3, :]
    batt = cv[3:4, :]
    ach = ach_ref[0]            # (1, F) per-batch channel attention
    dot = functools.partial(jnp.dot, preferred_element_type=jnp.float32)
    for p in range(P):
        lo = dot(xlo_ref[p], alo)
        hi = dot(xc1_ref[p], ahi)
        conv = jnp.maximum(hi + jnp.concatenate([lo] * rep, axis=0) + bc, 0.0)
        v = jax.nn.sigmoid(dot(conv, wv) + bv)          # (S, F)
        att = 0.5 * (asp_ref[p] + ach) * v              # (1,1)+(1,F) -> (S,F)
        att = att * satt + batt
        out_ref[p] = conv * (1.0 + att)


# ---------------------------------------------------------------------------
# Layout plumbing (wrapper-level reshapes/transposes only; no HBM inflation)
# ---------------------------------------------------------------------------
def _to_patches_hi(x, scales, u):
    # (B, C, T, H, W) -> (Ntot, S, C); within-patch rows ordered replication-major:
    #   s = ((hi%u)*u + (wi%u)) * S_lo + (ti*hl*wl + (hi//u)*wl + (wi//u))
    B, C, T, H, W = x.shape
    st, sh, sw = scales
    hl, wl = sh // u, sw // u
    x = jnp.transpose(x, (0, 2, 3, 4, 1))
    x = x.reshape(B, T // st, st, H // sh, hl, u, W // sw, wl, u, C)
    x = jnp.transpose(x, (0, 1, 3, 6, 5, 8, 2, 4, 7, 9))
    return x.reshape(B * (T // st) * (H // sh) * (W // sw), u * u * st * hl * wl, C)


def _from_patches_hi(xp, B, T, H, W, scales, u):
    st, sh, sw = scales
    hl, wl = sh // u, sw // u
    C = xp.shape[-1]
    x = xp.reshape(B, T // st, H // sh, W // sw, u, u, st, hl, wl, C)
    x = jnp.transpose(x, (0, 1, 6, 2, 7, 4, 3, 8, 5, 9))
    x = x.reshape(B, T, H, W, C)
    return jnp.transpose(x, (0, 4, 1, 2, 3))


def _to_patches_lo(x, st, hl, wl):
    # low-res branch: (B, C, T, H/u, W/u) -> (Ntot, S_lo, C), l ordered (t, h, w)
    B, C, T, Hl, Wl = x.shape
    x = jnp.transpose(x, (0, 2, 3, 4, 1))
    x = x.reshape(B, T // st, st, Hl // hl, hl, Wl // wl, wl, C)
    x = jnp.transpose(x, (0, 1, 3, 5, 2, 4, 6, 7))
    return x.reshape(B * (T // st) * (Hl // hl) * (Wl // wl), st * hl * wl, C)


def _pick_patch_batch(Npb, S, Cin, F, *, max_unroll=8, target_bytes=4 << 20):
    # Largest divisor of Npb (so the per-batch att_ch block never straddles two
    # batches) with modest unroll and ~MiB-scale tiles.
    # Production sizing: v6e (128 MiB VMEM) can push target_bytes to ~8 MiB;
    # v7x has only 64 MiB VMEM (keep double-buffered working set < ~40 MiB);
    # v5e default scoped VMEM is 16 MiB unless vmem_limit_bytes is raised.
    best = 1
    for d in range(1, max_unroll + 1):
        if Npb % d == 0 and d * S * (Cin + 2 * F) * 4 <= target_bytes:
            best = d
    return best


def fuse_hilo_forward(UpConv4, conv1, params, *, scales=(4, 8, 8), depth=10,
                      up_factor=4):
    B, Cin, T, H, W = conv1.shape
    st, sh, sw = scales
    u = up_factor
    assert sh % u == 0 and sw % u == 0
    hl, wl = sh // u, sw // u
    S = st * sh * sw
    S_lo = st * hl * wl
    rep = u * u
    Npb = (T // st) * (H // sh) * (W // sw)
    Ntot = B * Npb
    F = params["Wup"].shape[0]
    f32 = jnp.float32

    P = _pick_patch_batch(Npb, S, Cin, F)
    grid_n = Ntot // P
    bpb = Npb // P                       # grid steps per batch element

    # ---- host-side BN folding / matmul fusion (all-linear pre-ReLU chain) ----
    w3a_s = params["W3a"] * params["s3"][None, :]
    w3b_s = params["W3b"] * params["s3"][None, :]
    wup_s = params["Wup"] * params["sup"][None, :]
    a_hi = (params["W2"] * params["s2"][None, :]) @ w3a_s                 # (Cin, F)
    a_lo = (params["W1"] * params["s1"][None, :]) @ (wup_s @ w3b_s)       # (Cin, F)
    bias_c = (params["b2"] @ w3a_s
              + (params["b1"] @ wup_s + params["bup"]) @ w3b_s
              + params["b3"])                                             # (F,)
    wqk = jnp.concatenate([params["Wq"] * params["sq"][None, :],
                           params["Wk"] * params["sk"][None, :]], axis=1)  # (F, 2F)
    bqk = jnp.concatenate([params["bq"], params["bk"]])[None, :]           # (1, 2F)
    wv_s = params["Wv"] * params["sv"][None, :]                            # (F, F)
    bc2 = bias_c.reshape(1, F)
    cvec = jnp.stack([bias_c, params["bv"], params["satt"], params["batt"]])  # (4, F)

    # ---- patch-major layouts (no 16x-inflated upsample in HBM) ----
    xc1 = _to_patches_hi(conv1, scales, u)               # (Ntot, S, Cin)
    xlo = _to_patches_lo(UpConv4, st, hl, wl)            # (Ntot, S_lo, Cin)

    # ---- pass A: pooled q|k tokens only (tiny output) ----
    qkp = pl.pallas_call(
        functools.partial(_qkpool_kernel, P=P, rep=rep),
        grid=(grid_n,),
        in_specs=[
            pl.BlockSpec((P, S_lo, Cin), lambda i: (i, 0, 0)),
            pl.BlockSpec((P, S, Cin), lambda i: (i, 0, 0)),
            pl.BlockSpec((Cin, F), lambda i: (0, 0)),
            pl.BlockSpec((Cin, F), lambda i: (0, 0)),
            pl.BlockSpec((F, 2 * F), lambda i: (0, 0)),
            pl.BlockSpec((1, F), lambda i: (0, 0)),
            pl.BlockSpec((1, 2 * F), lambda i: (0, 0)),
        ],
        out_specs=pl.BlockSpec((P, 1, 2 * F), lambda i: (i, 0, 0)),
        out_shape=jax.ShapeDtypeStruct((Ntot, 1, 2 * F), f32),
        compiler_params=pltpu.CompilerParams(dimension_semantics=("parallel",)),
    )(xlo, xc1, a_lo, a_hi, wqk, bc2, bqk)

    qp_b = qkp[:, 0, :F].reshape(B, Npb, F)
    kp_b = qkp[:, 0, F:].reshape(B, Npb, F)

    # ---- pass B: fractal-Tanimoto attention on pooled tokens (per batch) ----
    att_sp, att_ch = pl.pallas_call(
        functools.partial(_att_kernel, depth=depth),
        grid=(B,),
        in_specs=[
            pl.BlockSpec((1, Npb, F), lambda b: (b, 0, 0)),
            pl.BlockSpec((1, Npb, F), lambda b: (b, 0, 0)),
        ],
        out_specs=[
            pl.BlockSpec((1, Npb, 1), lambda b: (b, 0, 0)),
            pl.BlockSpec((1, 1, F), lambda b: (b, 0, 0)),
        ],
        out_shape=[
            jax.ShapeDtypeStruct((B, Npb, 1), f32),
            jax.ShapeDtypeStruct((B, 1, F), f32),
        ],
        compiler_params=pltpu.CompilerParams(dimension_semantics=("parallel",)),
    )(qp_b, kp_b)

    asp_pp = att_sp.reshape(Ntot, 1, 1)                  # per-patch scalar gate

    # ---- pass C: recompute conv & v, apply gate, write final output ----
    out_p = pl.pallas_call(
        functools.partial(_combine_kernel, P=P, rep=rep),
        grid=(grid_n,),
        in_specs=[
            pl.BlockSpec((P, S_lo, Cin), lambda i: (i, 0, 0)),
            pl.BlockSpec((P, S, Cin), lambda i: (i, 0, 0)),
            pl.BlockSpec((P, 1, 1), lambda i: (i, 0, 0)),
            pl.BlockSpec((1, 1, F), lambda i, _n=bpb: (i // _n, 0, 0)),  # no repeat
            pl.BlockSpec((Cin, F), lambda i: (0, 0)),
            pl.BlockSpec((Cin, F), lambda i: (0, 0)),
            pl.BlockSpec((F, F), lambda i: (0, 0)),
            pl.BlockSpec((4, F), lambda i: (0, 0)),
        ],
        out_specs=pl.BlockSpec((P, S, F), lambda i: (i, 0, 0)),
        out_shape=jax.ShapeDtypeStruct((Ntot, S, F), f32),
        compiler_params=pltpu.CompilerParams(dimension_semantics=("parallel",)),
    )(xlo, xc1, asp_pp, att_ch, a_lo, a_hi, wv_s, cvec)

    return _from_patches_hi(out_p, B, T, H, W, scales, u)


# ---------------------------------------------------------------------------
# Deterministic parameter init (shapes per the module's __init__)
# ---------------------------------------------------------------------------
class _KeyGen:
    def __init__(self, key):
        self.key = key

    def __call__(self):
        self.key, sub = jax.random.split(self.key)
        return sub


def init_params(key, cin, F, nheads):
    kg = _KeyGen(key)

    def w(shape, fan_in):
        return jax.random.normal(kg(), shape, jnp.float32) / np.sqrt(fan_in)

    def bn():  # fold BatchNorm3d (inference) into per-channel scale/bias
        gamma = 1.0 + 0.1 * jax.random.normal(kg(), (F,), jnp.float32)
        beta = 0.1 * jax.random.normal(kg(), (F,), jnp.float32)
        mean = 0.1 * jax.random.normal(kg(), (F,), jnp.float32)
        var = 1.0 + 0.1 * jax.random.uniform(kg(), (F,), dtype=jnp.float32)
        s = gamma / jnp.sqrt(var + 1e-5)
        return s, beta - mean * s

    p = {}
    p["W1"] = w((cin, F), cin);  p["s1"], p["b1"] = bn()          # embedding1
    p["Wup"] = w((F, F), F);     p["sup"], p["bup"] = bn()        # upscale conv
    p["W2"] = w((cin, F), cin);  p["s2"], p["b2"] = bn()          # embedding2
    W3 = w((2 * F, F), 2 * F)                                     # conv3d on concat
    p["W3a"], p["W3b"] = W3[:F], W3[F:]
    p["s3"], p["b3"] = bn()

    g = F // nheads

    def grouped():  # grouped 1x1 conv -> block-diagonal dense weight
        blocks = jax.random.normal(kg(), (nheads, g, g), jnp.float32) / np.sqrt(g)
        Wm = jnp.zeros((F, F), jnp.float32)
        for h in range(nheads):
            Wm = Wm.at[h * g:(h + 1) * g, h * g:(h + 1) * g].set(blocks[h])
        return Wm

    p["Wq"] = grouped(); p["sq"], p["bq"] = bn()
    p["Wk"] = grouped(); p["sk"], p["bk"] = bn()
    p["Wv"] = grouped(); p["sv"], p["bv"] = bn()
    p["satt"], p["batt"] = bn()                                   # att output norm
    return p


# ---------------------------------------------------------------------------
# Pure-JAX reference (same math, standard layout) for a sanity check
# ---------------------------------------------------------------------------
def fuse_hilo_reference(UpConv4, conv1, p, *, scales=(4, 8, 8), depth=10,
                        up_factor=4):
    B, Cin, T, H, W = conv1.shape
    st, sh, sw = scales
    up4 = jnp.repeat(jnp.repeat(UpConv4, up_factor, axis=3), up_factor, axis=4)
    xu = jnp.transpose(up4, (0, 2, 3, 4, 1))
    xc = jnp.transpose(conv1, (0, 2, 3, 4, 1))
    aff = lambda y, s, b: y * s + b
    e1 = aff(xu @ p["W1"], p["s1"], p["b1"])
    up = aff(e1 @ p["Wup"], p["sup"], p["bup"])
    e2 = aff(xc @ p["W2"], p["s2"], p["b2"])
    c = aff(e2 @ p["W3a"] + up @ p["W3b"], p["s3"], p["b3"])
    conv = jnp.maximum(c, 0.0)
    q = jax.nn.sigmoid(aff(conv @ p["Wq"], p["sq"], p["bq"]))
    k = jax.nn.sigmoid(aff(conv @ p["Wk"], p["sk"], p["bk"]))
    v = jax.nn.sigmoid(aff(conv @ p["Wv"], p["sv"], p["bv"]))
    F_ = q.shape[-1]

    def pool(x):
        x = x.reshape(B, T // st, st, H // sh, sh, W // sw, sw, F_)
        return x.mean(axis=(2, 4, 6)).reshape(B, -1, F_)

    qp, kp = pool(q), pool(k)

    def ft(a, b, axis):
        def base(a, b):
            tpl = (a * b).sum(axis, keepdims=True)
            tpp = (a * a).sum(axis, keepdims=True)
            tll = (b * b).sum(axis, keepdims=True)
            den = 0.0
            for d in range(depth):
                aa = 2.0 ** d
                den = den + 1.0 / (aa * (tpp + tll) - (2.0 * aa - 1.0) * tpl + SMOOTH)
            return (tpl + SMOOTH) * den / depth
        return 0.5 * (base(a, b) + base(1.0 - a, 1.0 - b))

    asp = ft(qp, kp, axis=2).reshape(B, T // st, H // sh, W // sw, 1)
    asp = jnp.repeat(jnp.repeat(jnp.repeat(asp, st, 1), sh, 2), sw, 3)
    ach = ft(qp, kp, axis=1).reshape(B, 1, 1, 1, F_)
    att = aff(0.5 * (asp + ach) * v, p["satt"], p["batt"])
    out = conv * (1.0 + att)
    return jnp.transpose(out, (0, 4, 1, 2, 3))


if __name__ == "__main__":
    key = jax.random.PRNGKey(0)
    B, Cin, T, H, W = 2, 8, 4, 16, 16          # small shapes
    F = 32                                      # nfilters_embed
    nheads = F // 4
    scales = (4, 8, 8)
    depth = 10

    k_up, k_c1, k_par = jax.random.split(key, 3)
    UpConv4 = jax.random.normal(k_up, (B, Cin, T, H // 4, W // 4), jnp.float32)
    conv1 = jax.random.normal(k_c1, (B, Cin, T, H, W), jnp.float32)
    params = init_params(k_par, Cin, F, nheads)

    out = fuse_hilo_forward(UpConv4, conv1, params, scales=scales, depth=depth)
    out = jax.block_until_ready(out)

    ref = jax.block_until_ready(
        fuse_hilo_reference(UpConv4, conv1, params, scales=scales, depth=depth))

    assert out.shape == (B, F, T, H, W), out.shape
    out_np, ref_np = np.asarray(out), np.asarray(ref)
    assert np.all(np.isfinite(out_np))
    if not np.allclose(out_np, ref_np, rtol=5e-2, atol=5e-2):
        raise AssertionError(
            f"kernel/reference mismatch, max abs err = {np.max(np.abs(out_np - ref_np))}")
    print("KERNEL_OK")
</pallas_src>

<mosaic_0001>
module attributes {stable_mosaic.version = 11 : i64} {
  func.func @_qkpool_kernel(%arg0: i32, %arg1: memref<4x16x8xf32, #tpu.memory_space<vmem>>, %arg2: memref<4x256x8xf32, #tpu.memory_space<vmem>>, %arg3: memref<8x32xf32, #tpu.memory_space<vmem>>, %arg4: memref<8x32xf32, #tpu.memory_space<vmem>>, %arg5: memref<32x64xf32, #tpu.memory_space<vmem>>, %arg6: memref<1x32xf32, #tpu.memory_space<vmem>>, %arg7: memref<1x64xf32, #tpu.memory_space<vmem>>, %arg8: memref<4x1x64xf32, #tpu.memory_space<vmem>>) attributes {dimension_semantics = [#tpu.dimension_semantics<parallel>], iteration_bounds = array<i64: 2>, scalar_prefetch = 0 : i64, scratch_operands = 0 : i64, tpu.core_type = #tpu.core_type<tc>, window_params = [{transform_indices = @transform_0, window_bounds = array<i64: 4, 16, 8>}, {transform_indices = @transform_1, window_bounds = array<i64: 4, 256, 8>}, {pipeline_mode = #tpu.pipeline_mode<synchronous>, transform_indices = @transform_2, window_bounds = array<i64: 8, 32>}, {pipeline_mode = #tpu.pipeline_mode<synchronous>, transform_indices = @transform_3, window_bounds = array<i64: 8, 32>}, {pipeline_mode = #tpu.pipeline_mode<synchronous>, transform_indices = @transform_4, window_bounds = array<i64: 32, 64>}, {pipeline_mode = #tpu.pipeline_mode<synchronous>, transform_indices = @transform_5, window_bounds = array<i64: 1, 32>}, {pipeline_mode = #tpu.pipeline_mode<synchronous>, transform_indices = @transform_6, window_bounds = array<i64: 1, 64>}, {transform_indices = @transform_7, window_bounds = array<i64: 4, 1, 64>}]} {
    %c0 = arith.constant 0 : index
    %c0_0 = arith.constant 0 : index
    %0 = vector.load %arg3[%c0, %c0_0] : memref<8x32xf32, #tpu.memory_space<vmem>>, vector<8x32xf32>
    %c0_1 = arith.constant 0 : index
    %c0_2 = arith.constant 0 : index
    %1 = vector.load %arg4[%c0_1, %c0_2] : memref<8x32xf32, #tpu.memory_space<vmem>>, vector<8x32xf32>
    %c0_3 = arith.constant 0 : index
    %c0_4 = arith.constant 0 : index
    %2 = vector.load %arg5[%c0_3, %c0_4] : memref<32x64xf32, #tpu.memory_space<vmem>>, vector<32x64xf32>
    %c0_5 = arith.constant 0 : index
    %c0_6 = arith.constant 0 : index
    %3 = vector.load %arg6[%c0_5, %c0_6] : memref<1x32xf32, #tpu.memory_space<vmem>>, vector<1x32xf32>
    %c0_7 = arith.constant 0 : index
    %c0_8 = arith.constant 0 : index
    %4 = vector.load %arg7[%c0_7, %c0_8] : memref<1x64xf32, #tpu.memory_space<vmem>>, vector<1x64xf32>
    %c0_9 = arith.constant 0 : index
    %c0_10 = arith.constant 0 : index
    %c0_11 = arith.constant 0 : index
    %5 = vector.load %arg1[%c0_9, %c0_10, %c0_11] : memref<4x16x8xf32, #tpu.memory_space<vmem>>, vector<1x16x8xf32>
    %6 = vector.shape_cast %5 : vector<1x16x8xf32> to vector<16x8xf32>
    %cst = arith.constant dense<0.000000e+00> : vector<16x32xf32>
    %7 = tpu.matmul %6, %0, %cst {dimension_numbers = #tpu.dot_dimension_numbers<[1], [0], [0], [1], [0, 0, 1, 1], [], []>} : vector<16x8xf32>, vector<8x32xf32>, vector<16x32xf32> -> vector<16x32xf32>
    %c0_12 = arith.constant 0 : index
    %c0_13 = arith.constant 0 : index
    %c0_14 = arith.constant 0 : index
    %8 = vector.load %arg2[%c0_12, %c0_13, %c0_14] : memref<4x256x8xf32, #tpu.memory_space<vmem>>, vector<1x256x8xf32>
    %9 = vector.shape_cast %8 : vector<1x256x8xf32> to vector<256x8xf32>
    %cst_15 = arith.constant dense<0.000000e+00> : vector<256x32xf32>
    %10 = tpu.matmul %9, %1, %cst_15 {dimension_numbers = #tpu.dot_dimension_numbers<[1], [0], [0], [1], [0, 0, 1, 1], [], []>} : vector<256x8xf32>, vector<8x32xf32>, vector<256x32xf32> -> vector<256x32xf32>
    %11 = tpu.concatenate %7, %7, %7, %7, %7, %7, %7, %7, %7, %7, %7, %7, %7, %7, %7, %7 in 0 : vector<16x32xf32>, vector<16x32xf32>, vector<16x32xf32>, vector<16x32xf32>, vector<16x32xf32>, vector<16x32xf32>, vector<16x32xf32>, vector<16x32xf32>, vector<16x32xf32>, vector<16x32xf32>, vector<16x32xf32>, vector<16x32xf32>, vector<16x32xf32>, vector<16x32xf32>, vector<16x32xf32>, vector<16x32xf32> -> vector<256x32xf32>
    %12 = arith.addf %10, %11 : vector<256x32xf32>
    %13 = vector.broadcast %3 : vector<1x32xf32> to vector<256x32xf32>
    %14 = arith.addf %12, %13 : vector<256x32xf32>
    %cst_16 = arith.constant 0.000000e+00 : f32
    %15 = vector.broadcast %cst_16 : f32 to vector<256x32xf32>
    %16 = arith.maximumf %14, %15 : vector<256x32xf32>
    %cst_17 = arith.constant dense<0.000000e+00> : vector<256x64xf32>
    %17 = tpu.matmul %16, %2, %cst_17 {dimension_numbers = #tpu.dot_dimension_numbers<[1], [0], [0], [1], [0, 0, 1, 1], [], []>} : vector<256x32xf32>, vector<32x64xf32>, vector<256x64xf32> -> vector<256x64xf32>
    %18 = vector.broadcast %4 : vector<1x64xf32> to vector<256x64xf32>
    %19 = arith.addf %17, %18 : vector<256x64xf32>
    %20 = arith.negf %19 : vector<256x64xf32>
    %21 = math.exp %20 : vector<256x64xf32>
    %cst_18 = arith.constant 1.000000e+00 : f32
    %22 = vector.broadcast %cst_18 : f32 to vector<256x64xf32>
    %23 = arith.addf %22, %21 : vector<256x64xf32>
    %24 = arith.divf %22, %23 : vector<256x64xf32>
    %cst_19 = arith.constant dense<0.000000e+00> : vector<64xf32>
    %25 = vector.multi_reduction <add>, %24, %cst_19 [0] : vector<256x64xf32> to vector<64xf32>
    %26 = vector.shape_cast %25 : vector<64xf32> to vector<1x64xf32>
    %cst_20 = arith.constant 2.560000e+02 : f32
    %27 = vector.broadcast %cst_20 : f32 to vector<1x64xf32>
    %28 = arith.divf %26, %27 : vector<1x64xf32>
    %c0_21 = arith.constant 0 : index
    %c0_22 = arith.constant 0 : index
    %c0_23 = arith.constant 0 : index
    %29 = vector.load %arg8[%c0_21, %c0_22, %c0_23] : memref<4x1x64xf32, #tpu.memory_space<vmem>>, vector<1x1x64xf32>
    %30 = vector.shape_cast %29 : vector<1x1x64xf32> to vector<1x64xf32>
    %31 = vector.shape_cast %28 : vector<1x64xf32> to vector<1x1x64xf32>
    tpu.vector_store %arg8[%c0_21, %c0_22, %c0_23], %31 {strides = array<i32>} : memref<4x1x64xf32, #tpu.memory_space<vmem>>, vector<1x1x64xf32>,
    %c1 = arith.constant 1 : index
    %c0_24 = arith.constant 0 : index
    %c0_25 = arith.constant 0 : index
    %32 = vector.load %arg1[%c1, %c0_24, %c0_25] : memref<4x16x8xf32, #tpu.memory_space<vmem>>, vector<1x16x8xf32>
    %33 = vector.shape_cast %32 : vector<1x16x8xf32> to vector<16x8xf32>
    %cst_26 = arith.constant dense<0.000000e+00> : vector<16x32xf32>
    %34 = tpu.matmul %33, %0, %cst_26 {dimension_numbers = #tpu.dot_dimension_numbers<[1], [0], [0], [1], [0, 0, 1, 1], [], []>} : vector<16x8xf32>, vector<8x32xf32>, vector<16x32xf32> -> vector<16x32xf32>
    %c1_27 = arith.constant 1 : index
    %c0_28 = arith.constant 0 : index
    %c0_29 = arith.constant 0 : index
    %35 = vector.load %arg2[%c1_27, %c0_28, %c0_29] : memref<4x256x8xf32, #tpu.memory_space<vmem>>, vector<1x256x8xf32>
    %36 = vector.shape_cast %35 : vector<1x256x8xf32> to vector<256x8xf32>
    %cst_30 = arith.constant dense<0.000000e+00> : vector<256x32xf32>
    %37 = tpu.matmul %36, %1, %cst_30 {dimension_numbers = #tpu.dot_dimension_numbers<[1], [0], [0], [1], [0, 0, 1, 1], [], []>} : vector<256x8xf32>, vector<8x32xf32>, vector<256x32xf32> -> vector<256x32xf32>
    %38 = tpu.concatenate %34, %34, %34, %34, %34, %34, %34, %34, %34, %34, %34, %34, %34, %34, %34, %34 in 0 : vector<16x32xf32>, vector<16x32xf32>, vector<16x32xf32>, vector<16x32xf32>, vector<16x32xf32>, vector<16x32xf32>, vector<16x32xf32>, vector<16x32xf32>, vector<16x32xf32>, vector<16x32xf32>, vector<16x32xf32>, vector<16x32xf32>, vector<16x32xf32>, vector<16x32xf32>, vector<16x32xf32>, vector<16x32xf32> -> vector<256x32xf32>
    %39 = arith.addf %37, %38 : vector<256x32xf32>
    %40 = vector.broadcast %3 : vector<1x32xf32> to vector<256x32xf32>
    %41 = arith.addf %39, %40 : vector<256x32xf32>
    %cst_31 = arith.constant 0.000000e+00 : f32
    %42 = vector.broadcast %cst_31 : f32 to vector<256x32xf32>
    %43 = arith.maximumf %41, %42 : vector<256x32xf32>
    %cst_32 = arith.constant dense<0.000000e+00> : vector<256x64xf32>
    %44 = tpu.matmul %43, %2, %cst_32 {dimension_numbers = #tpu.dot_dimension_numbers<[1], [0], [0], [1], [0, 0, 1, 1], [], []>} : vector<256x32xf32>, vector<32x64xf32>, vector<256x64xf32> -> vector<256x64xf32>
    %45 = vector.broadcast %4 : vector<1x64xf32> to vector<256x64xf32>
    %46 = arith.addf %44, %45 : vector<256x64xf32>
    %47 = arith.negf %46 : vector<256x64xf32>
    %48 = math.exp %47 : vector<256x64xf32>
    %cst_33 = arith.constant 1.000000e+00 : f32
    %49 = vector.broadcast %cst_33 : f32 to vector<256x64xf32>
    %50 = arith.addf %49, %48 : vector<256x64xf32>
    %51 = arith.divf %49, %50 : vector<256x64xf32>
    %cst_34 = arith.constant dense<0.000000e+00> : vector<64xf32>
    %52 = vector.multi_reduction <add>, %51, %cst_34 [0] : vector<256x64xf32> to vector<64xf32>
    %53 = vector.shape_cast %52 : vector<64xf32> to vector<1x64xf32>
    %cst_35 = arith.constant 2.560000e+02 : f32
    %54 = vector.broadcast %cst_35 : f32 to vector<1x64xf32>
    %55 = arith.divf %53, %54 : vector<1x64xf32>
    %c1_36 = arith.constant 1 : index
    %c0_37 = arith.constant 0 : index
    %c0_38 = arith.constant 0 : index
    %56 = vector.load %arg8[%c1_36, %c0_37, %c0_38] : memref<4x1x64xf32, #tpu.memory_space<vmem>>, vector<1x1x64xf32>
    %57 = vector.shape_cast %56 : vector<1x1x64xf32> to vector<1x64xf32>
    %58 = vector.shape_cast %55 : vector<1x64xf32> to vector<1x1x64xf32>
    tpu.vector_store %arg8[%c1_36, %c0_37, %c0_38], %58 {strides = array<i32>} : memref<4x1x64xf32, #tpu.memory_space<vmem>>, vector<1x1x64xf32>,
    %c2 = arith.constant 2 : index
    %c0_39 = arith.constant 0 : index
    %c0_40 = arith.constant 0 : index
    %59 = vector.load %arg1[%c2, %c0_39, %c0_40] : memref<4x16x8xf32, #tpu.memory_space<vmem>>, vector<1x16x8xf32>
    %60 = vector.shape_cast %59 : vector<1x16x8xf32> to vector<16x8xf32>
    %cst_41 = arith.constant dense<0.000000e+00> : vector<16x32xf32>
    %61 = tpu.matmul %60, %0, %cst_41 {dimension_numbers = #tpu.dot_dimension_numbers<[1], [0], [0], [1], [0, 0, 1, 1], [], []>} : vector<16x8xf32>, vector<8x32xf32>, vector<16x32xf32> -> vector<16x32xf32>
    %c2_42 = arith.constant 2 : index
    %c0_43 = arith.constant 0 : index
    %c0_44 = arith.constant 0 : index
    %62 = vector.load %arg2[%c2_42, %c0_43, %c0_44] : memref<4x256x8xf32, #tpu.memory_space<vmem>>, vector<1x256x8xf32>
    %63 = vector.shape_cast %62 : vector<1x256x8xf32> to vector<256x8xf32>
    %cst_45 = arith.constant dense<0.000000e+00> : vector<256x32xf32>
    %64 = tpu.matmul %63, %1, %cst_45 {dimension_numbers = #tpu.dot_dimension_numbers<[1], [0], [0], [1], [0, 0, 1, 1], [], []>} : vector<256x8xf32>, vector<8x32xf32>, vector<256x32xf32> -> vector<256x32xf32>
    %65 = tpu.concatenate %61, %61, %61, %61, %61, %61, %61, %61, %61, %61, %61, %61, %61, %61, %61, %61 in 0 : vector<16x32xf32>, vector<16x32xf32>, vector<16x32xf32>, vector<16x32xf32>, vector<16x32xf32>, vector<16x32xf32>, vector<16x32xf32>, vector<16x32xf32>, vector<16x32xf32>, vector<16x32xf32>, vector<16x32xf32>, vector<16x32xf32>, vector<16x32xf32>, vector<16x32xf32>, vector<16x32xf32>, vector<16x32xf32> -> vector<256x32xf32>
    %66 = arith.addf %64, %65 : vector<256x32xf32>
    %67 = vector.broadcast %3 : vector<1x32xf32> to vector<256x32xf32>
    %68 = arith.addf %66, %67 : vector<256x32xf32>
    %cst_46 = arith.constant 0.000000e+00 : f32
    %69 = vector.broadcast %cst_46 : f32 to vector<256x32xf32>
    %70 = arith.maximumf %68, %69 : vector<256x32xf32>
    %cst_47 = arith.constant dense<0.000000e+00> : vector<256x64xf32>
    %71 = tpu.matmul %70, %2, %cst_47 {dimension_numbers = #tpu.dot_dimension_numbers<[1], [0], [0], [1], [0, 0, 1, 1], [], []>} : vector<256x32xf32>, vector<32x64xf32>, vector<256x64xf32> -> vector<256x64xf32>
    %72 = vector.broadcast %4 : vector<1x64xf32> to vector<256x64xf32>
    %73 = arith.addf %71, %72 : vector<256x64xf32>
    %74 = arith.negf %73 : vector<256x64xf32>
    %75 = math.exp %74 : vector<256x64xf32>
    %cst_48 = arith.constant 1.000000e+00 : f32
    %76 = vector.broadcast %cst_48 : f32 to vector<256x64xf32>
    %77 = arith.addf %76, %75 : vector<256x64xf32>
    %78 = arith.divf %76, %77 : vector<256x64xf32>
    %cst_49 = arith.constant dense<0.000000e+00> : vector<64xf32>
    %79 = vector.multi_reduction <add>, %78, %cst_49 [0] : vector<256x64xf32> to vector<64xf32>
    %80 = vector.shape_cast %79 : vector<64xf32> to vector<1x64xf32>
    %cst_50 = arith.constant 2.560000e+02 : f32
    %81 = vector.broadcast %cst_50 : f32 to vector<1x64xf32>
    %82 = arith.divf %80, %81 : vector<1x64xf32>
    %c2_51 = arith.constant 2 : index
    %c0_52 = arith.constant 0 : index
    %c0_53 = arith.constant 0 : index
    %83 = vector.load %arg8[%c2_51, %c0_52, %c0_53] : memref<4x1x64xf32, #tpu.memory_space<vmem>>, vector<1x1x64xf32>
    %84 = vector.shape_cast %83 : vector<1x1x64xf32> to vector<1x64xf32>
    %85 = vector.shape_cast %82 : vector<1x64xf32> to vector<1x1x64xf32>
    tpu.vector_store %arg8[%c2_51, %c0_52, %c0_53], %85 {strides = array<i32>} : memref<4x1x64xf32, #tpu.memory_space<vmem>>, vector<1x1x64xf32>,
    %c3 = arith.constant 3 : index
    %c0_54 = arith.constant 0 : index
    %c0_55 = arith.constant 0 : index
    %86 = vector.load %arg1[%c3, %c0_54, %c0_55] : memref<4x16x8xf32, #tpu.memory_space<vmem>>, vector<1x16x8xf32>
    %87 = vector.shape_cast %86 : vector<1x16x8xf32> to vector<16x8xf32>
    %cst_56 = arith.constant dense<0.000000e+00> : vector<16x32xf32>
    %88 = tpu.matmul %87, %0, %cst_56 {dimension_numbers = #tpu.dot_dimension_numbers<[1], [0], [0], [1], [0, 0, 1, 1], [], []>} : vector<16x8xf32>, vector<8x32xf32>, vector<16x32xf32> -> vector<16x32xf32>
    %c3_57 = arith.constant 3 : index
    %c0_58 = arith.constant 0 : index
    %c0_59 = arith.constant 0 : index
    %89 = vector.load %arg2[%c3_57, %c0_58, %c0_59] : memref<4x256x8xf32, #tpu.memory_space<vmem>>, vector<1x256x8xf32>
    %90 = vector.shape_cast %89 : vector<1x256x8xf32> to vector<256x8xf32>
    %cst_60 = arith.constant dense<0.000000e+00> : vector<256x32xf32>
    %91 = tpu.matmul %90, %1, %cst_60 {dimension_numbers = #tpu.dot_dimension_numbers<[1], [0], [0], [1], [0, 0, 1, 1], [], []>} : vector<256x8xf32>, vector<8x32xf32>, vector<256x32xf32> -> vector<256x32xf32>
    %92 = tpu.concatenate %88, %88, %88, %88, %88, %88, %88, %88, %88, %88, %88, %88, %88, %88, %88, %88 in 0 : vector<16x32xf32>, vector<16x32xf32>, vector<16x32xf32>, vector<16x32xf32>, vector<16x32xf32>, vector<16x32xf32>, vector<16x32xf32>, vector<16x32xf32>, vector<16x32xf32>, vector<16x32xf32>, vector<16x32xf32>, vector<16x32xf32>, vector<16x32xf32>, vector<16x32xf32>, vector<16x32xf32>, vector<16x32xf32> -> vector<256x32xf32>
    %93 = arith.addf %91, %92 : vector<256x32xf32>
    %94 = vector.broadcast %3 : vector<1x32xf32> to vector<256x32xf32>
    %95 = arith.addf %93, %94 : vector<256x32xf32>
    %cst_61 = arith.constant 0.000000e+00 : f32
    %96 = vector.broadcast %cst_61 : f32 to vector<256x32xf32>
    %97 = arith.maximumf %95, %96 : vector<256x32xf32>
    %cst_62 = arith.constant dense<0.000000e+00> : vector<256x64xf32>
    %98 = tpu.matmul %97, %2, %cst_62 {dimension_numbers = #tpu.dot_dimension_numbers<[1], [0], [0], [1], [0, 0, 1, 1], [], []>} : vector<256x32xf32>, vector<32x64xf32>, vector<256x64xf32> -> vector<256x64xf32>
    %99 = vector.broadcast %4 : vector<1x64xf32> to vector<256x64xf32>
    %100 = arith.addf %98, %99 : vector<256x64xf32>
    %101 = arith.negf %100 : vector<256x64xf32>
    %102 = math.exp %101 : vector<256x64xf32>
    %cst_63 = arith.constant 1.000000e+00 : f32
    %103 = vector.broadcast %cst_63 : f32 to vector<256x64xf32>
    %104 = arith.addf %103, %102 : vector<256x64xf32>
    %105 = arith.divf %103, %104 : vector<256x64xf32>
    %cst_64 = arith.constant dense<0.000000e+00> : vector<64xf32>
    %106 = vector.multi_reduction <add>, %105, %cst_64 [0] : vector<256x64xf32> to vector<64xf32>
    %107 = vector.shape_cast %106 : vector<64xf32> to vector<1x64xf32>
    %cst_65 = arith.constant 2.560000e+02 : f32
    %108 = vector.broadcast %cst_65 : f32 to vector<1x64xf32>
    %109 = arith.divf %107, %108 : vector<1x64xf32>
    %c3_66 = arith.constant 3 : index
    %c0_67 = arith.constant 0 : index
    %c0_68 = arith.constant 0 : index
    %110 = vector.load %arg8[%c3_66, %c0_67, %c0_68] : memref<4x1x64xf32, #tpu.memory_space<vmem>>, vector<1x1x64xf32>
    %111 = vector.shape_cast %110 : vector<1x1x64xf32> to vector<1x64xf32>
    %112 = vector.shape_cast %109 : vector<1x64xf32> to vector<1x1x64xf32>
    tpu.vector_store %arg8[%c3_66, %c0_67, %c0_68], %112 {strides = array<i32>} : memref<4x1x64xf32, #tpu.memory_space<vmem>>, vector<1x1x64xf32>,
    return
  }
  func.func @transform_0(%arg0: i32) -> (i32, i32, i32) {
    %c0_i32 = arith.constant 0 : i32
    %c0_i32_0 = arith.constant 0 : i32
    %c0_i32_1 = arith.constant 0 : i32
    return %arg0, %c0_i32, %c0_i32_0 : i32, i32, i32
  }
  func.func @transform_1(%arg0: i32) -> (i32, i32, i32) {
    %c0_i32 = arith.constant 0 : i32
    %c0_i32_0 = arith.constant 0 : i32
    %c0_i32_1 = arith.constant 0 : i32
    return %arg0, %c0_i32, %c0_i32_0 : i32, i32, i32
  }
  func.func @transform_2(%arg0: i32) -> (i32, i32) {
    %c0_i32 = arith.constant 0 : i32
    %c0_i32_0 = arith.constant 0 : i32
    %c0_i32_1 = arith.constant 0 : i32
    return %c0_i32, %c0_i32_0 : i32, i32
  }
  func.func @transform_3(%arg0: i32) -> (i32, i32) {
    %c0_i32 = arith.constant 0 : i32
    %c0_i32_0 = arith.constant 0 : i32
    %c0_i32_1 = arith.constant 0 : i32
    return %c0_i32, %c0_i32_0 : i32, i32
  }
  func.func @transform_4(%arg0: i32) -> (i32, i32) {
    %c0_i32 = arith.constant 0 : i32
    %c0_i32_0 = arith.constant 0 : i32
    %c0_i32_1 = arith.constant 0 : i32
    return %c0_i32, %c0_i32_0 : i32, i32
  }
  func.func @transform_5(%arg0: i32) -> (i32, i32) {
    %c0_i32 = arith.constant 0 : i32
    %c0_i32_0 = arith.constant 0 : i32
    %c0_i32_1 = arith.constant 0 : i32
    return %c0_i32, %c0_i32_0 : i32, i32
  }
  func.func @transform_6(%arg0: i32) -> (i32, i32) {
    %c0_i32 = arith.constant 0 : i32
    %c0_i32_0 = arith.constant 0 : i32
    %c0_i32_1 = arith.constant 0 : i32
    return %c0_i32, %c0_i32_0 : i32, i32
  }
  func.func @transform_7(%arg0: i32) -> (i32, i32, i32) {
    %c0_i32 = arith.constant 0 : i32
    %c0_i32_0 = arith.constant 0 : i32
    %c0_i32_1 = arith.constant 0 : i32
    return %arg0, %c0_i32, %c0_i32_0 : i32, i32, i32
  }
}

</mosaic_0001>

<llo_original>
// kernel: tpu_custom_call.1
$region0: #{tpu_custom_call.1}
  #allocation0 [shape = 'u32[]', space=smem, size = 0x4, offset = 0x4, fixed_abs, tag = 'smem constant byte address 0x4 - core index']
  #allocation1 [shape = 'u32[144,128]{1,0:T(1,128)}', space=vmem, size = 0x12000, scoped, tag = 'internal scratch']
  %s0 = inlined_call_operand.vmem [shape: f32[8,16,8], index: 0, kind: input, shape index: {}]
  %s1 = inlined_call_operand.vmem [shape: f32[8,256,8], index: 1, kind: input, shape index: {}]
  %s2 = inlined_call_operand.vmem [shape: f32[8,32], index: 2, kind: input, shape index: {}]
  %s3 = inlined_call_operand.vmem [shape: f32[8,32], index: 3, kind: input, shape index: {}]
  %s4 = inlined_call_operand.vmem [shape: f32[32,64], index: 4, kind: input, shape index: {}]
  %s5 = inlined_call_operand.vmem [shape: f32[1,32], index: 5, kind: input, shape index: {}]
  %s6 = inlined_call_operand.vmem [shape: f32[1,64], index: 6, kind: input, shape index: {}]
  %s7 = inlined_call_operand.hbm [shape: f32[8,1,64], index: 7, kind: output, shape index: {}]
  %s8 = sld [smem:[#allocation0]]
  $region61: #{tpu_custom_call.1} parent=0
    _
  %s10 = ssub.s32 1, %s8
  %s11 = scalar_select 0, %s10, %s8
  $region1: #{tpu_custom_call.1} parent=0
    #allocation2 [shape = 'u8[4096]{0}', space=vmem, size = 0x1000, scoped, tag = 'output window, operand 0']
    #allocation3 [shape = 's32[2]{0}', space=sflag, size = 0x8, scoped, tag = 'scoped memory for tpu_custom_call.1']
    %12 = vsyncpa [#allocation3], 0
    %s13 = scalar_lea.sflag [#allocation3], 1
    %14 = vsyncpa %s13, 0
    loop: start=0, step=1, limit=4
    $region2: #{tpu_custom_call.1} parent=1 // loop_pre_header
      _
    $region3: #{tpu_custom_call.1} parent=1 // loop_header
      %s16 = sphi 0, %s20
      %p17 = scmp.ge.s32.totalorder %s16, 4
      %s26 = sphi 0, %s28
      %s29 = sphi 0, %s26
      %s30 = sphi 0, %s29
      %s46 = sphi 0, %s30
      %s52 = sphi 0, %s54
      %s55 = sphi 0, %s52
      %s56 = sphi 0, %s55
      %s72 = sphi 0, %s56
      %s76 = sphi 0, %s76
      %s78 = sphi 0, %s76
      %s79 = sphi 0, %s78
      %s93 = sphi 0, %s79
      %s97 = sphi 0, %s97
      %s99 = sphi 0, %s97
      %s100 = sphi 0, %s99
      %s114 = sphi 0, %s100
      %s118 = sphi 0, %s118
      %s120 = sphi 0, %s118
      %s121 = sphi 0, %s120
      %s135 = sphi 0, %s121
      %s139 = sphi 0, %s139
      %s141 = sphi 0, %s139
      %s142 = sphi 0, %s141
      %s156 = sphi 0, %s142
      %s160 = sphi 0, %s160
      %s162 = sphi 0, %s160
      %s163 = sphi 0, %s162
      %s177 = sphi 0, %s163
      %s183 = sphi 0, %s185
      %s186 = sphi 0, %s183
      %s187 = sphi 0, %s186
      %s203 = sphi 0, %s187
    $region4: #{tpu_custom_call.1} parent=1 // loop_header_branch
      %19 = sbr.rel (%p17) target = $region8
    $region5: #{tpu_custom_call.1} parent=1 // loop_body
      %s21 = ssub.s32 %s16, 1
      %s22 = ssub.s32 %s16, 2
      %s23 = sadd.s32 %s16, 1
      %s24 = ssub.s32 %s16, %s23
      %p25 = scmp.eq.s32.totalorder %s24, 0
      %s27 = sadd.s32 %s26, 1
      %s28 = scalar_select %p25, %s26, %s27
      %p31 = pneg %p25
      %p32 = scmp.eq.s32.totalorder %s16, 1
      %p33 = por %p31, %p32
      %p34 = scmp.ne.s32.totalorder %s26, %s29
      %p35 = scmp.eq.s32.totalorder %s16, 0
      %p36 = por %p34, %p35
      %p37 = scmp.ne.s32.totalorder %s26, %s29
      %p38 = scmp.eq.s32.totalorder %s21, 1
      %p39 = por %p37, %p38
      %p40 = scmp.ne.s32.totalorder %s29, %s30
      %p41 = scmp.eq.s32.totalorder %s21, 0
      %p42 = por %p40, %p41
      %p43 = scmp.ne.s32.totalorder %s29, %s30
      %p44 = scmp.eq.s32.totalorder %s22, 1
      %p45 = por %p43, %p44
      %p47 = scmp.ne.s32.totalorder %s30, %s46
      %p48 = scmp.eq.s32.totalorder %s22, 0
      %p49 = por %p47, %p48
      %s50 = ssub.s32 %s16, %s23
      %p51 = scmp.eq.s32.totalorder %s50, 0
      %s53 = sadd.s32 %s52, 1
      %s54 = scalar_select %p51, %s52, %s53
      %p57 = pneg %p51
      %p58 = scmp.eq.s32.totalorder %s16, 1
      %p59 = por %p57, %p58
      %p60 = scmp.ne.s32.totalorder %s52, %s55
      %p61 = scmp.eq.s32.totalorder %s16, 0
      %p62 = por %p60, %p61
      %p63 = scmp.ne.s32.totalorder %s52, %s55
      %p64 = scmp.eq.s32.totalorder %s21, 1
      %p65 = por %p63, %p64
      %p66 = scmp.ne.s32.totalorder %s55, %s56
      %p67 = scmp.eq.s32.totalorder %s21, 0
      %p68 = por %p66, %p67
      %p69 = scmp.ne.s32.totalorder %s55, %s56
      %p70 = scmp.eq.s32.totalorder %s22, 1
      %p71 = por %p69, %p70
      %p73 = scmp.ne.s32.totalorder %s56, %s72
      %p74 = scmp.eq.s32.totalorder %s22, 0
      %p75 = por %p73, %p74
      %s77 = sadd.s32 %s76, 1
      %p80 = scmp.eq.s32.totalorder %s16, 1
      %p81 = scmp.ne.s32.totalorder %s76, %s78
      %p82 = scmp.eq.s32.totalorder %s16, 0
      %p83 = por %p81, %p82
      %p84 = scmp.ne.s32.totalorder %s76, %s78
      %p85 = scmp.eq.s32.totalorder %s21, 1
      %p86 = por %p84, %p85
      %p87 = scmp.ne.s32.totalorder %s78, %s79
      %p88 = scmp.eq.s32.totalorder %s21, 0
      %p89 = por %p87, %p88
      %p90 = scmp.ne.s32.totalorder %s78, %s79
      %p91 = scmp.eq.s32.totalorder %s22, 1
      %p92 = por %p90, %p91
      %p94 = scmp.ne.s32.totalorder %s79, %s93
      %p95 = scmp.eq.s32.totalorder %s22, 0
      %p96 = por %p94, %p95
      %s98 = sadd.s32 %s97, 1
      %p101 = scmp.eq.s32.totalorder %s16, 1
      %p102 = scmp.ne.s32.totalorder %s97, %s99
      %p103 = scmp.eq.s32.totalorder %s16, 0
      %p104 = por %p102, %p103
      %p105 = scmp.ne.s32.totalorder %s97, %s99
      %p106 = scmp.eq.s32.totalorder %s21, 1
      %p107 = por %p105, %p106
      %p108 = scmp.ne.s32.totalorder %s99, %s100
      %p109 = scmp.eq.s32.totalorder %s21, 0
      %p110 = por %p108, %p109
      %p111 = scmp.ne.s32.totalorder %s99, %s100
      %p112 = scmp.eq.s32.totalorder %s22, 1
      %p113 = por %p111, %p112
      %p115 = scmp.ne.s32.totalorder %s100, %s114
      %p116 = scmp.eq.s32.totalorder %s22, 0
      %p117 = por %p115, %p116
      %s119 = sadd.s32 %s118, 1
      %p122 = scmp.eq.s32.totalorder %s16, 1
      %p123 = scmp.ne.s32.totalorder %s118, %s120
      %p124 = scmp.eq.s32.totalorder %s16, 0
      %p125 = por %p123, %p124
      %p126 = scmp.ne.s32.totalorder %s118, %s120
      %p127 = scmp.eq.s32.totalorder %s21, 1
      %p128 = por %p126, %p127
      %p129 = scmp.ne.s32.totalorder %s120, %s121
      %p130 = scmp.eq.s32.totalorder %s21, 0
      %p131 = por %p129, %p130
      %p132 = scmp.ne.s32.totalorder %s120, %s121
      %p133 = scmp.eq.s32.totalorder %s22, 1
      %p134 = por %p132, %p133
      %p136 = scmp.ne.s32.totalorder %s121, %s135
      %p137 = scmp.eq.s32.totalorder %s22, 0
      %p138 = por %p136, %p137
      %s140 = sadd.s32 %s139, 1
      %p143 = scmp.eq.s32.totalorder %s16, 1
      %p144 = scmp.ne.s32.totalorder %s139, %s141
      %p145 = scmp.eq.s32.totalorder %s16, 0
      %p146 = por %p144, %p145
      %p147 = scmp.ne.s32.totalorder %s139, %s141
      %p148 = scmp.eq.s32.totalorder %s21, 1
      %p149 = por %p147, %p148
      %p150 = scmp.ne.s32.totalorder %s141, %s142
      %p151 = scmp.eq.s32.totalorder %s21, 0
      %p152 = por %p150, %p151
      %p153 = scmp.ne.s32.totalorder %s141, %s142
      %p154 = scmp.eq.s32.totalorder %s22, 1
      %p155 = por %p153, %p154
      %p157 = scmp.ne.s32.totalorder %s142, %s156
      %p158 = scmp.eq.s32.totalorder %s22, 0
      %p159 = por %p157, %p158
      %s161 = sadd.s32 %s160, 1
      %p164 = scmp.eq.s32.totalorder %s16, 1
      %p165 = scmp.ne.s32.totalorder %s160, %s162
      %p166 = scmp.eq.s32.totalorder %s16, 0
      %p167 = por %p165, %p166
      %p168 = scmp.ne.s32.totalorder %s160, %s162
      %p169 = scmp.eq.s32.totalorder %s21, 1
      %p170 = por %p168, %p169
      %p171 = scmp.ne.s32.totalorder %s162, %s163
      %p172 = scmp.eq.s32.totalorder %s21, 0
      %p173 = por %p171, %p172
      %p174 = scmp.ne.s32.totalorder %s162, %s163
      %p175 = scmp.eq.s32.totalorder %s22, 1
      %p176 = por %p174, %p175
      %p178 = scmp.ne.s32.totalorder %s163, %s177
      %p179 = scmp.eq.s32.totalorder %s22, 0
      %p180 = por %p178, %p179
      %s181 = ssub.s32 %s16, %s23
      %p182 = scmp.eq.s32.totalorder %s181, 0
      %s184 = sadd.s32 %s183, 1
      %s185 = scalar_select %p182, %s183, %s184
      %p188 = pneg %p182
      %p189 = scmp.eq.s32.totalorder %s16, 1
      %p190 = por %p188, %p189
      %p191 = scmp.ne.s32.totalorder %s183, %s186
      %p192 = scmp.eq.s32.totalorder %s16, 0
      %p193 = por %p191, %p192
      %p194 = scmp.ne.s32.totalorder %s183, %s186
      %p195 = scmp.eq.s32.totalorder %s21, 1
      %p196 = por %p194, %p195
      %p197 = scmp.ne.s32.totalorder %s186, %s187
      %p198 = scmp.eq.s32.totalorder %s21, 0
      %p199 = por %p197, %p198
      %p200 = scmp.ne.s32.totalorder %s186, %s187
      %p201 = scmp.eq.s32.totalorder %s22, 1
      %p202 = por %p200, %p201
      %p204 = scmp.ne.s32.totalorder %s187, %s203
      %p205 = scmp.eq.s32.totalorder %s22, 0
      %p206 = por %p204, %p205
      %p207 = scmp.le.s32.totalorder 1, %s16
      %p208 = scmp.lt.s32.totalorder %s16, 3
      %p209 = pnand %p207, %p208
      %p210 = pneg %p209
      // Predicated region
      $region9: #{tpu_custom_call.1} parent=5 // pred_check
        _
      $region10: #{tpu_custom_call.1} parent=5 // pred_check_branch
        %212 = sbr.rel (%p209) target = $region12
      $region11: #{tpu_custom_call.1} parent=5 // pred_region
        %s213 = ssub.s32 %s16, 1
        // Predicated region
        $region13: #{tpu_custom_call.1} parent=11 // pred_check
          %p214 = pneg %p89
        $region14: #{tpu_custom_call.1} parent=11 // pred_check_branch
          %216 = sbr.rel (%p214) target = $region16
        $region15: #{tpu_custom_call.1} parent=11 // pred_region
          _
        $region16: #{tpu_custom_call.1} parent=11 // pred_fallthru
          _
        // Predicated region
        $region17: #{tpu_custom_call.1} parent=11 // pred_check
          %p217 = pneg %p110
        $region18: #{tpu_custom_call.1} parent=11 // pred_check_branch
          %219 = sbr.rel (%p217) target = $region20
        $region19: #{tpu_custom_call.1} parent=11 // pred_region
          _
        $region20: #{tpu_custom_call.1} parent=11 // pred_fallthru
          _
        // Predicated region
        $region21: #{tpu_custom_call.1} parent=11 // pred_check
          %p220 = pneg %p131
        $region22: #{tpu_custom_call.1} parent=11 // pred_check_branch
          %222 = sbr.rel (%p220) target = $region24
        $region23: #{tpu_custom_call.1} parent=11 // pred_region
          _
        $region24: #{tpu_custom_call.1} parent=11 // pred_fallthru
          _
        // Predicated region
        $region25: #{tpu_custom_call.1} parent=11 // pred_check
          %p223 = pneg %p152
        $region26: #{tpu_custom_call.1} parent=11 // pred_check_branch
          %225 = sbr.rel (%p223) target = $region28
        $region27: #{tpu_custom_call.1} parent=11 // pred_region
          _
        $region28: #{tpu_custom_call.1} parent=11 // pred_fallthru
          _
        // Predicated region
        $region29: #{tpu_custom_call.1} parent=11 // pred_check
          %p226 = pneg %p173
        $region30: #{tpu_custom_call.1} parent=11 // pred_check_branch
          %228 = sbr.rel (%p226) target = $region32
        $region31: #{tpu_custom_call.1} parent=11 // pred_region
          _
        $region32: #{tpu_custom_call.1} parent=11 // pred_fallthru
          _
      $region12: #{tpu_custom_call.1} parent=5 // pred_fallthru
        _
      %p229 = scmp.lt.s32.totalorder %s16, 2
      // Predicated region
      $region33: #{tpu_custom_call.1} parent=5 // pred_check
        %p230 = pneg %p229
      $region34: #{tpu_custom_call.1} parent=5 // pred_check_branch
        %232 = sbr.rel (%p230) target = $region36
      $region35: #{tpu_custom_call.1} parent=5 // pred_region
        // Predicated region
        $region37: #{tpu_custom_call.1} parent=35 // pred_check
          %p233 = pneg %p36
        $region38: #{tpu_custom_call.1} parent=35 // pred_check_branch
          %235 = sbr.rel (%p233) target = $region40
        $region39: #{tpu_custom_call.1} parent=35 // pred_region
          %s236 = smul.u32 4, %s16
          %p237 = scmp.lt.s32.totalorder %s236, 7
          %s238 = scalar_select %p237, %s236, 7
          %s239 = smul.addr %s238, 2
          %s240 = smul.addr %s239, 8
          %s241 = scalar_lea.vmem %s0, %s240
          %s242 = smul.u32 4, %s16
        $region40: #{tpu_custom_call.1} parent=35 // pred_fallthru
          _
        // Predicated region
        $region41: #{tpu_custom_call.1} parent=35 // pred_check
          %p243 = pneg %p62
        $region42: #{tpu_custom_call.1} parent=35 // pred_check_branch
          %245 = sbr.rel (%p243) target = $region44
        $region43: #{tpu_custom_call.1} parent=35 // pred_region
          %s246 = smul.u32 4, %s16
          %p247 = scmp.lt.s32.totalorder %s246, 7
          %s248 = scalar_select %p247, %s246, 7
          %s249 = smul.addr %s248, 32
          %s250 = smul.addr %s249, 8
          %s251 = scalar_lea.vmem %s1, %s250
          %s252 = smul.u32 4, %s16
        $region44: #{tpu_custom_call.1} parent=35 // pred_fallthru
          _
      $region36: #{tpu_custom_call.1} parent=5 // pred_fallthru
        _
      %p253 = scmp.le.s32.totalorder 1, %s16
      %p254 = scmp.lt.s32.totalorder %s16, 3
      %p255 = pnand %p253, %p254
      %p256 = pneg %p255
      // Predicated region
      $region45: #{tpu_custom_call.1} parent=5 // pred_check
        _
      $region46: #{tpu_custom_call.1} parent=5 // pred_check_branch
        %258 = sbr.rel (%p255) target = $region48
      $region47: #{tpu_custom_call.1} parent=5 // pred_region
        %s259 = ssub.s32 %s16, 1
        %s260 = smul.u32 4, %s21
        %p261 = scmp.lt.s32.totalorder %s260, 7
        %s262 = scalar_select %p261, %s260, 7
        %s263 = smul.addr %s262, 2
        %s264 = smul.addr %s263, 8
        %s265 = scalar_lea.vmem %s0, %s264
        %p266 = pneg %p42
        %p267 = pneg %p39
        %s268 = smul.u32 4, %s21
        %p269 = scmp.lt.s32.totalorder %s268, 7
        %s270 = scalar_select %p269, %s268, 7
        %s271 = smul.addr %s270, 32
        %s272 = smul.addr %s271, 8
        %s273 = scalar_lea.vmem %s1, %s272
        %p274 = pneg %p68
        %p275 = pneg %p65
        %p276 = pneg %p89
        %p277 = pneg %p86
        %p278 = pneg %p110
        %p279 = pneg %p107
        %p280 = pneg %p131
        %p281 = pneg %p128
        %p282 = pneg %p152
        %p283 = pneg %p149
        %p284 = pneg %p173
        %p285 = pneg %p170
        %p286 = pneg %p199
        %p287 = pneg %p196
        %s288 = sand.u32 %s186, 1
        %s289 = scalar_lea.sflag [#allocation3], %s288
        %s290 = sand.u32 %s186, 1
        %s291 = smul.addr %s290, 4
        %s292 = scalar_lea.vmem [#allocation2], %s291
        %s293 = smul.u32 4, %s21
        %p294 = scmp.lt.s32.totalorder %s293, 7
        %s295 = scalar_select %p294, %s293, 7
        %s296 = smul.addr %s295, 2
        %s297 = smul.addr %s296, 8
        %s298 = scalar_lea.vmem %s0, %s297
        %s299 = smul.u32 4, %s21
        %s300 = smul.u32 4, %s21
        %p301 = scmp.lt.s32.totalorder %s300, 7
        %s302 = scalar_select %p301, %s300, 7
        %s303 = smul.addr %s302, 32
        %s304 = smul.addr %s303, 8
        %s305 = scalar_lea.vmem %s1, %s304
        %s306 = smul.u32 4, %s21
        %s307 = smul.u32 4, %s21
        %v308 = vld [vmem:[%s2] sm:$0xff]
        %v309 = vld [vmem:[%s3] sm:$0xff]
        %v310 = vld [vmem:[%s4] sm:$0xff]
        %v311 = vld [vmem:[%s4 + $0x8] sm:$0xff]
        %v312 = vld [vmem:[%s4 + $0x10] sm:$0xff]
        %v313 = vld [vmem:[%s4 + $0x18] sm:$0xff]
        %v314 = vld [vmem:[%s5] sm:$0x1]
        %v315 = vld [vmem:[%s6] sm:$0x1]
        %v316 = vld [vmem:[%s298] sm:$0xff]
        %v317 = vld [vmem:[%s298 + $0x8] sm:$0xff]
        %vm318 = vcmask 64512
        %v320 = vsel %vm318, %v316, 0
        %v323 = vsel %vm318, %v317, 0
        %325 = vmatprep.subr.mxu0 0.0
        %326 = vmatpush1.msra.mxu0 0.0
        %327 = vmatprep.subr.mxu0 0.0
        %328 = vmatpush1.msra.mxu0 0.0
        %329 = vmatprep.subr.mxu0 0.0
        %330 = vmatpush1.msra.mxu0 0.0
        %331 = vmatprep.subr.mxu0 0.0
        %332 = vmatpush1.msra.mxu0 0.0
        %333 = vmatprep.subr.mxu0 0.0
        %334 = vmatpush1.msra.mxu0 0.0
        %335 = vmatprep.subr.mxu0 0.0
        %336 = vmatpush1.msra.mxu0 0.0
        %337 = vmatprep.subr.mxu0 0.0
        %338 = vmatpush1.msra.mxu0 0.0
        %339 = vmatprep.subr.mxu0 0.0
        %340 = vmatpush1.msra.mxu0 0.0
        %341 = vmatprep.subr.mxu0 0.0
        %342 = vmatpush1.msra.mxu0 0.0
        %343 = vmatprep.subr.mxu0 0.0
        %344 = vmatpush1.msra.mxu0 0.0
        %345 = vmatprep.subr.mxu0 0.0
        %346 = vmatpush1.msra.mxu0 0.0
        %347 = vmatprep.subr.mxu0 0.0
        %348 = vmatpush1.msra.mxu0 0.0
        %349 = vmatprep.subr.mxu0 0.0
        %350 = vmatpush1.msra.mxu0 0.0
        %351 = vmatprep.subr.mxu0 0.0
        %352 = vmatpush1.msra.mxu0 0.0
        %353 = vmatprep.subr.mxu0 0.0
        %354 = vmatpush1.msra.mxu0 0.0
        %355 = vmatprep.subr.mxu0 0.0
        %356 = vmatpush1.msra.mxu0 %v308
        %357 = vmatprep.subr.mxu0 0.0
        %358 = vmatpush2.msra.mxu0 0.0
        %359 = vmatprep.subr.mxu0 0.0
        %360 = vmatpush2.msra.mxu0 0.0
        %361 = vmatprep.subr.mxu0 0.0
        %362 = vmatpush2.msra.mxu0 0.0
        %363 = vmatprep.subr.mxu0 0.0
        %364 = vmatpush2.msra.mxu0 0.0
        %365 = vmatprep.subr.mxu0 0.0
        %366 = vmatpush2.msra.mxu0 0.0
        %367 = vmatprep.subr.mxu0 0.0
        %368 = vmatpush2.msra.mxu0 0.0
        %369 = vmatprep.subr.mxu0 0.0
        %370 = vmatpush2.msra.mxu0 0.0
        %371 = vmatprep.subr.mxu0 0.0
        %372 = vmatpush2.msra.mxu0 0.0
        %373 = vmatprep.subr.mxu0 0.0
        %374 = vmatpush2.msra.mxu0 0.0
        %375 = vmatprep.subr.mxu0 0.0
        %376 = vmatpush2.msra.mxu0 0.0
        %377 = vmatprep.subr.mxu0 0.0
        %378 = vmatpush2.msra.mxu0 0.0
        %379 = vmatprep.subr.mxu0 0.0
        %380 = vmatpush2.msra.mxu0 0.0
        %381 = vmatprep.subr.mxu0 0.0
        %382 = vmatpush2.msra.mxu0 0.0
        %383 = vmatprep.subr.mxu0 0.0
        %384 = vmatpush2.msra.mxu0 0.0
        %385 = vmatprep.subr.mxu0 0.0
        %386 = vmatpush2.msra.mxu0 0.0
        %387 = vmatprep.subr.mxu0 0.0
        %388 = vmatpush2.msra.mxu0 0.0
        %389 = vmatprep.mubr.f32.mxu0 0.0
        %390 = vmatmul.mubr.f32.gmra.mxu0 %v320
        %v391 = vpop.f32.mrf.mxu0
        %v392 = vadd.f32 0.0, %v391
        %v393 = vpop.f32.mrf.mxu0
        %394 = vmatprep.mubr.f32.mxu0 0.0
        %395 = vmatmul.mubr.f32.gmra.mxu0 %v323
        %v396 = vpop.f32.mrf.mxu0
        %v397 = vadd.f32 0.0, %v396
        %v398 = vpop.f32.mrf.mxu0
        %399 = vdwg.mxu0
        %v400 = vld [vmem:[%s305] sm:$0xff]
        %v401 = vld [vmem:[%s305 + $0x8] sm:$0xff]
        %v402 = vld [vmem:[%s305 + $0x10] sm:$0xff]
        %v403 = vld [vmem:[%s305 + $0x18] sm:$0xff]
        %v404 = vld [vmem:[%s305 + $0x20] sm:$0xff]
        %v405 = vld [vmem:[%s305 + $0x28] sm:$0xff]
        %v406 = vld [vmem:[%s305 + $0x30] sm:$0xff]
        %v407 = vld [vmem:[%s305 + $0x38] sm:$0xff]
        %v408 = vld [vmem:[%s305 + $0x40] sm:$0xff]
        %v409 = vld [vmem:[%s305 + $0x48] sm:$0xff]
        %v410 = vld [vmem:[%s305 + $0x50] sm:$0xff]
        %v411 = vld [vmem:[%s305 + $0x58] sm:$0xff]
        %v412 = vld [vmem:[%s305 + $0x60] sm:$0xff]
        %v413 = vld [vmem:[%s305 + $0x68] sm:$0xff]
        %v414 = vld [vmem:[%s305 + $0x70] sm:$0xff]
        %v415 = vld [vmem:[%s305 + $0x78] sm:$0xff]
        %v416 = vld [vmem:[%s305 + $0x80] sm:$0xff]
        %v417 = vld [vmem:[%s305 + $0x88] sm:$0xff]
        %v418 = vld [vmem:[%s305 + $0x90] sm:$0xff]
        %v419 = vld [vmem:[%s305 + $0x98] sm:$0xff]
        %v420 = vld [vmem:[%s305 + $0xa0] sm:$0xff]
        %v421 = vld [vmem:[%s305 + $0xa8] sm:$0xff]
        %v422 = vld [vmem:[%s305 + $0xb0] sm:$0xff]
        %v423 = vld [vmem:[%s305 + $0xb8] sm:$0xff]
        %v424 = vld [vmem:[%s305 + $0xc0] sm:$0xff]
        %v425 = vld [vmem:[%s305 + $0xc8] sm:$0xff]
        %v426 = vld [vmem:[%s305 + $0xd0] sm:$0xff]
        %v427 = vld [vmem:[%s305 + $0xd8] sm:$0xff]
        %v428 = vld [vmem:[%s305 + $0xe0] sm:$0xff]
        %v429 = vld [vmem:[%s305 + $0xe8] sm:$0xff]
        %v430 = vld [vmem:[%s305 + $0xf0] sm:$0xff]
        %v431 = vld [vmem:[%s305 + $0xf8] sm:$0xff]
        %v433 = vsel %vm318, %v400, 0
        %v436 = vsel %vm318, %v401, 0
        %v439 = vsel %vm318, %v402, 0
        %v442 = vsel %vm318, %v403, 0
        %v445 = vsel %vm318, %v404, 0
        %v448 = vsel %vm318, %v405, 0
        %v451 = vsel %vm318, %v406, 0
        %v454 = vsel %vm318, %v407, 0
        %v457 = vsel %vm318, %v408, 0
        %v460 = vsel %vm318, %v409, 0
        %v463 = vsel %vm318, %v410, 0
        %v466 = vsel %vm318, %v411, 0
        %v469 = vsel %vm318, %v412, 0
        %v472 = vsel %vm318, %v413, 0
        %v475 = vsel %vm318, %v414, 0
        %v478 = vsel %vm318, %v415, 0
        %v481 = vsel %vm318, %v416, 0
        %v484 = vsel %vm318, %v417, 0
        %v487 = vsel %vm318, %v418, 0
        %v490 = vsel %vm318, %v419, 0
        %v493 = vsel %vm318, %v420, 0
        %v496 = vsel %vm318, %v421, 0
        %v499 = vsel %vm318, %v422, 0
        %v502 = vsel %vm318, %v423, 0
        %v505 = vsel %vm318, %v424, 0
        %v508 = vsel %vm318, %v425, 0
        %v511 = vsel %vm318, %v426, 0
        %v514 = vsel %vm318, %v427, 0
        %v517 = vsel %vm318, %v428, 0
        %v520 = vsel %vm318, %v429, 0
        %v523 = vsel %vm318, %v430, 0
        %v526 = vsel %vm318, %v431, 0
        %528 = vmatprep.subr.mxu0 0.0
        %529 = vmatpush1.msra.mxu0 0.0
        %530 = vmatprep.subr.mxu0 0.0
        %531 = vmatpush1.msra.mxu0 0.0
        %532 = vmatprep.subr.mxu0 0.0
        %533 = vmatpush1.msra.mxu0 0.0
        %534 = vmatprep.subr.mxu0 0.0
        %535 = vmatpush1.msra.mxu0 0.0
        %536 = vmatprep.subr.mxu0 0.0
        %537 = vmatpush1.msra.mxu0 0.0
        %538 = vmatprep.subr.mxu0 0.0
        %539 = vmatpush1.msra.mxu0 0.0
        %540 = vmatprep.subr.mxu0 0.0
        %541 = vmatpush1.msra.mxu0 0.0
        %542 = vmatprep.subr.mxu0 0.0
        %543 = vmatpush1.msra.mxu0 0.0
        %544 = vmatprep.subr.mxu0 0.0
        %545 = vmatpush1.msra.mxu0 0.0
        %546 = vmatprep.subr.mxu0 0.0
        %547 = vmatpush1.msra.mxu0 0.0
        %548 = vmatprep.subr.mxu0 0.0
        %549 = vmatpush1.msra.mxu0 0.0
        %550 = vmatprep.subr.mxu0 0.0
        %551 = vmatpush1.msra.mxu0 0.0
        %552 = vmatprep.subr.mxu0 0.0
        %553 = vmatpush1.msra.mxu0 0.0
        %554 = vmatprep.subr.mxu0 0.0
        %555 = vmatpush1.msra.mxu0 0.0
        %556 = vmatprep.subr.mxu0 0.0
        %557 = vmatpush1.msra.mxu0 0.0
        %558 = vmatprep.subr.mxu0 0.0
        %559 = vmatpush1.msra.mxu0 %v309
        %560 = vmatprep.subr.mxu0 0.0
        %561 = vmatpush2.msra.mxu0 0.0
        %562 = vmatprep.subr.mxu0 0.0
        %563 = vmatpush2.msra.mxu0 0.0
        %564 = vmatprep.subr.mxu0 0.0
        %565 = vmatpush2.msra.mxu0 0.0
        %566 = vmatprep.subr.mxu0 0.0
        %567 = vmatpush2.msra.mxu0 0.0
        %568 = vmatprep.subr.mxu0 0.0
        %569 = vmatpush2.msra.mxu0 0.0
        %570 = vmatprep.subr.mxu0 0.0
        %571 = vmatpush2.msra.mxu0 0.0
        %572 = vmatprep.subr.mxu0 0.0
        %573 = vmatpush2.msra.mxu0 0.0
        %574 = vmatprep.subr.mxu0 0.0
        %575 = vmatpush2.msra.mxu0 0.0
        %576 = vmatprep.subr.mxu0 0.0
        %577 = vmatpush2.msra.mxu0 0.0
        %578 = vmatprep.subr.mxu0 0.0
        %579 = vmatpush2.msra.mxu0 0.0
        %580 = vmatprep.subr.mxu0 0.0
        %581 = vmatpush2.msra.mxu0 0.0
        %582 = vmatprep.subr.mxu0 0.0
        %583 = vmatpush2.msra.mxu0 0.0
        %584 = vmatprep.subr.mxu0 0.0
        %585 = vmatpush2.msra.mxu0 0.0
        %586 = vmatprep.subr.mxu0 0.0
        %587 = vmatpush2.msra.mxu0 0.0
        %588 = vmatprep.subr.mxu0 0.0
        %589 = vmatpush2.msra.mxu0 0.0
        %590 = vmatprep.subr.mxu0 0.0
        %591 = vmatpush2.msra.mxu0 0.0
        %592 = vmatprep.mubr.f32.mxu0 0.0
        %593 = vmatmul.mubr.f32.gmra.mxu0 %v433
        %v594 = vpop.f32.mrf.mxu0
        %v595 = vadd.f32 %v392, %v594
        %v596 = vpop.f32.mrf.mxu0
        %597 = vmatprep.mubr.f32.mxu0 0.0
        %598 = vmatmul.mubr.f32.gmra.mxu0 %v436
        %v599 = vpop.f32.mrf.mxu0
        %v600 = vadd.f32 %v397, %v599
        %v601 = vpop.f32.mrf.mxu0
        %602 = vmatprep.mubr.f32.mxu0 0.0
        %603 = vmatmul.mubr.f32.gmra.mxu0 %v439
        %v604 = vpop.f32.mrf.mxu0
        %v605 = vadd.f32 %v392, %v604
        %v606 = vpop.f32.mrf.mxu0
        %607 = vmatprep.mubr.f32.mxu0 0.0
        %608 = vmatmul.mubr.f32.gmra.mxu0 %v442
        %v609 = vpop.f32.mrf.mxu0
        %v610 = vadd.f32 %v397, %v609
        %v611 = vpop.f32.mrf.mxu0
        %612 = vmatprep.mubr.f32.mxu0 0.0
        %613 = vmatmul.mubr.f32.gmra.mxu0 %v445
        %v614 = vpop.f32.mrf.mxu0
        %v615 = vadd.f32 %v392, %v614
        %v616 = vpop.f32.mrf.mxu0
        %617 = vmatprep.mubr.f32.mxu0 0.0
        %618 = vmatmul.mubr.f32.gmra.mxu0 %v448
        %v619 = vpop.f32.mrf.mxu0
        %v620 = vadd.f32 %v397, %v619
        %v621 = vpop.f32.mrf.mxu0
        %622 = vmatprep.mubr.f32.mxu0 0.0
        %623 = vmatmul.mubr.f32.gmra.mxu0 %v451
        %v624 = vpop.f32.mrf.mxu0
        %v625 = vadd.f32 %v392, %v624
        %v626 = vpop.f32.mrf.mxu0
        %627 = vmatprep.mubr.f32.mxu0 0.0
        %628 = vmatmul.mubr.f32.gmra.mxu0 %v454
        %v629 = vpop.f32.mrf.mxu0
        %v630 = vadd.f32 %v397, %v629
        %v631 = vpop.f32.mrf.mxu0
        %632 = vmatprep.mubr.f32.mxu0 0.0
        %633 = vmatmul.mubr.f32.gmra.mxu0 %v457
        %v634 = vpop.f32.mrf.mxu0
        %v635 = vadd.f32 %v392, %v634
        %v636 = vpop.f32.mrf.mxu0
        %637 = vmatprep.mubr.f32.mxu0 0.0
        %638 = vmatmul.mubr.f32.gmra.mxu0 %v460
        %v639 = vpop.f32.mrf.mxu0
        %v640 = vadd.f32 %v397, %v639
        %v641 = vpop.f32.mrf.mxu0
        %642 = vmatprep.mubr.f32.mxu0 0.0
        %643 = vmatmul.mubr.f32.gmra.mxu0 %v463
        %v644 = vpop.f32.mrf.mxu0
        %v645 = vadd.f32 %v392, %v644
        %v646 = vpop.f32.mrf.mxu0
        %647 = vmatprep.mubr.f32.mxu0 0.0
        %648 = vmatmul.mubr.f32.gmra.mxu0 %v466
        %v649 = vpop.f32.mrf.mxu0
        %v650 = vadd.f32 %v397, %v649
        %v651 = vpop.f32.mrf.mxu0
        %652 = vmatprep.mubr.f32.mxu0 0.0
        %653 = vmatmul.mubr.f32.gmra.mxu0 %v469
        %v654 = vpop.f32.mrf.mxu0
        %v655 = vadd.f32 %v392, %v654
        %v656 = vpop.f32.mrf.mxu0
        %657 = vmatprep.mubr.f32.mxu0 0.0
        %658 = vmatmul.mubr.f32.gmra.mxu0 %v472
        %v659 = vpop.f32.mrf.mxu0
        %v660 = vadd.f32 %v397, %v659
        %v661 = vpop.f32.mrf.mxu0
        %662 = vmatprep.mubr.f32.mxu0 0.0
        %663 = vmatmul.mubr.f32.gmra.mxu0 %v475
        %v664 = vpop.f32.mrf.mxu0
        %v665 = vadd.f32 %v392, %v664
        %v666 = vpop.f32.mrf.mxu0
        %667 = vmatprep.mubr.f32.mxu0 0.0
        %668 = vmatmul.mubr.f32.gmra.mxu0 %v478
        %v669 = vpop.f32.mrf.mxu0
        %v670 = vadd.f32 %v397, %v669
        %v671 = vpop.f32.mrf.mxu0
        %672 = vmatprep.mubr.f32.mxu0 0.0
        %673 = vmatmul.mubr.f32.gmra.mxu0 %v481
        %v674 = vpop.f32.mrf.mxu0
        %v675 = vadd.f32 %v392, %v674
        %v676 = vpop.f32.mrf.mxu0
        %677 = vmatprep.mubr.f32.mxu0 0.0
        %678 = vmatmul.mubr.f32.gmra.mxu0 %v484
        %v679 = vpop.f32.mrf.mxu0
        %v680 = vadd.f32 %v397, %v679
        %v681 = vpop.f32.mrf.mxu0
        %682 = vmatprep.mubr.f32.mxu0 0.0
        %683 = vmatmul.mubr.f32.gmra.mxu0 %v487
        %v684 = vpop.f32.mrf.mxu0
        %v685 = vadd.f32 %v392, %v684
        %v686 = vpop.f32.mrf.mxu0
        %687 = vmatprep.mubr.f32.mxu0 0.0
        %688 = vmatmul.mubr.f32.gmra.mxu0 %v490
        %v689 = vpop.f32.mrf.mxu0
        %v690 = vadd.f32 %v397, %v689
        %v691 = vpop.f32.mrf.mxu0
        %692 = vmatprep.mubr.f32.mxu0 0.0
        %693 = vmatmul.mubr.f32.gmra.mxu0 %v493
        %v694 = vpop.f32.mrf.mxu0
        %v695 = vadd.f32 %v392, %v694
        %v696 = vpop.f32.mrf.mxu0
        %697 = vmatprep.mubr.f32.mxu0 0.0
        %698 = vmatmul.mubr.f32.gmra.mxu0 %v496
        %v699 = vpop.f32.mrf.mxu0
        %v700 = vadd.f32 %v397, %v699
        %v701 = vpop.f32.mrf.mxu0
        %702 = vmatprep.mubr.f32.mxu0 0.0
        %703 = vmatmul.mubr.f32.gmra.mxu0 %v499
        %v704 = vpop.f32.mrf.mxu0
        %v705 = vadd.f32 %v392, %v704
        %v706 = vpop.f32.mrf.mxu0
        %707 = vmatprep.mubr.f32.mxu0 0.0
        %708 = vmatmul.mubr.f32.gmra.mxu0 %v502
        %v709 = vpop.f32.mrf.mxu0
        %v710 = vadd.f32 %v397, %v709
        %v711 = vpop.f32.mrf.mxu0
        %712 = vmatprep.mubr.f32.mxu0 0.0
        %713 = vmatmul.mubr.f32.gmra.mxu0 %v505
        %v714 = vpop.f32.mrf.mxu0
        %v715 = vadd.f32 %v392, %v714
        %v716 = vpop.f32.mrf.mxu0
        %717 = vmatprep.mubr.f32.mxu0 0.0
        %718 = vmatmul.mubr.f32.gmra.mxu0 %v508
        %v719 = vpop.f32.mrf.mxu0
        %v720 = vadd.f32 %v397, %v719
        %v721 = vpop.f32.mrf.mxu0
        %722 = vmatprep.mubr.f32.mxu0 0.0
        %723 = vmatmul.mubr.f32.gmra.mxu0 %v511
        %v724 = vpop.f32.mrf.mxu0
        %v725 = vadd.f32 %v392, %v724
        %v726 = vpop.f32.mrf.mxu0
        %727 = vmatprep.mubr.f32.mxu0 0.0
        %728 = vmatmul.mubr.f32.gmra.mxu0 %v514
        %v729 = vpop.f32.mrf.mxu0
        %v730 = vadd.f32 %v397, %v729
        %v731 = vpop.f32.mrf.mxu0
        %732 = vmatprep.mubr.f32.mxu0 0.0
        %733 = vmatmul.mubr.f32.gmra.mxu0 %v517
        %v734 = vpop.f32.mrf.mxu0
        %v735 = vadd.f32 %v392, %v734
        %v736 = vpop.f32.mrf.mxu0
        %737 = vmatprep.mubr.f32.mxu0 0.0
        %738 = vmatmul.mubr.f32.gmra.mxu0 %v520
        %v739 = vpop.f32.mrf.mxu0
        %v740 = vadd.f32 %v397, %v739
        %v741 = vpop.f32.mrf.mxu0
        %742 = vmatprep.mubr.f32.mxu0 0.0
        %743 = vmatmul.mubr.f32.gmra.mxu0 %v523
        %v744 = vpop.f32.mrf.mxu0
        %v745 = vadd.f32 %v392, %v744
        %v746 = vpop.f32.mrf.mxu0
        %747 = vmatprep.mubr.f32.mxu0 0.0
        %748 = vmatmul.mubr.f32.gmra.mxu0 %v526
        %v749 = vpop.f32.mrf.mxu0
        %v750 = vadd.f32 %v397, %v749
        %v751 = vpop.f32.mrf.mxu0
        %752 = vdwg.mxu0
        %v754 = vlaneseq
        %v755 = vshrl.u32 %v754, 7
        %v756 = vsub.s32 0, %v755
        %v757 = vrot.slane %v314, %v756
        %v759 = vadd.f32 %v595, %v757
        %v760 = vadd.f32 %v600, %v757
        %v761 = vadd.f32 %v605, %v757
        %v762 = vadd.f32 %v610, %v757
        %v763 = vadd.f32 %v615, %v757
        %v764 = vadd.f32 %v620, %v757
        %v765 = vadd.f32 %v625, %v757
        %v766 = vadd.f32 %v630, %v757
        %v767 = vadd.f32 %v635, %v757
        %v768 = vadd.f32 %v640, %v757
        %v769 = vadd.f32 %v645, %v757
        %v770 = vadd.f32 %v650, %v757
        %v771 = vadd.f32 %v655, %v757
        %v772 = vadd.f32 %v660, %v757
        %v773 = vadd.f32 %v665, %v757
        %v774 = vadd.f32 %v670, %v757
        %v775 = vadd.f32 %v675, %v757
        %v776 = vadd.f32 %v680, %v757
        %v777 = vadd.f32 %v685, %v757
        %v778 = vadd.f32 %v690, %v757
        %v779 = vadd.f32 %v695, %v757
        %v780 = vadd.f32 %v700, %v757
        %v781 = vadd.f32 %v705, %v757
        %v782 = vadd.f32 %v710, %v757
        %v783 = vadd.f32 %v715, %v757
        %v784 = vadd.f32 %v720, %v757
        %v785 = vadd.f32 %v725, %v757
        %v786 = vadd.f32 %v730, %v757
        %v787 = vadd.f32 %v735, %v757
        %v788 = vadd.f32 %v740, %v757
        %v789 = vadd.f32 %v745, %v757
        %v790 = vadd.f32 %v750, %v757
        %v791 = vmax.f32 %v759, 0.0
        %v792 = vmax.f32 %v760, 0.0
        %v793 = vmax.f32 %v761, 0.0
        %v794 = vmax.f32 %v762, 0.0
        %v795 = vmax.f32 %v763, 0.0
        %v796 = vmax.f32 %v764, 0.0
        %v797 = vmax.f32 %v765, 0.0
        %v798 = vmax.f32 %v766, 0.0
        %v799 = vmax.f32 %v767, 0.0
        %v800 = vmax.f32 %v768, 0.0
        %v801 = vmax.f32 %v769, 0.0
        %v802 = vmax.f32 %v770, 0.0
        %v803 = vmax.f32 %v771, 0.0
        %v804 = vmax.f32 %v772, 0.0
        %v805 = vmax.f32 %v773, 0.0
        %v806 = vmax.f32 %v774, 0.0
        %v807 = vmax.f32 %v775, 0.0
        %v808 = vmax.f32 %v776, 0.0
        %v809 = vmax.f32 %v777, 0.0
        %v810 = vmax.f32 %v778, 0.0
        %v811 = vmax.f32 %v779, 0.0
        %v812 = vmax.f32 %v780, 0.0
        %v813 = vmax.f32 %v781, 0.0
        %v814 = vmax.f32 %v782, 0.0
        %v815 = vmax.f32 %v783, 0.0
        %v816 = vmax.f32 %v784, 0.0
        %v817 = vmax.f32 %v785, 0.0
        %v818 = vmax.f32 %v786, 0.0
        %v819 = vmax.f32 %v787, 0.0
        %v820 = vmax.f32 %v788, 0.0
        %v821 = vmax.f32 %v789, 0.0
        %v822 = vmax.f32 %v790, 0.0
        %v824 = vlaneseq
        %v825 = vshrl.u32 %v824, 7
        %v826 = vsub.s32 0, %v825
        %v827 = vrot.slane %v315, %v826
        %vm829 = vcmask 261120
        %v831 = vsel %vm829, %v791, 0
        %v834 = vsel %vm829, %v792, 0
        %v837 = vsel %vm829, %v793, 0
        %v840 = vsel %vm829, %v794, 0
        %v843 = vsel %vm829, %v795, 0
        %v846 = vsel %vm829, %v796, 0
        %v849 = vsel %vm829, %v797, 0
        %v852 = vsel %vm829, %v798, 0
        %v855 = vsel %vm829, %v799, 0
        %v858 = vsel %vm829, %v800, 0
        %v861 = vsel %vm829, %v801, 0
        %v864 = vsel %vm829, %v802, 0
        %v867 = vsel %vm829, %v803, 0
        %v870 = vsel %vm829, %v804, 0
        %v873 = vsel %vm829, %v805, 0
        %v876 = vsel %vm829, %v806, 0
        %v879 = vsel %vm829, %v807, 0
        %v882 = vsel %vm829, %v808, 0
        %v885 = vsel %vm829, %v809, 0
        %v888 = vsel %vm829, %v810, 0
        %v891 = vsel %vm829, %v811, 0
        %v894 = vsel %vm829, %v812, 0
        %v897 = vsel %vm829, %v813, 0
        %v900 = vsel %vm829, %v814, 0
        %v903 = vsel %vm829, %v815, 0
        %v906 = vsel %vm829, %v816, 0
        %v909 = vsel %vm829, %v817, 0
        %v912 = vsel %vm829, %v818, 0
        %v915 = vsel %vm829, %v819, 0
        %v918 = vsel %vm829, %v820, 0
        %v921 = vsel %vm829, %v821, 0
        %v924 = vsel %vm829, %v822, 0
        %926 = vmatprep.subr.mxu0 0.0
        %927 = vmatpush1.msra.mxu0 0.0
        %928 = vmatprep.subr.mxu0 0.0
        %929 = vmatpush1.msra.mxu0 0.0
        %930 = vmatprep.subr.mxu0 0.0
        %931 = vmatpush1.msra.mxu0 0.0
        %932 = vmatprep.subr.mxu0 0.0
        %933 = vmatpush1.msra.mxu0 0.0
        %934 = vmatprep.subr.mxu0 0.0
        %935 = vmatpush1.msra.mxu0 0.0
        %936 = vmatprep.subr.mxu0 0.0
        %937 = vmatpush1.msra.mxu0 0.0
        %938 = vmatprep.subr.mxu0 0.0
        %939 = vmatpush1.msra.mxu0 0.0
        %940 = vmatprep.subr.mxu0 0.0
        %941 = vmatpush1.msra.mxu0 0.0
        %942 = vmatprep.subr.mxu0 0.0
        %943 = vmatpush1.msra.mxu0 0.0
        %944 = vmatprep.subr.mxu0 0.0
        %945 = vmatpush1.msra.mxu0 0.0
        %946 = vmatprep.subr.mxu0 0.0
        %947 = vmatpush1.msra.mxu0 0.0
        %948 = vmatprep.subr.mxu0 0.0
        %949 = vmatpush1.msra.mxu0 0.0
        %950 = vmatprep.subr.mxu0 0.0
        %951 = vmatpush1.msra.mxu0 %v313
        %952 = vmatprep.subr.mxu0 0.0
        %953 = vmatpush1.msra.mxu0 %v312
        %954 = vmatprep.subr.mxu0 0.0
        %955 = vmatpush1.msra.mxu0 %v311
        %956 = vmatprep.subr.mxu0 0.0
        %957 = vmatpush1.msra.mxu0 %v310
        %958 = vmatprep.subr.mxu0 0.0
        %959 = vmatpush2.msra.mxu0 0.0
        %960 = vmatprep.subr.mxu0 0.0
        %961 = vmatpush2.msra.mxu0 0.0
        %962 = vmatprep.subr.mxu0 0.0
        %963 = vmatpush2.msra.mxu0 0.0
        %964 = vmatprep.subr.mxu0 0.0
        %965 = vmatpush2.msra.mxu0 0.0
        %966 = vmatprep.subr.mxu0 0.0
        %967 = vmatpush2.msra.mxu0 0.0
        %968 = vmatprep.subr.mxu0 0.0
        %969 = vmatpush2.msra.mxu0 0.0
        %970 = vmatprep.subr.mxu0 0.0
        %971 = vmatpush2.msra.mxu0 0.0
        %972 = vmatprep.subr.mxu0 0.0
        %973 = vmatpush2.msra.mxu0 0.0
        %974 = vmatprep.subr.mxu0 0.0
        %975 = vmatpush2.msra.mxu0 0.0
        %976 = vmatprep.subr.mxu0 0.0
        %977 = vmatpush2.msra.mxu0 0.0
        %978 = vmatprep.subr.mxu0 0.0
        %979 = vmatpush2.msra.mxu0 0.0
        %980 = vmatprep.subr.mxu0 0.0
        %981 = vmatpush2.msra.mxu0 0.0
        %982 = vmatprep.subr.mxu0 0.0
        %983 = vmatpush2.msra.mxu0 0.0
        %984 = vmatprep.subr.mxu0 0.0
        %985 = vmatpush2.msra.mxu0 0.0
        %986 = vmatprep.subr.mxu0 0.0
        %987 = vmatpush2.msra.mxu0 0.0
        %988 = vmatprep.subr.mxu0 0.0
        %989 = vmatpush2.msra.mxu0 0.0
        %990 = vmatprep.mubr.f32.mxu0 0.0
        %991 = vmatmul.mubr.f32.gmra.mxu0 %v831
        %v992 = vpop.f32.mrf.mxu0
        %v993 = vadd.f32 %v827, %v992
        %v994 = vpop.f32.mrf.mxu0
        %995 = vmatprep.mubr.f32.mxu0 0.0
        %996 = vmatmul.mubr.f32.gmra.mxu0 %v834
        %v997 = vpop.f32.mrf.mxu0
        %v998 = vadd.f32 %v827, %v997
        %v999 = vpop.f32.mrf.mxu0
        %1000 = vmatprep.mubr.f32.mxu0 0.0
        %1001 = vmatmul.mubr.f32.gmra.mxu0 %v837
        %v1002 = vpop.f32.mrf.mxu0
        %v1003 = vadd.f32 %v827, %v1002
        %v1004 = vpop.f32.mrf.mxu0
        %1005 = vmatprep.mubr.f32.mxu0 0.0
        %1006 = vmatmul.mubr.f32.gmra.mxu0 %v840
        %v1007 = vpop.f32.mrf.mxu0
        %v1008 = vadd.f32 %v827, %v1007
        %v1009 = vpop.f32.mrf.mxu0
        %1010 = vmatprep.mubr.f32.mxu0 0.0
        %1011 = vmatmul.mubr.f32.gmra.mxu0 %v843
        %v1012 = vpop.f32.mrf.mxu0
        %v1013 = vadd.f32 %v827, %v1012
        %v1014 = vpop.f32.mrf.mxu0
        %1015 = vmatprep.mubr.f32.mxu0 0.0
        %1016 = vmatmul.mubr.f32.gmra.mxu0 %v846
        %v1017 = vpop.f32.mrf.mxu0
        %v1018 = vadd.f32 %v827, %v1017
        %v1019 = vpop.f32.mrf.mxu0
        %1020 = vmatprep.mubr.f32.mxu0 0.0
        %1021 = vmatmul.mubr.f32.gmra.mxu0 %v849
        %v1022 = vpop.f32.mrf.mxu0
        %v1023 = vadd.f32 %v827, %v1022
        %v1024 = vpop.f32.mrf.mxu0
        %1025 = vmatprep.mubr.f32.mxu0 0.0
        %1026 = vmatmul.mubr.f32.gmra.mxu0 %v852
        %v1027 = vpop.f32.mrf.mxu0
        %v1028 = vadd.f32 %v827, %v1027
        %v1029 = vpop.f32.mrf.mxu0
        %1030 = vmatprep.mubr.f32.mxu0 0.0
        %1031 = vmatmul.mubr.f32.gmra.mxu0 %v855
        %v1032 = vpop.f32.mrf.mxu0
        %v1033 = vadd.f32 %v827, %v1032
        %v1034 = vpop.f32.mrf.mxu0
        %1035 = vmatprep.mubr.f32.mxu0 0.0
        %1036 = vmatmul.mubr.f32.gmra.mxu0 %v858
        %v1037 = vpop.f32.mrf.mxu0
        %v1038 = vadd.f32 %v827, %v1037
        %v1039 = vpop.f32.mrf.mxu0
        %1040 = vmatprep.mubr.f32.mxu0 0.0
        %1041 = vmatmul.mubr.f32.gmra.mxu0 %v861
        %v1042 = vpop.f32.mrf.mxu0
        %v1043 = vadd.f32 %v827, %v1042
        %v1044 = vpop.f32.mrf.mxu0
        %1045 = vmatprep.mubr.f32.mxu0 0.0
        %1046 = vmatmul.mubr.f32.gmra.mxu0 %v864
        %v1047 = vpop.f32.mrf.mxu0
        %v1048 = vadd.f32 %v827, %v1047
        %v1049 = vpop.f32.mrf.mxu0
        %1050 = vmatprep.mubr.f32.mxu0 0.0
        %1051 = vmatmul.mubr.f32.gmra.mxu0 %v867
        %v1052 = vpop.f32.mrf.mxu0
        %v1053 = vadd.f32 %v827, %v1052
        %v1054 = vpop.f32.mrf.mxu0
        %1055 = vmatprep.mubr.f32.mxu0 0.0
        %1056 = vmatmul.mubr.f32.gmra.mxu0 %v870
        %v1057 = vpop.f32.mrf.mxu0
        %v1058 = vadd.f32 %v827, %v1057
        %v1059 = vpop.f32.mrf.mxu0
        %1060 = vmatprep.mubr.f32.mxu0 0.0
        %1061 = vmatmul.mubr.f32.gmra.mxu0 %v873
        %v1062 = vpop.f32.mrf.mxu0
        %v1063 = vadd.f32 %v827, %v1062
        %v1064 = vpop.f32.mrf.mxu0
        %1065 = vmatprep.mubr.f32.mxu0 0.0
        %1066 = vmatmul.mubr.f32.gmra.mxu0 %v876
        %v1067 = vpop.f32.mrf.mxu0
        %v1068 = vadd.f32 %v827, %v1067
        %v1069 = vpop.f32.mrf.mxu0
        %1070 = vmatprep.mubr.f32.mxu0 0.0
        %1071 = vmatmul.mubr.f32.gmra.mxu0 %v879
        %v1072 = vpop.f32.mrf.mxu0
        %v1073 = vadd.f32 %v827, %v1072
        %v1074 = vpop.f32.mrf.mxu0
        %1075 = vmatprep.mubr.f32.mxu0 0.0
        %1076 = vmatmul.mubr.f32.gmra.mxu0 %v882
        %v1077 = vpop.f32.mrf.mxu0
        %v1078 = vadd.f32 %v827, %v1077
        %v1079 = vpop.f32.mrf.mxu0
        %1080 = vmatprep.mubr.f32.mxu0 0.0
        %1081 = vmatmul.mubr.f32.gmra.mxu0 %v885
        %v1082 = vpop.f32.mrf.mxu0
        %v1083 = vadd.f32 %v827, %v1082
        %v1084 = vpop.f32.mrf.mxu0
        %1085 = vmatprep.mubr.f32.mxu0 0.0
        %1086 = vmatmul.mubr.f32.gmra.mxu0 %v888
        %v1087 = vpop.f32.mrf.mxu0
        %v1088 = vadd.f32 %v827, %v1087
        %v1089 = vpop.f32.mrf.mxu0
        %1090 = vmatprep.mubr.f32.mxu0 0.0
        %1091 = vmatmul.mubr.f32.gmra.mxu0 %v891
        %v1092 = vpop.f32.mrf.mxu0
        %v1093 = vadd.f32 %v827, %v1092
        %v1094 = vpop.f32.mrf.mxu0
        %1095 = vmatprep.mubr.f32.mxu0 0.0
        %1096 = vmatmul.mubr.f32.gmra.mxu0 %v894
        %v1097 = vpop.f32.mrf.mxu0
        %v1098 = vadd.f32 %v827, %v1097
        %v1099 = vpop.f32.mrf.mxu0
        %1100 = vmatprep.mubr.f32.mxu0 0.0
        %1101 = vmatmul.mubr.f32.gmra.mxu0 %v897
        %v1102 = vpop.f32.mrf.mxu0
        %v1103 = vadd.f32 %v827, %v1102
        %v1104 = vpop.f32.mrf.mxu0
        %1105 = vmatprep.mubr.f32.mxu0 0.0
        %1106 = vmatmul.mubr.f32.gmra.mxu0 %v900
        %v1107 = vpop.f32.mrf.mxu0
        %v1108 = vadd.f32 %v827, %v1107
        %v1109 = vpop.f32.mrf.mxu0
        %1110 = vmatprep.mubr.f32.mxu0 0.0
        %1111 = vmatmul.mubr.f32.gmra.mxu0 %v903
        %v1112 = vpop.f32.mrf.mxu0
        %v1113 = vadd.f32 %v827, %v1112
        %v1114 = vpop.f32.mrf.mxu0
        %1115 = vmatprep.mubr.f32.mxu0 0.0
        %1116 = vmatmul.mubr.f32.gmra.mxu0 %v906
        %v1117 = vpop.f32.mrf.mxu0
        %v1118 = vadd.f32 %v827, %v1117
        %v1119 = vpop.f32.mrf.mxu0
        %1120 = vmatprep.mubr.f32.mxu0 0.0
        %1121 = vmatmul.mubr.f32.gmra.mxu0 %v909
        %v1122 = vpop.f32.mrf.mxu0
        %v1123 = vadd.f32 %v827, %v1122
        %v1124 = vpop.f32.mrf.mxu0
        %1125 = vmatprep.mubr.f32.mxu0 0.0
        %1126 = vmatmul.mubr.f32.gmra.mxu0 %v912
        %v1127 = vpop.f32.mrf.mxu0
        %v1128 = vadd.f32 %v827, %v1127
        %v1129 = vpop.f32.mrf.mxu0
        %1130 = vmatprep.mubr.f32.mxu0 0.0
        %1131 = vmatmul.mubr.f32.gmra.mxu0 %v915
        %v1132 = vpop.f32.mrf.mxu0
        %v1133 = vadd.f32 %v827, %v1132
        %v1134 = vpop.f32.mrf.mxu0
        %1135 = vmatprep.mubr.f32.mxu0 0.0
        %1136 = vmatmul.mubr.f32.gmra.mxu0 %v918
        %v1137 = vpop.f32.mrf.mxu0
        %v1138 = vadd.f32 %v827, %v1137
        %v1139 = vpop.f32.mrf.mxu0
        %1140 = vmatprep.mubr.f32.mxu0 0.0
        %1141 = vmatmul.mubr.f32.gmra.mxu0 %v921
        %v1142 = vpop.f32.mrf.mxu0
        %v1143 = vadd.f32 %v827, %v1142
        %v1144 = vpop.f32.mrf.mxu0
        %1145 = vmatprep.mubr.f32.mxu0 0.0
        %1146 = vmatmul.mubr.f32.gmra.mxu0 %v924
        %v1147 = vpop.f32.mrf.mxu0
        %v1148 = vadd.f32 %v827, %v1147
        %v1149 = vpop.f32.mrf.mxu0
        %1150 = vdwg.mxu0
        %v1151 = vxor.u32 %v993, 2147483648
        %v1152 = vxor.u32 %v998, 2147483648
        %v1153 = vxor.u32 %v1003, 2147483648
        %v1154 = vxor.u32 %v1008, 2147483648
        %v1155 = vxor.u32 %v1013, 2147483648
        %v1156 = vxor.u32 %v1018, 2147483648
        %v1157 = vxor.u32 %v1023, 2147483648
        %v1158 = vxor.u32 %v1028, 2147483648
        %v1159 = vxor.u32 %v1033, 2147483648
        %v1160 = vxor.u32 %v1038, 2147483648
        %v1161 = vxor.u32 %v1043, 2147483648
        %v1162 = vxor.u32 %v1048, 2147483648
        %v1163 = vxor.u32 %v1053, 2147483648
        %v1164 = vxor.u32 %v1058, 2147483648
        %v1165 = vxor.u32 %v1063, 2147483648
        %v1166 = vxor.u32 %v1068, 2147483648
        %v1167 = vxor.u32 %v1073, 2147483648
        %v1168 = vxor.u32 %v1078, 2147483648
        %v1169 = vxor.u32 %v1083, 2147483648
        %v1170 = vxor.u32 %v1088, 2147483648
        %v1171 = vxor.u32 %v1093, 2147483648
        %v1172 = vxor.u32 %v1098, 2147483648
        %v1173 = vxor.u32 %v1103, 2147483648
        %v1174 = vxor.u32 %v1108, 2147483648
        %v1175 = vxor.u32 %v1113, 2147483648
        %v1176 = vxor.u32 %v1118, 2147483648
        %v1177 = vxor.u32 %v1123, 2147483648
        %v1178 = vxor.u32 %v1128, 2147483648
        %v1179 = vxor.u32 %v1133, 2147483648
        %v1180 = vxor.u32 %v1138, 2147483648
        %v1181 = vxor.u32 %v1143, 2147483648
        %v1182 = vxor.u32 %v1148, 2147483648
        %v1183 = vmul.f32 %v1151, 1.442695
        %v1184 = vpow.pop %v1183
        %v1185 = vmul.f32 %v1152, 1.442695
        %v1186 = vpow.pop %v1185
        %v1187 = vmul.f32 %v1153, 1.442695
        %v1188 = vpow.pop %v1187
        %v1189 = vmul.f32 %v1154, 1.442695
        %v1190 = vpow.pop %v1189
        %v1191 = vmul.f32 %v1155, 1.442695
        %v1192 = vpow.pop %v1191
        %v1193 = vmul.f32 %v1156, 1.442695
        %v1194 = vpow.pop %v1193
        %v1195 = vmul.f32 %v1157, 1.442695
        %v1196 = vpow.pop %v1195
        %v1197 = vmul.f32 %v1158, 1.442695
        %v1198 = vpow.pop %v1197
        %v1199 = vmul.f32 %v1159, 1.442695
        %v1200 = vpow.pop %v1199
        %v1201 = vmul.f32 %v1160, 1.442695
        %v1202 = vpow.pop %v1201
        %v1203 = vmul.f32 %v1161, 1.442695
        %v1204 = vpow.pop %v1203
        %v1205 = vmul.f32 %v1162, 1.442695
        %v1206 = vpow.pop %v1205
        %v1207 = vmul.f32 %v1163, 1.442695
        %v1208 = vpow.pop %v1207
        %v1209 = vmul.f32 %v1164, 1.442695
        %v1210 = vpow.pop %v1209
        %v1211 = vmul.f32 %v1165, 1.442695
        %v1212 = vpow.pop %v1211
        %v1213 = vmul.f32 %v1166, 1.442695
        %v1214 = vpow.pop %v1213
        %v1215 = vmul.f32 %v1167, 1.442695
        %v1216 = vpow.pop %v1215
        %v1217 = vmul.f32 %v1168, 1.442695
        %v1218 = vpow.pop %v1217
        %v1219 = vmul.f32 %v1169, 1.442695
        %v1220 = vpow.pop %v1219
        %v1221 = vmul.f32 %v1170, 1.442695
        %v1222 = vpow.pop %v1221
        %v1223 = vmul.f32 %v1171, 1.442695
        %v1224 = vpow.pop %v1223
        %v1225 = vmul.f32 %v1172, 1.442695
        %v1226 = vpow.pop %v1225
        %v1227 = vmul.f32 %v1173, 1.442695
        %v1228 = vpow.pop %v1227
        %v1229 = vmul.f32 %v1174, 1.442695
        %v1230 = vpow.pop %v1229
        %v1231 = vmul.f32 %v1175, 1.442695
        %v1232 = vpow.pop %v1231
        %v1233 = vmul.f32 %v1176, 1.442695
        %v1234 = vpow.pop %v1233
        %v1235 = vmul.f32 %v1177, 1.442695
        %v1236 = vpow.pop %v1235
        %v1237 = vmul.f32 %v1178, 1.442695
        %v1238 = vpow.pop %v1237
        %v1239 = vmul.f32 %v1179, 1.442695
        %v1240 = vpow.pop %v1239
        %v1241 = vmul.f32 %v1180, 1.442695
        %v1242 = vpow.pop %v1241
        %v1243 = vmul.f32 %v1181, 1.442695
        %v1244 = vpow.pop %v1243
        %v1245 = vmul.f32 %v1182, 1.442695
        %v1246 = vpow.pop %v1245
        %v1247 = vadd.f32 %v1184, 1.0
        %v1248 = vadd.f32 %v1186, 1.0
        %v1249 = vadd.f32 %v1188, 1.0
        %v1250 = vadd.f32 %v1190, 1.0
        %v1251 = vadd.f32 %v1192, 1.0
        %v1252 = vadd.f32 %v1194, 1.0
        %v1253 = vadd.f32 %v1196, 1.0
        %v1254 = vadd.f32 %v1198, 1.0
        %v1255 = vadd.f32 %v1200, 1.0
        %v1256 = vadd.f32 %v1202, 1.0
        %v1257 = vadd.f32 %v1204, 1.0
        %v1258 = vadd.f32 %v1206, 1.0
        %v1259 = vadd.f32 %v1208, 1.0
        %v1260 = vadd.f32 %v1210, 1.0
        %v1261 = vadd.f32 %v1212, 1.0
        %v1262 = vadd.f32 %v1214, 1.0
        %v1263 = vadd.f32 %v1216, 1.0
        %v1264 = vadd.f32 %v1218, 1.0
        %v1265 = vadd.f32 %v1220, 1.0
        %v1266 = vadd.f32 %v1222, 1.0
        %v1267 = vadd.f32 %v1224, 1.0
        %v1268 = vadd.f32 %v1226, 1.0
        %v1269 = vadd.f32 %v1228, 1.0
        %v1270 = vadd.f32 %v1230, 1.0
        %v1271 = vadd.f32 %v1232, 1.0
        %v1272 = vadd.f32 %v1234, 1.0
        %v1273 = vadd.f32 %v1236, 1.0
        %v1274 = vadd.f32 %v1238, 1.0
        %v1275 = vadd.f32 %v1240, 1.0
        %v1276 = vadd.f32 %v1242, 1.0
        %v1277 = vadd.f32 %v1244, 1.0
        %v1278 = vadd.f32 %v1246, 1.0
        %v1279 = vrcp.pop %v1247
        %v1280 = vmul.f32 1.0, %v1279
        %v1281 = vrcp.pop %v1248
        %v1282 = vmul.f32 1.0, %v1281
        %v1283 = vrcp.pop %v1249
        %v1284 = vmul.f32 1.0, %v1283
        %v1285 = vrcp.pop %v1250
        %v1286 = vmul.f32 1.0, %v1285
        %v1287 = vrcp.pop %v1251
        %v1288 = vmul.f32 1.0, %v1287
        %v1289 = vrcp.pop %v1252
        %v1290 = vmul.f32 1.0, %v1289
        %v1291 = vrcp.pop %v1253
        %v1292 = vmul.f32 1.0, %v1291
        %v1293 = vrcp.pop %v1254
        %v1294 = vmul.f32 1.0, %v1293
        %v1295 = vrcp.pop %v1255
        %v1296 = vmul.f32 1.0, %v1295
        %v1297 = vrcp.pop %v1256
        %v1298 = vmul.f32 1.0, %v1297
        %v1299 = vrcp.pop %v1257
        %v1300 = vmul.f32 1.0, %v1299
        %v1301 = vrcp.pop %v1258
        %v1302 = vmul.f32 1.0, %v1301
        %v1303 = vrcp.pop %v1259
        %v1304 = vmul.f32 1.0, %v1303
        %v1305 = vrcp.pop %v1260
        %v1306 = vmul.f32 1.0, %v1305
        %v1307 = vrcp.pop %v1261
        %v1308 = vmul.f32 1.0, %v1307
        %v1309 = vrcp.pop %v1262
        %v1310 = vmul.f32 1.0, %v1309
        %v1311 = vrcp.pop %v1263
        %v1312 = vmul.f32 1.0, %v1311
        %v1313 = vrcp.pop %v1264
        %v1314 = vmul.f32 1.0, %v1313
        %v1315 = vrcp.pop %v1265
        %v1316 = vmul.f32 1.0, %v1315
        %v1317 = vrcp.pop %v1266
        %v1318 = vmul.f32 1.0, %v1317
        %v1319 = vrcp.pop %v1267
        %v1320 = vmul.f32 1.0, %v1319
        %v1321 = vrcp.pop %v1268
        %v1322 = vmul.f32 1.0, %v1321
        %v1323 = vrcp.pop %v1269
        %v1324 = vmul.f32 1.0, %v1323
        %v1325 = vrcp.pop %v1270
        %v1326 = vmul.f32 1.0, %v1325
        %v1327 = vrcp.pop %v1271
        %v1328 = vmul.f32 1.0, %v1327
        %v1329 = vrcp.pop %v1272
        %v1330 = vmul.f32 1.0, %v1329
        %v1331 = vrcp.pop %v1273
        %v1332 = vmul.f32 1.0, %v1331
        %v1333 = vrcp.pop %v1274
        %v1334 = vmul.f32 1.0, %v1333
        %v1335 = vrcp.pop %v1275
        %v1336 = vmul.f32 1.0, %v1335
        %v1337 = vrcp.pop %v1276
        %v1338 = vmul.f32 1.0, %v1337
        %v1339 = vrcp.pop %v1277
        %v1340 = vmul.f32 1.0, %v1339
        %v1341 = vrcp.pop %v1278
        %v1342 = vmul.f32 1.0, %v1341
        %vm1343 = vcmask 523264
        %v1344 = vsel %vm1343, %v1280, 0.0
        %v1345 = vsel %vm1343, %v1282, 0.0
        %v1346 = vadd.f32 %v1344, %v1345
        %v1347 = vsel %vm1343, %v1284, 0.0
        %v1348 = vadd.f32 %v1346, %v1347
        %v1349 = vsel %vm1343, %v1286, 0.0
        %v1350 = vadd.f32 %v1348, %v1349
        %v1351 = vsel %vm1343, %v1288, 0.0
        %v1352 = vadd.f32 %v1350, %v1351
        %v1353 = vsel %vm1343, %v1290, 0.0
        %v1354 = vadd.f32 %v1352, %v1353
        %v1355 = vsel %vm1343, %v1292, 0.0
        %v1356 = vadd.f32 %v1354, %v1355
        %v1357 = vsel %vm1343, %v1294, 0.0
        %v1358 = vadd.f32 %v1356, %v1357
        %v1359 = vsel %vm1343, %v1296, 0.0
        %v1360 = vadd.f32 %v1358, %v1359
        %v1361 = vsel %vm1343, %v1298, 0.0
        %v1362 = vadd.f32 %v1360, %v1361
        %v1363 = vsel %vm1343, %v1300, 0.0
        %v1364 = vadd.f32 %v1362, %v1363
        %v1365 = vsel %vm1343, %v1302, 0.0
        %v1366 = vadd.f32 %v1364, %v1365
        %v1367 = vsel %vm1343, %v1304, 0.0
        %v1368 = vadd.f32 %v1366, %v1367
        %v1369 = vsel %vm1343, %v1306, 0.0
        %v1370 = vadd.f32 %v1368, %v1369
        %v1371 = vsel %vm1343, %v1308, 0.0
        %v1372 = vadd.f32 %v1370, %v1371
        %v1373 = vsel %vm1343, %v1310, 0.0
        %v1374 = vadd.f32 %v1372, %v1373
        %v1375 = vsel %vm1343, %v1312, 0.0
        %v1376 = vadd.f32 %v1374, %v1375
        %v1377 = vsel %vm1343, %v1314, 0.0
        %v1378 = vadd.f32 %v1376, %v1377
        %v1379 = vsel %vm1343, %v1316, 0.0
        %v1380 = vadd.f32 %v1378, %v1379
        %v1381 = vsel %vm1343, %v1318, 0.0
        %v1382 = vadd.f32 %v1380, %v1381
        %v1383 = vsel %vm1343, %v1320, 0.0
        %v1384 = vadd.f32 %v1382, %v1383
        %v1385 = vsel %vm1343, %v1322, 0.0
        %v1386 = vadd.f32 %v1384, %v1385
        %v1387 = vsel %vm1343, %v1324, 0.0
        %v1388 = vadd.f32 %v1386, %v1387
        %v1389 = vsel %vm1343, %v1326, 0.0
        %v1390 = vadd.f32 %v1388, %v1389
        %v1391 = vsel %vm1343, %v1328, 0.0
        %v1392 = vadd.f32 %v1390, %v1391
        %v1393 = vsel %vm1343, %v1330, 0.0
        %v1394 = vadd.f32 %v1392, %v1393
        %v1395 = vsel %vm1343, %v1332, 0.0
        %v1396 = vadd.f32 %v1394, %v1395
        %v1397 = vsel %vm1343, %v1334, 0.0
        %v1398 = vadd.f32 %v1396, %v1397
        %v1399 = vsel %vm1343, %v1336, 0.0
        %v1400 = vadd.f32 %v1398, %v1399
        %v1401 = vsel %vm1343, %v1338, 0.0
        %v1402 = vadd.f32 %v1400, %v1401
        %v1403 = vsel %vm1343, %v1340, 0.0
        %v1404 = vadd.f32 %v1402, %v1403
        %v1405 = vsel %vm1343, %v1342, 0.0
        %v1406 = vadd.f32 %v1404, %v1405
        %v1407 = vrot.slane %v1406, 4
        %v1408 = vadd.f32 %v1406, %v1407
        %v1409 = vrot.slane %v1408, 2
        %v1410 = vadd.f32 %v1408, %v1409
        %v1411 = vrot.slane %v1410, 1
        %v1412 = vadd.f32 %v1410, %v1411
        %v1413 = vrcp.pop 256.0
        %v1414 = vmul.f32 %v1412, %v1413
        %vm1415 = vcmask 516096
        %1416 = vst.msk [vmem:[%s292] sm:$0x1] %vm1415, %v1414
        %s1417 = scalar_lea.vmem %s298, 16
        %v1418 = vld [vmem:[%s1417] sm:$0xff]
        %v1419 = vld [vmem:[%s1417 + $0x8] sm:$0xff]
        %v1421 = vsel %vm318, %v1418, 0
        %v1424 = vsel %vm318, %v1419, 0
        %1426 = vmatprep.subr.mxu0 0.0
        %1427 = vmatpush1.msra.mxu0 0.0
        %1428 = vmatprep.subr.mxu0 0.0
        %1429 = vmatpush1.msra.mxu0 0.0
        %1430 = vmatprep.subr.mxu0 0.0
        %1431 = vmatpush1.msra.mxu0 0.0
        %1432 = vmatprep.subr.mxu0 0.0
        %1433 = vmatpush1.msra.mxu0 0.0
        %1434 = vmatprep.subr.mxu0 0.0
        %1435 = vmatpush1.msra.mxu0 0.0
        %1436 = vmatprep.subr.mxu0 0.0
        %1437 = vmatpush1.msra.mxu0 0.0
        %1438 = vmatprep.subr.mxu0 0.0
        %1439 = vmatpush1.msra.mxu0 0.0
        %1440 = vmatprep.subr.mxu0 0.0
        %1441 = vmatpush1.msra.mxu0 0.0
        %1442 = vmatprep.subr.mxu0 0.0
        %1443 = vmatpush1.msra.mxu0 0.0
        %1444 = vmatprep.subr.mxu0 0.0
        %1445 = vmatpush1.msra.mxu0 0.0
        %1446 = vmatprep.subr.mxu0 0.0
        %1447 = vmatpush1.msra.mxu0 0.0
        %1448 = vmatprep.subr.mxu0 0.0
        %1449 = vmatpush1.msra.mxu0 0.0
        %1450 = vmatprep.subr.mxu0 0.0
        %1451 = vmatpush1.msra.mxu0 0.0
        %1452 = vmatprep.subr.mxu0 0.0
        %1453 = vmatpush1.msra.mxu0 0.0
        %1454 = vmatprep.subr.mxu0 0.0
        %1455 = vmatpush1.msra.mxu0 0.0
        %1456 = vmatprep.subr.mxu0 0.0
        %1457 = vmatpush1.msra.mxu0 %v308
        %1458 = vmatprep.subr.mxu0 0.0
        %1459 = vmatpush2.msra.mxu0 0.0
        %1460 = vmatprep.subr.mxu0 0.0
        %1461 = vmatpush2.msra.mxu0 0.0
        %1462 = vmatprep.subr.mxu0 0.0
        %1463 = vmatpush2.msra.mxu0 0.0
        %1464 = vmatprep.subr.mxu0 0.0
        %1465 = vmatpush2.msra.mxu0 0.0
        %1466 = vmatprep.subr.mxu0 0.0
        %1467 = vmatpush2.msra.mxu0 0.0
        %1468 = vmatprep.subr.mxu0 0.0
        %1469 = vmatpush2.msra.mxu0 0.0
        %1470 = vmatprep.subr.mxu0 0.0
        %1471 = vmatpush2.msra.mxu0 0.0
        %1472 = vmatprep.subr.mxu0 0.0
        %1473 = vmatpush2.msra.mxu0 0.0
        %1474 = vmatprep.subr.mxu0 0.0
        %1475 = vmatpush2.msra.mxu0 0.0
        %1476 = vmatprep.subr.mxu0 0.0
        %1477 = vmatpush2.msra.mxu0 0.0
        %1478 = vmatprep.subr.mxu0 0.0
        %1479 = vmatpush2.msra.mxu0 0.0
        %1480 = vmatprep.subr.mxu0 0.0
        %1481 = vmatpush2.msra.mxu0 0.0
        %1482 = vmatprep.subr.mxu0 0.0
        %1483 = vmatpush2.msra.mxu0 0.0
        %1484 = vmatprep.subr.mxu0 0.0
        %1485 = vmatpush2.msra.mxu0 0.0
        %1486 = vmatprep.subr.mxu0 0.0
        %1487 = vmatpush2.msra.mxu0 0.0
        %1488 = vmatprep.subr.mxu0 0.0
        %1489 = vmatpush2.msra.mxu0 0.0
        %1490 = vmatprep.mubr.f32.mxu0 0.0
        %1491 = vmatmul.mubr.f32.gmra.mxu0 %v1421
        %v1492 = vpop.f32.mrf.mxu0
        %v1493 = vadd.f32 0.0, %v1492
        %v1494 = vpop.f32.mrf.mxu0
        %1495 = vmatprep.mubr.f32.mxu0 0.0
        %1496 = vmatmul.mubr.f32.gmra.mxu0 %v1424
        %v1497 = vpop.f32.mrf.mxu0
        %v1498 = vadd.f32 0.0, %v1497
        %v1499 = vpop.f32.mrf.mxu0
        %1500 = vdwg.mxu0
        %s1501 = scalar_lea.vmem %s305, 256
        %v1502 = vld [vmem:[%s1501] sm:$0xff]
        %v1503 = vld [vmem:[%s1501 + $0x8] sm:$0xff]
        %v1504 = vld [vmem:[%s1501 + $0x10] sm:$0xff]
        %v1505 = vld [vmem:[%s1501 + $0x18] sm:$0xff]
        %v1506 = vld [vmem:[%s1501 + $0x20] sm:$0xff]
        %v1507 = vld [vmem:[%s1501 + $0x28] sm:$0xff]
        %v1508 = vld [vmem:[%s1501 + $0x30] sm:$0xff]
        %v1509 = vld [vmem:[%s1501 + $0x38] sm:$0xff]
        %v1510 = vld [vmem:[%s1501 + $0x40] sm:$0xff]
        %v1511 = vld [vmem:[%s1501 + $0x48] sm:$0xff]
        %v1512 = vld [vmem:[%s1501 + $0x50] sm:$0xff]
        %v1513 = vld [vmem:[%s1501 + $0x58] sm:$0xff]
        %v1514 = vld [vmem:[%s1501 + $0x60] sm:$0xff]
        %v1515 = vld [vmem:[%s1501 + $0x68] sm:$0xff]
        %v1516 = vld [vmem:[%s1501 + $0x70] sm:$0xff]
        %v1517 = vld [vmem:[%s1501 + $0x78] sm:$0xff]
        %v1518 = vld [vmem:[%s1501 + $0x80] sm:$0xff]
        %v1519 = vld [vmem:[%s1501 + $0x88] sm:$0xff]
        %v1520 = vld [vmem:[%s1501 + $0x90] sm:$0xff]
        %v1521 = vld [vmem:[%s1501 + $0x98] sm:$0xff]
        %v1522 = vld [vmem:[%s1501 + $0xa0] sm:$0xff]
        %v1523 = vld [vmem:[%s1501 + $0xa8] sm:$0xff]
        %v1524 = vld [vmem:[%s1501 + $0xb0] sm:$0xff]
        %v1525 = vld [vmem:[%s1501 + $0xb8] sm:$0xff]
        %v1526 = vld [vmem:[%s1501 + $0xc0] sm:$0xff]
        %v1527 = vld [vmem:[%s1501 + $0xc8] sm:$0xff]
        %v1528 = vld [vmem:[%s1501 + $0xd0] sm:$0xff]
        %v1529 = vld [vmem:[%s1501 + $0xd8] sm:$0xff]
        %v1530 = vld [vmem:[%s1501 + $0xe0] sm:$0xff]
        %v1531 = vld [vmem:[%s1501 + $0xe8] sm:$0xff]
        %v1532 = vld [vmem:[%s1501 + $0xf0] sm:$0xff]
        %v1533 = vld [vmem:[%s1501 + $0xf8] sm:$0xff]
        %v1535 = vsel %vm318, %v1502, 0
        %v1538 = vsel %vm318, %v1503, 0
        %v1541 = vsel %vm318, %v1504, 0
        %v1544 = vsel %vm318, %v1505, 0
        %v1547 = vsel %vm318, %v1506, 0
        %v1550 = vsel %vm318, %v1507, 0
        %v1553 = vsel %vm318, %v1508, 0
        %v1556 = vsel %vm318, %v1509, 0
        %v1559 = vsel %vm318, %v1510, 0
        %v1562 = vsel %vm318, %v1511, 0
        %v1565 = vsel %vm318, %v1512, 0
        %v1568 = vsel %vm318, %v1513, 0
        %v1571 = vsel %vm318, %v1514, 0
        %v1574 = vsel %vm318, %v1515, 0
        %v1577 = vsel %vm318, %v1516, 0
        %v1580 = vsel %vm318, %v1517, 0
        %v1583 = vsel %vm318, %v1518, 0
        %v1586 = vsel %vm318, %v1519, 0
        %v1589 = vsel %vm318, %v1520, 0
        %v1592 = vsel %vm318, %v1521, 0
        %v1595 = vsel %vm318, %v1522, 0
        %v1598 = vsel %vm318, %v1523, 0
        %v1601 = vsel %vm318, %v1524, 0
        %v1604 = vsel %vm318, %v1525, 0
        %v1607 = vsel %vm318, %v1526, 0
        %v1610 = vsel %vm318, %v1527, 0
        %v1613 = vsel %vm318, %v1528, 0
        %v1616 = vsel %vm318, %v1529, 0
        %v1619 = vsel %vm318, %v1530, 0
        %v1622 = vsel %vm318, %v1531, 0
        %v1625 = vsel %vm318, %v1532, 0
        %v1628 = vsel %vm318, %v1533, 0
        %1630 = vmatprep.subr.mxu0 0.0
        %1631 = vmatpush1.msra.mxu0 0.0
        %1632 = vmatprep.subr.mxu0 0.0
        %1633 = vmatpush1.msra.mxu0 0.0
        %1634 = vmatprep.subr.mxu0 0.0
        %1635 = vmatpush1.msra.mxu0 0.0
        %1636 = vmatprep.subr.mxu0 0.0
        %1637 = vmatpush1.msra.mxu0 0.0
        %1638 = vmatprep.subr.mxu0 0.0
        %1639 = vmatpush1.msra.mxu0 0.0
        %1640 = vmatprep.subr.mxu0 0.0
        %1641 = vmatpush1.msra.mxu0 0.0
        %1642 = vmatprep.subr.mxu0 0.0
        %1643 = vmatpush1.msra.mxu0 0.0
        %1644 = vmatprep.subr.mxu0 0.0
        %1645 = vmatpush1.msra.mxu0 0.0
        %1646 = vmatprep.subr.mxu0 0.0
        %1647 = vmatpush1.msra.mxu0 0.0
        %1648 = vmatprep.subr.mxu0 0.0
        %1649 = vmatpush1.msra.mxu0 0.0
        %1650 = vmatprep.subr.mxu0 0.0
        %1651 = vmatpush1.msra.mxu0 0.0
        %1652 = vmatprep.subr.mxu0 0.0
        %1653 = vmatpush1.msra.mxu0 0.0
        %1654 = vmatprep.subr.mxu0 0.0
        %1655 = vmatpush1.msra.mxu0 0.0
        %1656 = vmatprep.subr.mxu0 0.0
        %1657 = vmatpush1.msra.mxu0 0.0
        %1658 = vmatprep.subr.mxu0 0.0
        %1659 = vmatpush1.msra.mxu0 0.0
        %1660 = vmatprep.subr.mxu0 0.0
        %1661 = vmatpush1.msra.mxu0 %v309
        %1662 = vmatprep.subr.mxu0 0.0
        %1663 = vmatpush2.msra.mxu0 0.0
        %1664 = vmatprep.subr.mxu0 0.0
        %1665 = vmatpush2.msra.mxu0 0.0
        %1666 = vmatprep.subr.mxu0 0.0
        %1667 = vmatpush2.msra.mxu0 0.0
        %1668 = vmatprep.subr.mxu0 0.0
        %1669 = vmatpush2.msra.mxu0 0.0
        %1670 = vmatprep.subr.mxu0 0.0
        %1671 = vmatpush2.msra.mxu0 0.0
        %1672 = vmatprep.subr.mxu0 0.0
        %1673 = vmatpush2.msra.mxu0 0.0
        %1674 = vmatprep.subr.mxu0 0.0
        %1675 = vmatpush2.msra.mxu0 0.0
        %1676 = vmatprep.subr.mxu0 0.0
        %1677 = vmatpush2.msra.mxu0 0.0
        %1678 = vmatprep.subr.mxu0 0.0
        %1679 = vmatpush2.msra.mxu0 0.0
        %1680 = vmatprep.subr.mxu0 0.0
        %1681 = vmatpush2.msra.mxu0 0.0
        %1682 = vmatprep.subr.mxu0 0.0
        %1683 = vmatpush2.msra.mxu0 0.0
        %1684 = vmatprep.subr.mxu0 0.0
        %1685 = vmatpush2.msra.mxu0 0.0
        %1686 = vmatprep.subr.mxu0 0.0
        %1687 = vmatpush2.msra.mxu0 0.0
        %1688 = vmatprep.subr.mxu0 0.0
        %1689 = vmatpush2.msra.mxu0 0.0
        %1690 = vmatprep.subr.mxu0 0.0
        %1691 = vmatpush2.msra.mxu0 0.0
        %1692 = vmatprep.subr.mxu0 0.0
        %1693 = vmatpush2.msra.mxu0 0.0
        %1694 = vmatprep.mubr.f32.mxu0 0.0
        %1695 = vmatmul.mubr.f32.gmra.mxu0 %v1535
        %v1696 = vpop.f32.mrf.mxu0
        %v1697 = vadd.f32 %v1493, %v1696
        %v1698 = vpop.f32.mrf.mxu0
        %1699 = vmatprep.mubr.f32.mxu0 0.0
        %1700 = vmatmul.mubr.f32.gmra.mxu0 %v1538
        %v1701 = vpop.f32.mrf.mxu0
        %v1702 = vadd.f32 %v1498, %v1701
        %v1703 = vpop.f32.mrf.mxu0
        %1704 = vmatprep.mubr.f32.mxu0 0.0
        %1705 = vmatmul.mubr.f32.gmra.mxu0 %v1541
        %v1706 = vpop.f32.mrf.mxu0
        %v1707 = vadd.f32 %v1493, %v1706
        %v1708 = vpop.f32.mrf.mxu0
        %1709 = vmatprep.mubr.f32.mxu0 0.0
        %1710 = vmatmul.mubr.f32.gmra.mxu0 %v1544
        %v1711 = vpop.f32.mrf.mxu0
        %v1712 = vadd.f32 %v1498, %v1711
        %v1713 = vpop.f32.mrf.mxu0
        %1714 = vmatprep.mubr.f32.mxu0 0.0
        %1715 = vmatmul.mubr.f32.gmra.mxu0 %v1547
        %v1716 = vpop.f32.mrf.mxu0
        %v1717 = vadd.f32 %v1493, %v1716
        %v1718 = vpop.f32.mrf.mxu0
        %1719 = vmatprep.mubr.f32.mxu0 0.0
        %1720 = vmatmul.mubr.f32.gmra.mxu0 %v1550
        %v1721 = vpop.f32.mrf.mxu0
        %v1722 = vadd.f32 %v1498, %v1721
        %v1723 = vpop.f32.mrf.mxu0
        %1724 = vmatprep.mubr.f32.mxu0 0.0
        %1725 = vmatmul.mubr.f32.gmra.mxu0 %v1553
        %v1726 = vpop.f32.mrf.mxu0
        %v1727 = vadd.f32 %v1493, %v1726
        %v1728 = vpop.f32.mrf.mxu0
        %1729 = vmatprep.mubr.f32.mxu0 0.0
        %1730 = vmatmul.mubr.f32.gmra.mxu0 %v1556
        %v1731 = vpop.f32.mrf.mxu0
        %v1732 = vadd.f32 %v1498, %v1731
        %v1733 = vpop.f32.mrf.mxu0
        %1734 = vmatprep.mubr.f32.mxu0 0.0
        %1735 = vmatmul.mubr.f32.gmra.mxu0 %v1559
        %v1736 = vpop.f32.mrf.mxu0
        %v1737 = vadd.f32 %v1493, %v1736
        %v1738 = vpop.f32.mrf.mxu0
        %1739 = vmatprep.mubr.f32.mxu0 0.0
        %1740 = vmatmul.mubr.f32.gmra.mxu0 %v1562
        %v1741 = vpop.f32.mrf.mxu0
        %v1742 = vadd.f32 %v1498, %v1741
        %v1743 = vpop.f32.mrf.mxu0
        %1744 = vmatprep.mubr.f32.mxu0 0.0
        %1745 = vmatmul.mubr.f32.gmra.mxu0 %v1565
        %v1746 = vpop.f32.mrf.mxu0
        %v1747 = vadd.f32 %v1493, %v1746
        %v1748 = vpop.f32.mrf.mxu0
        %1749 = vmatprep.mubr.f32.mxu0 0.0
        %1750 = vmatmul.mubr.f32.gmra.mxu0 %v1568
        %v1751 = vpop.f32.mrf.mxu0
        %v1752 = vadd.f32 %v1498, %v1751
        %v1753 = vpop.f32.mrf.mxu0
        %1754 = vmatprep.mubr.f32.mxu0 0.0
        %1755 = vmatmul.mubr.f32.gmra.mxu0 %v1571
        %v1756 = vpop.f32.mrf.mxu0
        %v1757 = vadd.f32 %v1493, %v1756
        %v1758 = vpop.f32.mrf.mxu0
        %1759 = vmatprep.mubr.f32.mxu0 0.0
        %1760 = vmatmul.mubr.f32.gmra.mxu0 %v1574
        %v1761 = vpop.f32.mrf.mxu0
        %v1762 = vadd.f32 %v1498, %v1761
        %v1763 = vpop.f32.mrf.mxu0
        %1764 = vmatprep.mubr.f32.mxu0 0.0
        %1765 = vmatmul.mubr.f32.gmra.mxu0 %v1577
        %v1766 = vpop.f32.mrf.mxu0
        %v1767 = vadd.f32 %v1493, %v1766
        %v1768 = vpop.f32.mrf.mxu0
        %1769 = vmatprep.mubr.f32.mxu0 0.0
        %1770 = vmatmul.mubr.f32.gmra.mxu0 %v1580
        %v1771 = vpop.f32.mrf.mxu0
        %v1772 = vadd.f32 %v1498, %v1771
        %v1773 = vpop.f32.mrf.mxu0
        %1774 = vmatprep.mubr.f32.mxu0 0.0
        %1775 = vmatmul.mubr.f32.gmra.mxu0 %v1583
        %v1776 = vpop.f32.mrf.mxu0
        %v1777 = vadd.f32 %v1493, %v1776
        %v1778 = vpop.f32.mrf.mxu0
        %1779 = vmatprep.mubr.f32.mxu0 0.0
        %1780 = vmatmul.mubr.f32.gmra.mxu0 %v1586
        %v1781 = vpop.f32.mrf.mxu0
        %v1782 = vadd.f32 %v1498, %v1781
        %v1783 = vpop.f32.mrf.mxu0
        %1784 = vmatprep.mubr.f32.mxu0 0.0
        %1785 = vmatmul.mubr.f32.gmra.mxu0 %v1589
        %v1786 = vpop.f32.mrf.mxu0
        %v1787 = vadd.f32 %v1493, %v1786
        %v1788 = vpop.f32.mrf.mxu0
        %1789 = vmatprep.mubr.f32.mxu0 0.0
        %1790 = vmatmul.mubr.f32.gmra.mxu0 %v1592
        %v1791 = vpop.f32.mrf.mxu0
        %v1792 = vadd.f32 %v1498, %v1791
        %v1793 = vpop.f32.mrf.mxu0
        %1794 = vmatprep.mubr.f32.mxu0 0.0
        %1795 = vmatmul.mubr.f32.gmra.mxu0 %v1595
        %v1796 = vpop.f32.mrf.mxu0
        %v1797 = vadd.f32 %v1493, %v1796
        %v1798 = vpop.f32.mrf.mxu0
        %1799 = vmatprep.mubr.f32.mxu0 0.0
        %1800 = vmatmul.mubr.f32.gmra.mxu0 %v1598
        %v1801 = vpop.f32.mrf.mxu0
        %v1802 = vadd.f32 %v1498, %v1801
        %v1803 = vpop.f32.mrf.mxu0
        %1804 = vmatprep.mubr.f32.mxu0 0.0
        %1805 = vmatmul.mubr.f32.gmra.mxu0 %v1601
        %v1806 = vpop.f32.mrf.mxu0
        %v1807 = vadd.f32 %v1493, %v1806
        %v1808 = vpop.f32.mrf.mxu0
        %1809 = vmatprep.mubr.f32.mxu0 0.0
        %1810 = vmatmul.mubr.f32.gmra.mxu0 %v1604
        %v1811 = vpop.f32.mrf.mxu0
        %v1812 = vadd.f32 %v1498, %v1811
        %v1813 = vpop.f32.mrf.mxu0
        %1814 = vmatprep.mubr.f32.mxu0 0.0
        %1815 = vmatmul.mubr.f32.gmra.mxu0 %v1607
        %v1816 = vpop.f32.mrf.mxu0
        %v1817 = vadd.f32 %v1493, %v1816
        %v1818 = vpop.f32.mrf.mxu0
        %1819 = vmatprep.mubr.f32.mxu0 0.0
        %1820 = vmatmul.mubr.f32.gmra.mxu0 %v1610
        %v1821 = vpop.f32.mrf.mxu0
        %v1822 = vadd.f32 %v1498, %v1821
        %v1823 = vpop.f32.mrf.mxu0
        %1824 = vmatprep.mubr.f32.mxu0 0.0
        %1825 = vmatmul.mubr.f32.gmra.mxu0 %v1613
        %v1826 = vpop.f32.mrf.mxu0
        %v1827 = vadd.f32 %v1493, %v1826
        %v1828 = vpop.f32.mrf.mxu0
        %1829 = vmatprep.mubr.f32.mxu0 0.0
        %1830 = vmatmul.mubr.f32.gmra.mxu0 %v1616
        %v1831 = vpop.f32.mrf.mxu0
        %v1832 = vadd.f32 %v1498, %v1831
        %v1833 = vpop.f32.mrf.mxu0
        %1834 = vmatprep.mubr.f32.mxu0 0.0
        %1835 = vmatmul.mubr.f32.gmra.mxu0 %v1619
        %v1836 = vpop.f32.mrf.mxu0
        %v1837 = vadd.f32 %v1493, %v1836
        %v1838 = vpop.f32.mrf.mxu0
        %1839 = vmatprep.mubr.f32.mxu0 0.0
        %1840 = vmatmul.mubr.f32.gmra.mxu0 %v1622
        %v1841 = vpop.f32.mrf.mxu0
        %v1842 = vadd.f32 %v1498, %v1841
        %v1843 = vpop.f32.mrf.mxu0
        %1844 = vmatprep.mubr.f32.mxu0 0.0
        %1845 = vmatmul.mubr.f32.gmra.mxu0 %v1625
        %v1846 = vpop.f32.mrf.mxu0
        %v1847 = vadd.f32 %v1493, %v1846
        %v1848 = vpop.f32.mrf.mxu0
        %1849 = vmatprep.mubr.f32.mxu0 0.0
        %1850 = vmatmul.mubr.f32.gmra.mxu0 %v1628
        %v1851 = vpop.f32.mrf.mxu0
        %v1852 = vadd.f32 %v1498, %v1851
        %v1853 = vpop.f32.mrf.mxu0
        %1854 = vdwg.mxu0
        %v1855 = vadd.f32 %v1697, %v757
        %v1856 = vadd.f32 %v1702, %v757
        %v1857 = vadd.f32 %v1707, %v757
        %v1858 = vadd.f32 %v1712, %v757
        %v1859 = vadd.f32 %v1717, %v757
        %v1860 = vadd.f32 %v1722, %v757
        %v1861 = vadd.f32 %v1727, %v757
        %v1862 = vadd.f32 %v1732, %v757
        %v1863 = vadd.f32 %v1737, %v757
        %v1864 = vadd.f32 %v1742, %v757
        %v1865 = vadd.f32 %v1747, %v757
        %v1866 = vadd.f32 %v1752, %v757
        %v1867 = vadd.f32 %v1757, %v757
        %v1868 = vadd.f32 %v1762, %v757
        %v1869 = vadd.f32 %v1767, %v757
        %v1870 = vadd.f32 %v1772, %v757
        %v1871 = vadd.f32 %v1777, %v757
        %v1872 = vadd.f32 %v1782, %v757
        %v1873 = vadd.f32 %v1787, %v757
        %v1874 = vadd.f32 %v1792, %v757
        %v1875 = vadd.f32 %v1797, %v757
        %v1876 = vadd.f32 %v1802, %v757
        %v1877 = vadd.f32 %v1807, %v757
        %v1878 = vadd.f32 %v1812, %v757
        %v1879 = vadd.f32 %v1817, %v757
        %v1880 = vadd.f32 %v1822, %v757
        %v1881 = vadd.f32 %v1827, %v757
        %v1882 = vadd.f32 %v1832, %v757
        %v1883 = vadd.f32 %v1837, %v757
        %v1884 = vadd.f32 %v1842, %v757
        %v1885 = vadd.f32 %v1847, %v757
        %v1886 = vadd.f32 %v1852, %v757
        %v1887 = vmax.f32 %v1855, 0.0
        %v1888 = vmax.f32 %v1856, 0.0
        %v1889 = vmax.f32 %v1857, 0.0
        %v1890 = vmax.f32 %v1858, 0.0
        %v1891 = vmax.f32 %v1859, 0.0
        %v1892 = vmax.f32 %v1860, 0.0
        %v1893 = vmax.f32 %v1861, 0.0
        %v1894 = vmax.f32 %v1862, 0.0
        %v1895 = vmax.f32 %v1863, 0.0
        %v1896 = vmax.f32 %v1864, 0.0
        %v1897 = vmax.f32 %v1865, 0.0
        %v1898 = vmax.f32 %v1866, 0.0
        %v1899 = vmax.f32 %v1867, 0.0
        %v1900 = vmax.f32 %v1868, 0.0
        %v1901 = vmax.f32 %v1869, 0.0
        %v1902 = vmax.f32 %v1870, 0.0
        %v1903 = vmax.f32 %v1871, 0.0
        %v1904 = vmax.f32 %v1872, 0.0
        %v1905 = vmax.f32 %v1873, 0.0
        %v1906 = vmax.f32 %v1874, 0.0
        %v1907 = vmax.f32 %v1875, 0.0
        %v1908 = vmax.f32 %v1876, 0.0
        %v1909 = vmax.f32 %v1877, 0.0
        %v1910 = vmax.f32 %v1878, 0.0
        %v1911 = vmax.f32 %v1879, 0.0
        %v1912 = vmax.f32 %v1880, 0.0
        %v1913 = vmax.f32 %v1881, 0.0
        %v1914 = vmax.f32 %v1882, 0.0
        %v1915 = vmax.f32 %v1883, 0.0
        %v1916 = vmax.f32 %v1884, 0.0
        %v1917 = vmax.f32 %v1885, 0.0
        %v1918 = vmax.f32 %v1886, 0.0
        %v1920 = vsel %vm829, %v1887, 0
        %v1923 = vsel %vm829, %v1888, 0
        %v1926 = vsel %vm829, %v1889, 0
        %v1929 = vsel %vm829, %v1890, 0
        %v1932 = vsel %vm829, %v1891, 0
        %v1935 = vsel %vm829, %v1892, 0
        %v1938 = vsel %vm829, %v1893, 0
        %v1941 = vsel %vm829, %v1894, 0
        %v1944 = vsel %vm829, %v1895, 0
        %v1947 = vsel %vm829, %v1896, 0
        %v1950 = vsel %vm829, %v1897, 0
        %v1953 = vsel %vm829, %v1898, 0
        %v1956 = vsel %vm829, %v1899, 0
        %v1959 = vsel %vm829, %v1900, 0
        %v1962 = vsel %vm829, %v1901, 0
        %v1965 = vsel %vm829, %v1902, 0
        %v1968 = vsel %vm829, %v1903, 0
        %v1971 = vsel %vm829, %v1904, 0
        %v1974 = vsel %vm829, %v1905, 0
        %v1977 = vsel %vm829, %v1906, 0
        %v1980 = vsel %vm829, %v1907, 0
        %v1983 = vsel %vm829, %v1908, 0
        %v1986 = vsel %vm829, %v1909, 0
        %v1989 = vsel %vm829, %v1910, 0
        %v1992 = vsel %vm829, %v1911, 0
        %v1995 = vsel %vm829, %v1912, 0
        %v1998 = vsel %vm829, %v1913, 0
        %v2001 = vsel %vm829, %v1914, 0
        %v2004 = vsel %vm829, %v1915, 0
        %v2007 = vsel %vm829, %v1916, 0
        %v2010 = vsel %vm829, %v1917, 0
        %v2013 = vsel %vm829, %v1918, 0
        %2015 = vmatprep.subr.mxu0 0.0
        %2016 = vmatpush1.msra.mxu0 0.0
        %2017 = vmatprep.subr.mxu0 0.0
        %2018 = vmatpush1.msra.mxu0 0.0
        %2019 = vmatprep.subr.mxu0 0.0
        %2020 = vmatpush1.msra.mxu0 0.0
        %2021 = vmatprep.subr.mxu0 0.0
        %2022 = vmatpush1.msra.mxu0 0.0
        %2023 = vmatprep.subr.mxu0 0.0
        %2024 = vmatpush1.msra.mxu0 0.0
        %2025 = vmatprep.subr.mxu0 0.0
        %2026 = vmatpush1.msra.mxu0 0.0
        %2027 = vmatprep.subr.mxu0 0.0
        %2028 = vmatpush1.msra.mxu0 0.0
        %2029 = vmatprep.subr.mxu0 0.0
        %2030 = vmatpush1.msra.mxu0 0.0
        %2031 = vmatprep.subr.mxu0 0.0
        %2032 = vmatpush1.msra.mxu0 0.0
        %2033 = vmatprep.subr.mxu0 0.0
        %2034 = vmatpush1.msra.mxu0 0.0
        %2035 = vmatprep.subr.mxu0 0.0
        %2036 = vmatpush1.msra.mxu0 0.0
        %2037 = vmatprep.subr.mxu0 0.0
        %2038 = vmatpush1.msra.mxu0 0.0
        %2039 = vmatprep.subr.mxu0 0.0
        %2040 = vmatpush1.msra.mxu0 %v313
        %2041 = vmatprep.subr.mxu0 0.0
        %2042 = vmatpush1.msra.mxu0 %v312
        %2043 = vmatprep.subr.mxu0 0.0
        %2044 = vmatpush1.msra.mxu0 %v311
        %2045 = vmatprep.subr.mxu0 0.0
        %2046 = vmatpush1.msra.mxu0 %v310
        %2047 = vmatprep.subr.mxu0 0.0
        %2048 = vmatpush2.msra.mxu0 0.0
        %2049 = vmatprep.subr.mxu0 0.0
        %2050 = vmatpush2.msra.mxu0 0.0
        %2051 = vmatprep.subr.mxu0 0.0
        %2052 = vmatpush2.msra.mxu0 0.0
        %2053 = vmatprep.subr.mxu0 0.0
        %2054 = vmatpush2.msra.mxu0 0.0
        %2055 = vmatprep.subr.mxu0 0.0
        %2056 = vmatpush2.msra.mxu0 0.0
        %2057 = vmatprep.subr.mxu0 0.0
        %2058 = vmatpush2.msra.mxu0 0.0
        %2059 = vmatprep.subr.mxu0 0.0
        %2060 = vmatpush2.msra.mxu0 0.0
        %2061 = vmatprep.subr.mxu0 0.0
        %2062 = vmatpush2.msra.mxu0 0.0
        %2063 = vmatprep.subr.mxu0 0.0
        %2064 = vmatpush2.msra.mxu0 0.0
        %2065 = vmatprep.subr.mxu0 0.0
        %2066 = vmatpush2.msra.mxu0 0.0
        %2067 = vmatprep.subr.mxu0 0.0
        %2068 = vmatpush2.msra.mxu0 0.0
        %2069 = vmatprep.subr.mxu0 0.0
        %2070 = vmatpush2.msra.mxu0 0.0
        %2071 = vmatprep.subr.mxu0 0.0
        %2072 = vmatpush2.msra.mxu0 0.0
        %2073 = vmatprep.subr.mxu0 0.0
        %2074 = vmatpush2.msra.mxu0 0.0
        %2075 = vmatprep.subr.mxu0 0.0
        %2076 = vmatpush2.msra.mxu0 0.0
        %2077 = vmatprep.subr.mxu0 0.0
        %2078 = vmatpush2.msra.mxu0 0.0
        %2079 = vmatprep.mubr.f32.mxu0 0.0
        %2080 = vmatmul.mubr.f32.gmra.mxu0 %v1920
        %v2081 = vpop.f32.mrf.mxu0
        %v2082 = vadd.f32 %v827, %v2081
        %v2083 = vpop.f32.mrf.mxu0
        %2084 = vmatprep.mubr.f32.mxu0 0.0
        %2085 = vmatmul.mubr.f32.gmra.mxu0 %v1923
        %v2086 = vpop.f32.mrf.mxu0
        %v2087 = vadd.f32 %v827, %v2086
        %v2088 = vpop.f32.mrf.mxu0
        %2089 = vmatprep.mubr.f32.mxu0 0.0
        %2090 = vmatmul.mubr.f32.gmra.mxu0 %v1926
        %v2091 = vpop.f32.mrf.mxu0
        %v2092 = vadd.f32 %v827, %v2091
        %v2093 = vpop.f32.mrf.mxu0
        %2094 = vmatprep.mubr.f32.mxu0 0.0
        %2095 = vmatmul.mubr.f32.gmra.mxu0 %v1929
        %v2096 = vpop.f32.mrf.mxu0
        %v2097 = vadd.f32 %v827, %v2096
        %v2098 = vpop.f32.mrf.mxu0
        %2099 = vmatprep.mubr.f32.mxu0 0.0
        %2100 = vmatmul.mubr.f32.gmra.mxu0 %v1932
        %v2101 = vpop.f32.mrf.mxu0
        %v2102 = vadd.f32 %v827, %v2101
        %v2103 = vpop.f32.mrf.mxu0
        %2104 = vmatprep.mubr.f32.mxu0 0.0
        %2105 = vmatmul.mubr.f32.gmra.mxu0 %v1935
        %v2106 = vpop.f32.mrf.mxu0
        %v2107 = vadd.f32 %v827, %v2106
        %v2108 = vpop.f32.mrf.mxu0
        %2109 = vmatprep.mubr.f32.mxu0 0.0
        %2110 = vmatmul.mubr.f32.gmra.mxu0 %v1938
        %v2111 = vpop.f32.mrf.mxu0
        %v2112 = vadd.f32 %v827, %v2111
        %v2113 = vpop.f32.mrf.mxu0
        %2114 = vmatprep.mubr.f32.mxu0 0.0
        %2115 = vmatmul.mubr.f32.gmra.mxu0 %v1941
        %v2116 = vpop.f32.mrf.mxu0
        %v2117 = vadd.f32 %v827, %v2116
        %v2118 = vpop.f32.mrf.mxu0
        %2119 = vmatprep.mubr.f32.mxu0 0.0
        %2120 = vmatmul.mubr.f32.gmra.mxu0 %v1944
        %v2121 = vpop.f32.mrf.mxu0
        %v2122 = vadd.f32 %v827, %v2121
        %v2123 = vpop.f32.mrf.mxu0
        %2124 = vmatprep.mubr.f32.mxu0 0.0
        %2125 = vmatmul.mubr.f32.gmra.mxu0 %v1947
        %v2126 = vpop.f32.mrf.mxu0
        %v2127 = vadd.f32 %v827, %v2126
        %v2128 = vpop.f32.mrf.mxu0
        %2129 = vmatprep.mubr.f32.mxu0 0.0
        %2130 = vmatmul.mubr.f32.gmra.mxu0 %v1950
        %v2131 = vpop.f32.mrf.mxu0
        %v2132 = vadd.f32 %v827, %v2131
        %v2133 = vpop.f32.mrf.mxu0
        %2134 = vmatprep.mubr.f32.mxu0 0.0
        %2135 = vmatmul.mubr.f32.gmra.mxu0 %v1953
        %v2136 = vpop.f32.mrf.mxu0
        %v2137 = vadd.f32 %v827, %v2136
        %v2138 = vpop.f32.mrf.mxu0
        %2139 = vmatprep.mubr.f32.mxu0 0.0
        %2140 = vmatmul.mubr.f32.gmra.mxu0 %v1956
        %v2141 = vpop.f32.mrf.mxu0
        %v2142 = vadd.f32 %v827, %v2141
        %v2143 = vpop.f32.mrf.mxu0
        %2144 = vmatprep.mubr.f32.mxu0 0.0
        %2145 = vmatmul.mubr.f32.gmra.mxu0 %v1959
        %v2146 = vpop.f32.mrf.mxu0
        %v2147 = vadd.f32 %v827, %v2146
        %v2148 = vpop.f32.mrf.mxu0
        %2149 = vmatprep.mubr.f32.mxu0 0.0
        %2150 = vmatmul.mubr.f32.gmra.mxu0 %v1962
        %v2151 = vpop.f32.mrf.mxu0
        %v2152 = vadd.f32 %v827, %v2151
        %v2153 = vpop.f32.mrf.mxu0
        %2154 = vmatprep.mubr.f32.mxu0 0.0
        %2155 = vmatmul.mubr.f32.gmra.mxu0 %v1965
        %v2156 = vpop.f32.mrf.mxu0
        %v2157 = vadd.f32 %v827, %v2156
        %v2158 = vpop.f32.mrf.mxu0
        %2159 = vmatprep.mubr.f32.mxu0 0.0
        %2160 = vmatmul.mubr.f32.gmra.mxu0 %v1968
        %v2161 = vpop.f32.mrf.mxu0
        %v2162 = vadd.f32 %v827, %v2161
        %v2163 = vpop.f32.mrf.mxu0
        %2164 = vmatprep.mubr.f32.mxu0 0.0
        %2165 = vmatmul.mubr.f32.gmra.mxu0 %v1971
        %v2166 = vpop.f32.mrf.mxu0
        %v2167 = vadd.f32 %v827, %v2166
        %v2168 = vpop.f32.mrf.mxu0
        %2169 = vmatprep.mubr.f32.mxu0 0.0
        %2170 = vmatmul.mubr.f32.gmra.mxu0 %v1974
        %v2171 = vpop.f32.mrf.mxu0
        %v2172 = vadd.f32 %v827, %v2171
        %v2173 = vpop.f32.mrf.mxu0
        %2174 = vmatprep.mubr.f32.mxu0 0.0
        %2175 = vmatmul.mubr.f32.gmra.mxu0 %v1977
        %v2176 = vpop.f32.mrf.mxu0
        %v2177 = vadd.f32 %v827, %v2176
        %v2178 = vpop.f32.mrf.mxu0
        %2179 = vmatprep.mubr.f32.mxu0 0.0
        %2180 = vmatmul.mubr.f32.gmra.mxu0 %v1980
        %v2181 = vpop.f32.mrf.mxu0
        %v2182 = vadd.f32 %v827, %v2181
        %v2183 = vpop.f32.mrf.mxu0
        %2184 = vmatprep.mubr.f32.mxu0 0.0
        %2185 = vmatmul.mubr.f32.gmra.mxu0 %v1983
        %v2186 = vpop.f32.mrf.mxu0
        %v2187 = vadd.f32 %v827, %v2186
        %v2188 = vpop.f32.mrf.mxu0
        %2189 = vmatprep.mubr.f32.mxu0 0.0
        %2190 = vmatmul.mubr.f32.gmra.mxu0 %v1986
        %v2191 = vpop.f32.mrf.mxu0
        %v2192 = vadd.f32 %v827, %v2191
        %v2193 = vpop.f32.mrf.mxu0
        %2194 = vmatprep.mubr.f32.mxu0 0.0
        %2195 = vmatmul.mubr.f32.gmra.mxu0 %v1989
        %v2196 = vpop.f32.mrf.mxu0
        %v2197 = vadd.f32 %v827, %v2196
        %v2198 = vpop.f32.mrf.mxu0
        %2199 = vmatprep.mubr.f32.mxu0 0.0
        %2200 = vmatmul.mubr.f32.gmra.mxu0 %v1992
        %v2201 = vpop.f32.mrf.mxu0
        %v2202 = vadd.f32 %v827, %v2201
        %v2203 = vpop.f32.mrf.mxu0
        %2204 = vmatprep.mubr.f32.mxu0 0.0
        %2205 = vmatmul.mubr.f32.gmra.mxu0 %v1995
        %v2206 = vpop.f32.mrf.mxu0
        %v2207 = vadd.f32 %v827, %v2206
        %v2208 = vpop.f32.mrf.mxu0
        %2209 = vmatprep.mubr.f32.mxu0 0.0
        %2210 = vmatmul.mubr.f32.gmra.mxu0 %v1998
        %v2211 = vpop.f32.mrf.mxu0
        %v2212 = vadd.f32 %v827, %v2211
        %v2213 = vpop.f32.mrf.mxu0
        %2214 = vmatprep.mubr.f32.mxu0 0.0
        %2215 = vmatmul.mubr.f32.gmra.mxu0 %v2001
        %v2216 = vpop.f32.mrf.mxu0
        %v2217 = vadd.f32 %v827, %v2216
        %v2218 = vpop.f32.mrf.mxu0
        %2219 = vmatprep.mubr.f32.mxu0 0.0
        %2220 = vmatmul.mubr.f32.gmra.mxu0 %v2004
        %v2221 = vpop.f32.mrf.mxu0
        %v2222 = vadd.f32 %v827, %v2221
        %v2223 = vpop.f32.mrf.mxu0
        %2224 = vmatprep.mubr.f32.mxu0 0.0
        %2225 = vmatmul.mubr.f32.gmra.mxu0 %v2007
        %v2226 = vpop.f32.mrf.mxu0
        %v2227 = vadd.f32 %v827, %v2226
        %v2228 = vpop.f32.mrf.mxu0
        %2229 = vmatprep.mubr.f32.mxu0 0.0
        %2230 = vmatmul.mubr.f32.gmra.mxu0 %v2010
        %v2231 = vpop.f32.mrf.mxu0
        %v2232 = vadd.f32 %v827, %v2231
        %v2233 = vpop.f32.mrf.mxu0
        %2234 = vmatprep.mubr.f32.mxu0 0.0
        %2235 = vmatmul.mubr.f32.gmra.mxu0 %v2013
        %v2236 = vpop.f32.mrf.mxu0
        %v2237 = vadd.f32 %v827, %v2236
        %v2238 = vpop.f32.mrf.mxu0
        %2239 = vdwg.mxu0
        %v2240 = vxor.u32 %v2082, 2147483648
        %v2241 = vxor.u32 %v2087, 2147483648
        %v2242 = vxor.u32 %v2092, 2147483648
        %v2243 = vxor.u32 %v2097, 2147483648
        %v2244 = vxor.u32 %v2102, 2147483648
        %v2245 = vxor.u32 %v2107, 2147483648
        %v2246 = vxor.u32 %v2112, 2147483648
        %v2247 = vxor.u32 %v2117, 2147483648
        %v2248 = vxor.u32 %v2122, 2147483648
        %v2249 = vxor.u32 %v2127, 2147483648
        %v2250 = vxor.u32 %v2132, 2147483648
        %v2251 = vxor.u32 %v2137, 2147483648
        %v2252 = vxor.u32 %v2142, 2147483648
        %v2253 = vxor.u32 %v2147, 2147483648
        %v2254 = vxor.u32 %v2152, 2147483648
        %v2255 = vxor.u32 %v2157, 2147483648
        %v2256 = vxor.u32 %v2162, 2147483648
        %v2257 = vxor.u32 %v2167, 2147483648
        %v2258 = vxor.u32 %v2172, 2147483648
        %v2259 = vxor.u32 %v2177, 2147483648
        %v2260 = vxor.u32 %v2182, 2147483648
        %v2261 = vxor.u32 %v2187, 2147483648
        %v2262 = vxor.u32 %v2192, 2147483648
        %v2263 = vxor.u32 %v2197, 2147483648
        %v2264 = vxor.u32 %v2202, 2147483648
        %v2265 = vxor.u32 %v2207, 2147483648
        %v2266 = vxor.u32 %v2212, 2147483648
        %v2267 = vxor.u32 %v2217, 2147483648
        %v2268 = vxor.u32 %v2222, 2147483648
        %v2269 = vxor.u32 %v2227, 2147483648
        %v2270 = vxor.u32 %v2232, 2147483648
        %v2271 = vxor.u32 %v2237, 2147483648
        %v2272 = vmul.f32 %v2240, 1.442695
        %v2273 = vpow.pop %v2272
        %v2274 = vmul.f32 %v2241, 1.442695
        %v2275 = vpow.pop %v2274
        %v2276 = vmul.f32 %v2242, 1.442695
        %v2277 = vpow.pop %v2276
        %v2278 = vmul.f32 %v2243, 1.442695
        %v2279 = vpow.pop %v2278
        %v2280 = vmul.f32 %v2244, 1.442695
        %v2281 = vpow.pop %v2280
        %v2282 = vmul.f32 %v2245, 1.442695
        %v2283 = vpow.pop %v2282
        %v2284 = vmul.f32 %v2246, 1.442695
        %v2285 = vpow.pop %v2284
        %v2286 = vmul.f32 %v2247, 1.442695
        %v2287 = vpow.pop %v2286
        %v2288 = vmul.f32 %v2248, 1.442695
        %v2289 = vpow.pop %v2288
        %v2290 = vmul.f32 %v2249, 1.442695
        %v2291 = vpow.pop %v2290
        %v2292 = vmul.f32 %v2250, 1.442695
        %v2293 = vpow.pop %v2292
        %v2294 = vmul.f32 %v2251, 1.442695
        %v2295 = vpow.pop %v2294
        %v2296 = vmul.f32 %v2252, 1.442695
        %v2297 = vpow.pop %v2296
        %v2298 = vmul.f32 %v2253, 1.442695
        %v2299 = vpow.pop %v2298
        %v2300 = vmul.f32 %v2254, 1.442695
        %v2301 = vpow.pop %v2300
        %v2302 = vmul.f32 %v2255, 1.442695
        %v2303 = vpow.pop %v2302
        %v2304 = vmul.f32 %v2256, 1.442695
        %v2305 = vpow.pop %v2304
        %v2306 = vmul.f32 %v2257, 1.442695
        %v2307 = vpow.pop %v2306
        %v2308 = vmul.f32 %v2258, 1.442695
        %v2309 = vpow.pop %v2308
        %v2310 = vmul.f32 %v2259, 1.442695
        %v2311 = vpow.pop %v2310
        %v2312 = vmul.f32 %v2260, 1.442695
        %v2313 = vpow.pop %v2312
        %v2314 = vmul.f32 %v2261, 1.442695
        %v2315 = vpow.pop %v2314
        %v2316 = vmul.f32 %v2262, 1.442695
        %v2317 = vpow.pop %v2316
        %v2318 = vmul.f32 %v2263, 1.442695
        %v2319 = vpow.pop %v2318
        %v2320 = vmul.f32 %v2264, 1.442695
        %v2321 = vpow.pop %v2320
        %v2322 = vmul.f32 %v2265, 1.442695
        %v2323 = vpow.pop %v2322
        %v2324 = vmul.f32 %v2266, 1.442695
        %v2325 = vpow.pop %v2324
        %v2326 = vmul.f32 %v2267, 1.442695
        %v2327 = vpow.pop %v2326
        %v2328 = vmul.f32 %v2268, 1.442695
        %v2329 = vpow.pop %v2328
        %v2330 = vmul.f32 %v2269, 1.442695
        %v2331 = vpow.pop %v2330
        %v2332 = vmul.f32 %v2270, 1.442695
        %v2333 = vpow.pop %v2332
        %v2334 = vmul.f32 %v2271, 1.442695
        %v2335 = vpow.pop %v2334
        %v2336 = vadd.f32 %v2273, 1.0
        %v2337 = vadd.f32 %v2275, 1.0
        %v2338 = vadd.f32 %v2277, 1.0
        %v2339 = vadd.f32 %v2279, 1.0
        %v2340 = vadd.f32 %v2281, 1.0
        %v2341 = vadd.f32 %v2283, 1.0
        %v2342 = vadd.f32 %v2285, 1.0
        %v2343 = vadd.f32 %v2287, 1.0
        %v2344 = vadd.f32 %v2289, 1.0
        %v2345 = vadd.f32 %v2291, 1.0
        %v2346 = vadd.f32 %v2293, 1.0
        %v2347 = vadd.f32 %v2295, 1.0
        %v2348 = vadd.f32 %v2297, 1.0
        %v2349 = vadd.f32 %v2299, 1.0
        %v2350 = vadd.f32 %v2301, 1.0
        %v2351 = vadd.f32 %v2303, 1.0
        %v2352 = vadd.f32 %v2305, 1.0
        %v2353 = vadd.f32 %v2307, 1.0
        %v2354 = vadd.f32 %v2309, 1.0
        %v2355 = vadd.f32 %v2311, 1.0
        %v2356 = vadd.f32 %v2313, 1.0
        %v2357 = vadd.f32 %v2315, 1.0
        %v2358 = vadd.f32 %v2317, 1.0
        %v2359 = vadd.f32 %v2319, 1.0
        %v2360 = vadd.f32 %v2321, 1.0
        %v2361 = vadd.f32 %v2323, 1.0
        %v2362 = vadd.f32 %v2325, 1.0
        %v2363 = vadd.f32 %v2327, 1.0
        %v2364 = vadd.f32 %v2329, 1.0
        %v2365 = vadd.f32 %v2331, 1.0
        %v2366 = vadd.f32 %v2333, 1.0
        %v2367 = vadd.f32 %v2335, 1.0
        %v2368 = vrcp.pop %v2336
        %v2369 = vmul.f32 1.0, %v2368
        %v2370 = vrcp.pop %v2337
        %v2371 = vmul.f32 1.0, %v2370
        %v2372 = vrcp.pop %v2338
        %v2373 = vmul.f32 1.0, %v2372
        %v2374 = vrcp.pop %v2339
        %v2375 = vmul.f32 1.0, %v2374
        %v2376 = vrcp.pop %v2340
        %v2377 = vmul.f32 1.0, %v2376
        %v2378 = vrcp.pop %v2341
        %v2379 = vmul.f32 1.0, %v2378
        %v2380 = vrcp.pop %v2342
        %v2381 = vmul.f32 1.0, %v2380
        %v2382 = vrcp.pop %v2343
        %v2383 = vmul.f32 1.0, %v2382
        %v2384 = vrcp.pop %v2344
        %v2385 = vmul.f32 1.0, %v2384
        %v2386 = vrcp.pop %v2345
        %v2387 = vmul.f32 1.0, %v2386
        %v2388 = vrcp.pop %v2346
        %v2389 = vmul.f32 1.0, %v2388
        %v2390 = vrcp.pop %v2347
        %v2391 = vmul.f32 1.0, %v2390
        %v2392 = vrcp.pop %v2348
        %v2393 = vmul.f32 1.0, %v2392
        %v2394 = vrcp.pop %v2349
        %v2395 = vmul.f32 1.0, %v2394
        %v2396 = vrcp.pop %v2350
        %v2397 = vmul.f32 1.0, %v2396
        %v2398 = vrcp.pop %v2351
        %v2399 = vmul.f32 1.0, %v2398
        %v2400 = vrcp.pop %v2352
        %v2401 = vmul.f32 1.0, %v2400
        %v2402 = vrcp.pop %v2353
        %v2403 = vmul.f32 1.0, %v2402
        %v2404 = vrcp.pop %v2354
        %v2405 = vmul.f32 1.0, %v2404
        %v2406 = vrcp.pop %v2355
        %v2407 = vmul.f32 1.0, %v2406
        %v2408 = vrcp.pop %v2356
        %v2409 = vmul.f32 1.0, %v2408
        %v2410 = vrcp.pop %v2357
        %v2411 = vmul.f32 1.0, %v2410
        %v2412 = vrcp.pop %v2358
        %v2413 = vmul.f32 1.0, %v2412
        %v2414 = vrcp.pop %v2359
        %v2415 = vmul.f32 1.0, %v2414
        %v2416 = vrcp.pop %v2360
        %v2417 = vmul.f32 1.0, %v2416
        %v2418 = vrcp.pop %v2361
        %v2419 = vmul.f32 1.0, %v2418
        %v2420 = vrcp.pop %v2362
        %v2421 = vmul.f32 1.0, %v2420
        %v2422 = vrcp.pop %v2363
        %v2423 = vmul.f32 1.0, %v2422
        %v2424 = vrcp.pop %v2364
        %v2425 = vmul.f32 1.0, %v2424
        %v2426 = vrcp.pop %v2365
        %v2427 = vmul.f32 1.0, %v2426
        %v2428 = vrcp.pop %v2366
        %v2429 = vmul.f32 1.0, %v2428
        %v2430 = vrcp.pop %v2367
        %v2431 = vmul.f32 1.0, %v2430
        %v2432 = vsel %vm1343, %v2369, 0.0
        %v2433 = vsel %vm1343, %v2371, 0.0
        %v2434 = vadd.f32 %v2432, %v2433
        %v2435 = vsel %vm1343, %v2373, 0.0
        %v2436 = vadd.f32 %v2434, %v2435
        %v2437 = vsel %vm1343, %v2375, 0.0
        %v2438 = vadd.f32 %v2436, %v2437
        %v2439 = vsel %vm1343, %v2377, 0.0
        %v2440 = vadd.f32 %v2438, %v2439
        %v2441 = vsel %vm1343, %v2379, 0.0
        %v2442 = vadd.f32 %v2440, %v2441
        %v2443 = vsel %vm1343, %v2381, 0.0
        %v2444 = vadd.f32 %v2442, %v2443
        %v2445 = vsel %vm1343, %v2383, 0.0
        %v2446 = vadd.f32 %v2444, %v2445
        %v2447 = vsel %vm1343, %v2385, 0.0
        %v2448 = vadd.f32 %v2446, %v2447
        %v2449 = vsel %vm1343, %v2387, 0.0
        %v2450 = vadd.f32 %v2448, %v2449
        %v2451 = vsel %vm1343, %v2389, 0.0
        %v2452 = vadd.f32 %v2450, %v2451
        %v2453 = vsel %vm1343, %v2391, 0.0
        %v2454 = vadd.f32 %v2452, %v2453
        %v2455 = vsel %vm1343, %v2393, 0.0
        %v2456 = vadd.f32 %v2454, %v2455
        %v2457 = vsel %vm1343, %v2395, 0.0
        %v2458 = vadd.f32 %v2456, %v2457
        %v2459 = vsel %vm1343, %v2397, 0.0
        %v2460 = vadd.f32 %v2458, %v2459
        %v2461 = vsel %vm1343, %v2399, 0.0
        %v2462 = vadd.f32 %v2460, %v2461
        %v2463 = vsel %vm1343, %v2401, 0.0
        %v2464 = vadd.f32 %v2462, %v2463
        %v2465 = vsel %vm1343, %v2403, 0.0
        %v2466 = vadd.f32 %v2464, %v2465
        %v2467 = vsel %vm1343, %v2405, 0.0
        %v2468 = vadd.f32 %v2466, %v2467
        %v2469 = vsel %vm1343, %v2407, 0.0
        %v2470 = vadd.f32 %v2468, %v2469
        %v2471 = vsel %vm1343, %v2409, 0.0
        %v2472 = vadd.f32 %v2470, %v2471
        %v2473 = vsel %vm1343, %v2411, 0.0
        %v2474 = vadd.f32 %v2472, %v2473
        %v2475 = vsel %vm1343, %v2413, 0.0
        %v2476 = vadd.f32 %v2474, %v2475
        %v2477 = vsel %vm1343, %v2415, 0.0
        %v2478 = vadd.f32 %v2476, %v2477
        %v2479 = vsel %vm1343, %v2417, 0.0
        %v2480 = vadd.f32 %v2478, %v2479
        %v2481 = vsel %vm1343, %v2419, 0.0
        %v2482 = vadd.f32 %v2480, %v2481
        %v2483 = vsel %vm1343, %v2421, 0.0
        %v2484 = vadd.f32 %v2482, %v2483
        %v2485 = vsel %vm1343, %v2423, 0.0
        %v2486 = vadd.f32 %v2484, %v2485
        %v2487 = vsel %vm1343, %v2425, 0.0
        %v2488 = vadd.f32 %v2486, %v2487
        %v2489 = vsel %vm1343, %v2427, 0.0
        %v2490 = vadd.f32 %v2488, %v2489
        %v2491 = vsel %vm1343, %v2429, 0.0
        %v2492 = vadd.f32 %v2490, %v2491
        %v2493 = vsel %vm1343, %v2431, 0.0
        %v2494 = vadd.f32 %v2492, %v2493
        %v2495 = vrot.slane %v2494, 4
        %v2496 = vadd.f32 %v2494, %v2495
        %v2497 = vrot.slane %v2496, 2
        %v2498 = vadd.f32 %v2496, %v2497
        %v2499 = vrot.slane %v2498, 1
        %v2500 = vadd.f32 %v2498, %v2499
        %v2501 = vmul.f32 %v2500, %v1413
        %s2502 = scalar_lea.vmem %s292, 1 [#allocation2]
        %2503 = vst.msk [vmem:[%s2502] sm:$0x1] %vm1415, %v2501
        %s2504 = scalar_lea.vmem %s298, 32
        %v2505 = vld [vmem:[%s2504] sm:$0xff]
        %v2506 = vld [vmem:[%s2504 + $0x8] sm:$0xff]
        %v2508 = vsel %vm318, %v2505, 0
        %v2511 = vsel %vm318, %v2506, 0
        %2513 = vmatprep.subr.mxu0 0.0
        %2514 = vmatpush1.msra.mxu0 0.0
        %2515 = vmatprep.subr.mxu0 0.0
        %2516 = vmatpush1.msra.mxu0 0.0
        %2517 = vmatprep.subr.mxu0 0.0
        %2518 = vmatpush1.msra.mxu0 0.0
        %2519 = vmatprep.subr.mxu0 0.0
        %2520 = vmatpush1.msra.mxu0 0.0
        %2521 = vmatprep.subr.mxu0 0.0
        %2522 = vmatpush1.msra.mxu0 0.0
        %2523 = vmatprep.subr.mxu0 0.0
        %2524 = vmatpush1.msra.mxu0 0.0
        %2525 = vmatprep.subr.mxu0 0.0
        %2526 = vmatpush1.msra.mxu0 0.0
        %2527 = vmatprep.subr.mxu0 0.0
        %2528 = vmatpush1.msra.mxu0 0.0
        %2529 = vmatprep.subr.mxu0 0.0
        %2530 = vmatpush1.msra.mxu0 0.0
        %2531 = vmatprep.subr.mxu0 0.0
        %2532 = vmatpush1.msra.mxu0 0.0
        %2533 = vmatprep.subr.mxu0 0.0
        %2534 = vmatpush1.msra.mxu0 0.0
        %2535 = vmatprep.subr.mxu0 0.0
        %2536 = vmatpush1.msra.mxu0 0.0
        %2537 = vmatprep.subr.mxu0 0.0
        %2538 = vmatpush1.msra.mxu0 0.0
        %2539 = vmatprep.subr.mxu0 0.0
        %2540 = vmatpush1.msra.mxu0 0.0
        %2541 = vmatprep.subr.mxu0 0.0
        %2542 = vmatpush1.msra.mxu0 0.0
        %2543 = vmatprep.subr.mxu0 0.0
        %2544 = vmatpush1.msra.mxu0 %v308
        %2545 = vmatprep.subr.mxu0 0.0
        %2546 = vmatpush2.msra.mxu0 0.0
        %2547 = vmatprep.subr.mxu0 0.0
        %2548 = vmatpush2.msra.mxu0 0.0
        %2549 = vmatprep.subr.mxu0 0.0
        %2550 = vmatpush2.msra.mxu0 0.0
        %2551 = vmatprep.subr.mxu0 0.0
        %2552 = vmatpush2.msra.mxu0 0.0
        %2553 = vmatprep.subr.mxu0 0.0
        %2554 = vmatpush2.msra.mxu0 0.0
        %2555 = vmatprep.subr.mxu0 0.0
        %2556 = vmatpush2.msra.mxu0 0.0
        %2557 = vmatprep.subr.mxu0 0.0
        %2558 = vmatpush2.msra.mxu0 0.0
        %2559 = vmatprep.subr.mxu0 0.0
        %2560 = vmatpush2.msra.mxu0 0.0
        %2561 = vmatprep.subr.mxu0 0.0
        %2562 = vmatpush2.msra.mxu0 0.0
        %2563 = vmatprep.subr.mxu0 0.0
        %2564 = vmatpush2.msra.mxu0 0.0
        %2565 = vmatprep.subr.mxu0 0.0
        %2566 = vmatpush2.msra.mxu0 0.0
        %2567 = vmatprep.subr.mxu0 0.0
        %2568 = vmatpush2.msra.mxu0 0.0
        %2569 = vmatprep.subr.mxu0 0.0
        %2570 = vmatpush2.msra.mxu0 0.0
        %2571 = vmatprep.subr.mxu0 0.0
        %2572 = vmatpush2.msra.mxu0 0.0
        %2573 = vmatprep.subr.mxu0 0.0
        %2574 = vmatpush2.msra.mxu0 0.0
        %2575 = vmatprep.subr.mxu0 0.0
        %2576 = vmatpush2.msra.mxu0 0.0
        %2577 = vmatprep.mubr.f32.mxu0 0.0
        %2578 = vmatmul.mubr.f32.gmra.mxu0 %v2508
        %v2579 = vpop.f32.mrf.mxu0
        %v2580 = vadd.f32 0.0, %v2579
        %v2581 = vpop.f32.mrf.mxu0
        %2582 = vmatprep.mubr.f32.mxu0 0.0
        %2583 = vmatmul.mubr.f32.gmra.mxu0 %v2511
        %v2584 = vpop.f32.mrf.mxu0
        %v2585 = vadd.f32 0.0, %v2584
        %v2586 = vpop.f32.mrf.mxu0
        %2587 = vdwg.mxu0
        %s2588 = scalar_lea.vmem %s305, 512
        %v2589 = vld [vmem:[%s2588] sm:$0xff]
        %v2590 = vld [vmem:[%s2588 + $0x8] sm:$0xff]
        %v2591 = vld [vmem:[%s2588 + $0x10] sm:$0xff]
        %v2592 = vld [vmem:[%s2588 + $0x18] sm:$0xff]
        %v2593 = vld [vmem:[%s2588 + $0x20] sm:$0xff]
        %v2594 = vld [vmem:[%s2588 + $0x28] sm:$0xff]
        %v2595 = vld [vmem:[%s2588 + $0x30] sm:$0xff]
        %v2596 = vld [vmem:[%s2588 + $0x38] sm:$0xff]
        %v2597 = vld [vmem:[%s2588 + $0x40] sm:$0xff]
        %v2598 = vld [vmem:[%s2588 + $0x48] sm:$0xff]
        %v2599 = vld [vmem:[%s2588 + $0x50] sm:$0xff]
        %v2600 = vld [vmem:[%s2588 + $0x58] sm:$0xff]
        %v2601 = vld [vmem:[%s2588 + $0x60] sm:$0xff]
        %v2602 = vld [vmem:[%s2588 + $0x68] sm:$0xff]
        %v2603 = vld [vmem:[%s2588 + $0x70] sm:$0xff]
        %v2604 = vld [vmem:[%s2588 + $0x78] sm:$0xff]
        %v2605 = vld [vmem:[%s2588 + $0x80] sm:$0xff]
        %v2606 = vld [vmem:[%s2588 + $0x88] sm:$0xff]
        %v2607 = vld [vmem:[%s2588 + $0x90] sm:$0xff]
        %v2608 = vld [vmem:[%s2588 + $0x98] sm:$0xff]
        %v2609 = vld [vmem:[%s2588 + $0xa0] sm:$0xff]
        %v2610 = vld [vmem:[%s2588 + $0xa8] sm:$0xff]
        %v2611 = vld [vmem:[%s2588 + $0xb0] sm:$0xff]
        %v2612 = vld [vmem:[%s2588 + $0xb8] sm:$0xff]
        %v2613 = vld [vmem:[%s2588 + $0xc0] sm:$0xff]
        %v2614 = vld [vmem:[%s2588 + $0xc8] sm:$0xff]
        %v2615 = vld [vmem:[%s2588 + $0xd0] sm:$0xff]
        %v2616 = vld [vmem:[%s2588 + $0xd8] sm:$0xff]
        %v2617 = vld [vmem:[%s2588 + $0xe0] sm:$0xff]
        %v2618 = vld [vmem:[%s2588 + $0xe8] sm:$0xff]
        %v2619 = vld [vmem:[%s2588 + $0xf0] sm:$0xff]
        %v2620 = vld [vmem:[%s2588 + $0xf8] sm:$0xff]
        %v2622 = vsel %vm318, %v2589, 0
        %v2625 = vsel %vm318, %v2590, 0
        %v2628 = vsel %vm318, %v2591, 0
        %v2631 = vsel %vm318, %v2592, 0
        %v2634 = vsel %vm318, %v2593, 0
        %v2637 = vsel %vm318, %v2594, 0
        %v2640 = vsel %vm318, %v2595, 0
        %v2643 = vsel %vm318, %v2596, 0
        %v2646 = vsel %vm318, %v2597, 0
        %v2649 = vsel %vm318, %v2598, 0
        %v2652 = vsel %vm318, %v2599, 0
        %v2655 = vsel %vm318, %v2600, 0
        %v2658 = vsel %vm318, %v2601, 0
        %v2661 = vsel %vm318, %v2602, 0
        %v2664 = vsel %vm318, %v2603, 0
        %v2667 = vsel %vm318, %v2604, 0
        %v2670 = vsel %vm318, %v2605, 0
        %v2673 = vsel %vm318, %v2606, 0
        %v2676 = vsel %vm318, %v2607, 0
        %v2679 = vsel %vm318, %v2608, 0
        %v2682 = vsel %vm318, %v2609, 0
        %v2685 = vsel %vm318, %v2610, 0
        %v2688 = vsel %vm318, %v2611, 0
        %v2691 = vsel %vm318, %v2612, 0
        %v2694 = vsel %vm318, %v2613, 0
        %v2697 = vsel %vm318, %v2614, 0
        %v2700 = vsel %vm318, %v2615, 0
        %v2703 = vsel %vm318, %v2616, 0
        %v2706 = vsel %vm318, %v2617, 0
        %v2709 = vsel %vm318, %v2618, 0
        %v2712 = vsel %vm318, %v2619, 0
        %v2715 = vsel %vm318, %v2620, 0
        %2717 = vmatprep.subr.mxu0 0.0
        %2718 = vmatpush1.msra.mxu0 0.0
        %2719 = vmatprep.subr.mxu0 0.0
        %2720 = vmatpush1.msra.mxu0 0.0
        %2721 = vmatprep.subr.mxu0 0.0
        %2722 = vmatpush1.msra.mxu0 0.0
        %2723 = vmatprep.subr.mxu0 0.0
        %2724 = vmatpush1.msra.mxu0 0.0
        %2725 = vmatprep.subr.mxu0 0.0
        %2726 = vmatpush1.msra.mxu0 0.0
        %2727 = vmatprep.subr.mxu0 0.0
        %2728 = vmatpush1.msra.mxu0 0.0
        %2729 = vmatprep.subr.mxu0 0.0
        %2730 = vmatpush1.msra.mxu0 0.0
        %2731 = vmatprep.subr.mxu0 0.0
        %2732 = vmatpush1.msra.mxu0 0.0
        %2733 = vmatprep.subr.mxu0 0.0
        %2734 = vmatpush1.msra.mxu0 0.0
        %2735 = vmatprep.subr.mxu0 0.0
        %2736 = vmatpush1.msra.mxu0 0.0
        %2737 = vmatprep.subr.mxu0 0.0
        %2738 = vmatpush1.msra.mxu0 0.0
        %2739 = vmatprep.subr.mxu0 0.0
        %2740 = vmatpush1.msra.mxu0 0.0
        %2741 = vmatprep.subr.mxu0 0.0
        %2742 = vmatpush1.msra.mxu0 0.0
        %2743 = vmatprep.subr.mxu0 0.0
        %2744 = vmatpush1.msra.mxu0 0.0
        %2745 = vmatprep.subr.mxu0 0.0
        %2746 = vmatpush1.msra.mxu0 0.0
        %2747 = vmatprep.subr.mxu0 0.0
        %2748 = vmatpush1.msra.mxu0 %v309
        %2749 = vmatprep.subr.mxu0 0.0
        %2750 = vmatpush2.msra.mxu0 0.0
        %2751 = vmatprep.subr.mxu0 0.0
        %2752 = vmatpush2.msra.mxu0 0.0
        %2753 = vmatprep.subr.mxu0 0.0
        %2754 = vmatpush2.msra.mxu0 0.0
        %2755 = vmatprep.subr.mxu0 0.0
        %2756 = vmatpush2.msra.mxu0 0.0
        %2757 = vmatprep.subr.mxu0 0.0
        %2758 = vmatpush2.msra.mxu0 0.0
        %2759 = vmatprep.subr.mxu0 0.0
        %2760 = vmatpush2.msra.mxu0 0.0
        %2761 = vmatprep.subr.mxu0 0.0
        %2762 = vmatpush2.msra.mxu0 0.0
        %2763 = vmatprep.subr.mxu0 0.0
        %2764 = vmatpush2.msra.mxu0 0.0
        %2765 = vmatprep.subr.mxu0 0.0
        %2766 = vmatpush2.msra.mxu0 0.0
        %2767 = vmatprep.subr.mxu0 0.0
        %2768 = vmatpush2.msra.mxu0 0.0
        %2769 = vmatprep.subr.mxu0 0.0
        %2770 = vmatpush2.msra.mxu0 0.0
        %2771 = vmatprep.subr.mxu0 0.0
        %2772 = vmatpush2.msra.mxu0 0.0
        %2773 = vmatprep.subr.mxu0 0.0
        %2774 = vmatpush2.msra.mxu0 0.0
        %2775 = vmatprep.subr.mxu0 0.0
        %2776 = vmatpush2.msra.mxu0 0.0
        %2777 = vmatprep.subr.mxu0 0.0
        %2778 = vmatpush2.msra.mxu0 0.0
        %2779 = vmatprep.subr.mxu0 0.0
        %2780 = vmatpush2.msra.mxu0 0.0
        %2781 = vmatprep.mubr.f32.mxu0 0.0
        %2782 = vmatmul.mubr.f32.gmra.mxu0 %v2622
        %v2783 = vpop.f32.mrf.mxu0
        %v2784 = vadd.f32 %v2580, %v2783
        %v2785 = vpop.f32.mrf.mxu0
        %2786 = vmatprep.mubr.f32.mxu0 0.0
        %2787 = vmatmul.mubr.f32.gmra.mxu0 %v2625
        %v2788 = vpop.f32.mrf.mxu0
        %v2789 = vadd.f32 %v2585, %v2788
        %v2790 = vpop.f32.mrf.mxu0
        %2791 = vmatprep.mubr.f32.mxu0 0.0
        %2792 = vmatmul.mubr.f32.gmra.mxu0 %v2628
        %v2793 = vpop.f32.mrf.mxu0
        %v2794 = vadd.f32 %v2580, %v2793
        %v2795 = vpop.f32.mrf.mxu0
        %2796 = vmatprep.mubr.f32.mxu0 0.0
        %2797 = vmatmul.mubr.f32.gmra.mxu0 %v2631
        %v2798 = vpop.f32.mrf.mxu0
        %v2799 = vadd.f32 %v2585, %v2798
        %v2800 = vpop.f32.mrf.mxu0
        %2801 = vmatprep.mubr.f32.mxu0 0.0
        %2802 = vmatmul.mubr.f32.gmra.mxu0 %v2634
        %v2803 = vpop.f32.mrf.mxu0
        %v2804 = vadd.f32 %v2580, %v2803
        %v2805 = vpop.f32.mrf.mxu0
        %2806 = vmatprep.mubr.f32.mxu0 0.0
        %2807 = vmatmul.mubr.f32.gmra.mxu0 %v2637
        %v2808 = vpop.f32.mrf.mxu0
        %v2809 = vadd.f32 %v2585, %v2808
        %v2810 = vpop.f32.mrf.mxu0
        %2811 = vmatprep.mubr.f32.mxu0 0.0
        %2812 = vmatmul.mubr.f32.gmra.mxu0 %v2640
        %v2813 = vpop.f32.mrf.mxu0
        %v2814 = vadd.f32 %v2580, %v2813
        %v2815 = vpop.f32.mrf.mxu0
        %2816 = vmatprep.mubr.f32.mxu0 0.0
        %2817 = vmatmul.mubr.f32.gmra.mxu0 %v2643
        %v2818 = vpop.f32.mrf.mxu0
        %v2819 = vadd.f32 %v2585, %v2818
        %v2820 = vpop.f32.mrf.mxu0
        %2821 = vmatprep.mubr.f32.mxu0 0.0
        %2822 = vmatmul.mubr.f32.gmra.mxu0 %v2646
        %v2823 = vpop.f32.mrf.mxu0
        %v2824 = vadd.f32 %v2580, %v2823
        %v2825 = vpop.f32.mrf.mxu0
        %2826 = vmatprep.mubr.f32.mxu0 0.0
        %2827 = vmatmul.mubr.f32.gmra.mxu0 %v2649
        %v2828 = vpop.f32.mrf.mxu0
        %v2829 = vadd.f32 %v2585, %v2828
        %v2830 = vpop.f32.mrf.mxu0
        %2831 = vmatprep.mubr.f32.mxu0 0.0
        %2832 = vmatmul.mubr.f32.gmra.mxu0 %v2652
        %v2833 = vpop.f32.mrf.mxu0
        %v2834 = vadd.f32 %v2580, %v2833
        %v2835 = vpop.f32.mrf.mxu0
        %2836 = vmatprep.mubr.f32.mxu0 0.0
        %2837 = vmatmul.mubr.f32.gmra.mxu0 %v2655
        %v2838 = vpop.f32.mrf.mxu0
        %v2839 = vadd.f32 %v2585, %v2838
        %v2840 = vpop.f32.mrf.mxu0
        %2841 = vmatprep.mubr.f32.mxu0 0.0
        %2842 = vmatmul.mubr.f32.gmra.mxu0 %v2658
        %v2843 = vpop.f32.mrf.mxu0
        %v2844 = vadd.f32 %v2580, %v2843
        %v2845 = vpop.f32.mrf.mxu0
        %2846 = vmatprep.mubr.f32.mxu0 0.0
        %2847 = vmatmul.mubr.f32.gmra.mxu0 %v2661
        %v2848 = vpop.f32.mrf.mxu0
        %v2849 = vadd.f32 %v2585, %v2848
        %v2850 = vpop.f32.mrf.mxu0
        %2851 = vmatprep.mubr.f32.mxu0 0.0
        %2852 = vmatmul.mubr.f32.gmra.mxu0 %v2664
        %v2853 = vpop.f32.mrf.mxu0
        %v2854 = vadd.f32 %v2580, %v2853
        %v2855 = vpop.f32.mrf.mxu0
        %2856 = vmatprep.mubr.f32.mxu0 0.0
        %2857 = vmatmul.mubr.f32.gmra.mxu0 %v2667
        %v2858 = vpop.f32.mrf.mxu0
        %v2859 = vadd.f32 %v2585, %v2858
        %v2860 = vpop.f32.mrf.mxu0
        %2861 = vmatprep.mubr.f32.mxu0 0.0
        %2862 = vmatmul.mubr.f32.gmra.mxu0 %v2670
        %v2863 = vpop.f32.mrf.mxu0
        %v2864 = vadd.f32 %v2580, %v2863
        %v2865 = vpop.f32.mrf.mxu0
        %2866 = vmatprep.mubr.f32.mxu0 0.0
        %2867 = vmatmul.mubr.f32.gmra.mxu0 %v2673
        %v2868 = vpop.f32.mrf.mxu0
        %v2869 = vadd.f32 %v2585, %v2868
        %v2870 = vpop.f32.mrf.mxu0
        %2871 = vmatprep.mubr.f32.mxu0 0.0
        %2872 = vmatmul.mubr.f32.gmra.mxu0 %v2676
        %v2873 = vpop.f32.mrf.mxu0
        %v2874 = vadd.f32 %v2580, %v2873
        %v2875 = vpop.f32.mrf.mxu0
        %2876 = vmatprep.mubr.f32.mxu0 0.0
        %2877 = vmatmul.mubr.f32.gmra.mxu0 %v2679
        %v2878 = vpop.f32.mrf.mxu0
        %v2879 = vadd.f32 %v2585, %v2878
        %v2880 = vpop.f32.mrf.mxu0
        %2881 = vmatprep.mubr.f32.mxu0 0.0
        %2882 = vmatmul.mubr.f32.gmra.mxu0 %v2682
        %v2883 = vpop.f32.mrf.mxu0
        %v2884 = vadd.f32 %v2580, %v2883
        %v2885 = vpop.f32.mrf.mxu0
        %2886 = vmatprep.mubr.f32.mxu0 0.0
        %2887 = vmatmul.mubr.f32.gmra.mxu0 %v2685
        %v2888 = vpop.f32.mrf.mxu0
        %v2889 = vadd.f32 %v2585, %v2888
        %v2890 = vpop.f32.mrf.mxu0
        %2891 = vmatprep.mubr.f32.mxu0 0.0
        %2892 = vmatmul.mubr.f32.gmra.mxu0 %v2688
        %v2893 = vpop.f32.mrf.mxu0
        %v2894 = vadd.f32 %v2580, %v2893
        %v2895 = vpop.f32.mrf.mxu0
        %2896 = vmatprep.mubr.f32.mxu0 0.0
        %2897 = vmatmul.mubr.f32.gmra.mxu0 %v2691
        %v2898 = vpop.f32.mrf.mxu0
        %v2899 = vadd.f32 %v2585, %v2898
        %v2900 = vpop.f32.mrf.mxu0
        %2901 = vmatprep.mubr.f32.mxu0 0.0
        %2902 = vmatmul.mubr.f32.gmra.mxu0 %v2694
        %v2903 = vpop.f32.mrf.mxu0
        %v2904 = vadd.f32 %v2580, %v2903
        %v2905 = vpop.f32.mrf.mxu0
        %2906 = vmatprep.mubr.f32.mxu0 0.0
        %2907 = vmatmul.mubr.f32.gmra.mxu0 %v2697
        %v2908 = vpop.f32.mrf.mxu0
        %v2909 = vadd.f32 %v2585, %v2908
        %v2910 = vpop.f32.mrf.mxu0
        %2911 = vmatprep.mubr.f32.mxu0 0.0
        %2912 = vmatmul.mubr.f32.gmra.mxu0 %v2700
        %v2913 = vpop.f32.mrf.mxu0
        %v2914 = vadd.f32 %v2580, %v2913
        %v2915 = vpop.f32.mrf.mxu0
        %2916 = vmatprep.mubr.f32.mxu0 0.0
        %2917 = vmatmul.mubr.f32.gmra.mxu0 %v2703
        %v2918 = vpop.f32.mrf.mxu0
        %v2919 = vadd.f32 %v2585, %v2918
        %v2920 = vpop.f32.mrf.mxu0
        %2921 = vmatprep.mubr.f32.mxu0 0.0
        %2922 = vmatmul.mubr.f32.gmra.mxu0 %v2706
        %v2923 = vpop.f32.mrf.mxu0
        %v2924 = vadd.f32 %v2580, %v2923
        %v2925 = vpop.f32.mrf.mxu0
        %2926 = vmatprep.mubr.f32.mxu0 0.0
        %2927 = vmatmul.mubr.f32.gmra.mxu0 %v2709
        %v2928 = vpop.f32.mrf.mxu0
        %v2929 = vadd.f32 %v2585, %v2928
        %v2930 = vpop.f32.mrf.mxu0
        %2931 = vmatprep.mubr.f32.mxu0 0.0
        %2932 = vmatmul.mubr.f32.gmra.mxu0 %v2712
        %v2933 = vpop.f32.mrf.mxu0
        %v2934 = vadd.f32 %v2580, %v2933
        %v2935 = vpop.f32.mrf.mxu0
        %2936 = vmatprep.mubr.f32.mxu0 0.0
        %2937 = vmatmul.mubr.f32.gmra.mxu0 %v2715
        %v2938 = vpop.f32.mrf.mxu0
        %v2939 = vadd.f32 %v2585, %v2938
        %v2940 = vpop.f32.mrf.mxu0
        %2941 = vdwg.mxu0
        %v2942 = vadd.f32 %v2784, %v757
        %v2943 = vadd.f32 %v2789, %v757
        %v2944 = vadd.f32 %v2794, %v757
        %v2945 = vadd.f32 %v2799, %v757
        %v2946 = vadd.f32 %v2804, %v757
        %v2947 = vadd.f32 %v2809, %v757
        %v2948 = vadd.f32 %v2814, %v757
        %v2949 = vadd.f32 %v2819, %v757
        %v2950 = vadd.f32 %v2824, %v757
        %v2951 = vadd.f32 %v2829, %v757
        %v2952 = vadd.f32 %v2834, %v757
        %v2953 = vadd.f32 %v2839, %v757
        %v2954 = vadd.f32 %v2844, %v757
        %v2955 = vadd.f32 %v2849, %v757
        %v2956 = vadd.f32 %v2854, %v757
        %v2957 = vadd.f32 %v2859, %v757
        %v2958 = vadd.f32 %v2864, %v757
        %v2959 = vadd.f32 %v2869, %v757
        %v2960 = vadd.f32 %v2874, %v757
        %v2961 = vadd.f32 %v2879, %v757
        %v2962 = vadd.f32 %v2884, %v757
        %v2963 = vadd.f32 %v2889, %v757
        %v2964 = vadd.f32 %v2894, %v757
        %v2965 = vadd.f32 %v2899, %v757
        %v2966 = vadd.f32 %v2904, %v757
        %v2967 = vadd.f32 %v2909, %v757
        %v2968 = vadd.f32 %v2914, %v757
        %v2969 = vadd.f32 %v2919, %v757
        %v2970 = vadd.f32 %v2924, %v757
        %v2971 = vadd.f32 %v2929, %v757
        %v2972 = vadd.f32 %v2934, %v757
        %v2973 = vadd.f32 %v2939, %v757
        %v2974 = vmax.f32 %v2942, 0.0
        %v2975 = vmax.f32 %v2943, 0.0
        %v2976 = vmax.f32 %v2944, 0.0
        %v2977 = vmax.f32 %v2945, 0.0
        %v2978 = vmax.f32 %v2946, 0.0
        %v2979 = vmax.f32 %v2947, 0.0
        %v2980 = vmax.f32 %v2948, 0.0
        %v2981 = vmax.f32 %v2949, 0.0
        %v2982 = vmax.f32 %v2950, 0.0
        %v2983 = vmax.f32 %v2951, 0.0
        %v2984 = vmax.f32 %v2952, 0.0
        %v2985 = vmax.f32 %v2953, 0.0
        %v2986 = vmax.f32 %v2954, 0.0
        %v2987 = vmax.f32 %v2955, 0.0
        %v2988 = vmax.f32 %v2956, 0.0
        %v2989 = vmax.f32 %v2957, 0.0
        %v2990 = vmax.f32 %v2958, 0.0
        %v2991 = vmax.f32 %v2959, 0.0
        %v2992 = vmax.f32 %v2960, 0.0
        %v2993 = vmax.f32 %v2961, 0.0
        %v2994 = vmax.f32 %v2962, 0.0
        %v2995 = vmax.f32 %v2963, 0.0
        %v2996 = vmax.f32 %v2964, 0.0
        %v2997 = vmax.f32 %v2965, 0.0
        %v2998 = vmax.f32 %v2966, 0.0
        %v2999 = vmax.f32 %v2967, 0.0
        %v3000 = vmax.f32 %v2968, 0.0
        %v3001 = vmax.f32 %v2969, 0.0
        %v3002 = vmax.f32 %v2970, 0.0
        %v3003 = vmax.f32 %v2971, 0.0
        %v3004 = vmax.f32 %v2972, 0.0
        %v3005 = vmax.f32 %v2973, 0.0
        %v3007 = vsel %vm829, %v2974, 0
        %v3010 = vsel %vm829, %v2975, 0
        %v3013 = vsel %vm829, %v2976, 0
        %v3016 = vsel %vm829, %v2977, 0
        %v3019 = vsel %vm829, %v2978, 0
        %v3022 = vsel %vm829, %v2979, 0
        %v3025 = vsel %vm829, %v2980, 0
        %v3028 = vsel %vm829, %v2981, 0
        %v3031 = vsel %vm829, %v2982, 0
        %v3034 = vsel %vm829, %v2983, 0
        %v3037 = vsel %vm829, %v2984, 0
        %v3040 = vsel %vm829, %v2985, 0
        %v3043 = vsel %vm829, %v2986, 0
        %v3046 = vsel %vm829, %v2987, 0
        %v3049 = vsel %vm829, %v2988, 0
        %v3052 = vsel %vm829, %v2989, 0
        %v3055 = vsel %vm829, %v2990, 0
        %v3058 = vsel %vm829, %v2991, 0
        %v3061 = vsel %vm829, %v2992, 0
        %v3064 = vsel %vm829, %v2993, 0
        %v3067 = vsel %vm829, %v2994, 0
        %v3070 = vsel %vm829, %v2995, 0
        %v3073 = vsel %vm829, %v2996, 0
        %v3076 = vsel %vm829, %v2997, 0
        %v3079 = vsel %vm829, %v2998, 0
        %v3082 = vsel %vm829, %v2999, 0
        %v3085 = vsel %vm829, %v3000, 0
        %v3088 = vsel %vm829, %v3001, 0
        %v3091 = vsel %vm829, %v3002, 0
        %v3094 = vsel %vm829, %v3003, 0
        %v3097 = vsel %vm829, %v3004, 0
        %v3100 = vsel %vm829, %v3005, 0
        %3102 = vmatprep.subr.mxu0 0.0
        %3103 = vmatpush1.msra.mxu0 0.0
        %3104 = vmatprep.subr.mxu0 0.0
        %3105 = vmatpush1.msra.mxu0 0.0
        %3106 = vmatprep.subr.mxu0 0.0
        %3107 = vmatpush1.msra.mxu0 0.0
        %3108 = vmatprep.subr.mxu0 0.0
        %3109 = vmatpush1.msra.mxu0 0.0
        %3110 = vmatprep.subr.mxu0 0.0
        %3111 = vmatpush1.msra.mxu0 0.0
        %3112 = vmatprep.subr.mxu0 0.0
        %3113 = vmatpush1.msra.mxu0 0.0
        %3114 = vmatprep.subr.mxu0 0.0
        %3115 = vmatpush1.msra.mxu0 0.0
        %3116 = vmatprep.subr.mxu0 0.0
        %3117 = vmatpush1.msra.mxu0 0.0
        %3118 = vmatprep.subr.mxu0 0.0
        %3119 = vmatpush1.msra.mxu0 0.0
        %3120 = vmatprep.subr.mxu0 0.0
        %3121 = vmatpush1.msra.mxu0 0.0
        %3122 = vmatprep.subr.mxu0 0.0
        %3123 = vmatpush1.msra.mxu0 0.0
        %3124 = vmatprep.subr.mxu0 0.0
        %3125 = vmatpush1.msra.mxu0 0.0
        %3126 = vmatprep.subr.mxu0 0.0
        %3127 = vmatpush1.msra.mxu0 %v313
        %3128 = vmatprep.subr.mxu0 0.0
        %3129 = vmatpush1.msra.mxu0 %v312
        %3130 = vmatprep.subr.mxu0 0.0
        %3131 = vmatpush1.msra.mxu0 %v311
        %3132 = vmatprep.subr.mxu0 0.0
        %3133 = vmatpush1.msra.mxu0 %v310
        %3134 = vmatprep.subr.mxu0 0.0
        %3135 = vmatpush2.msra.mxu0 0.0
        %3136 = vmatprep.subr.mxu0 0.0
        %3137 = vmatpush2.msra.mxu0 0.0
        %3138 = vmatprep.subr.mxu0 0.0
        %3139 = vmatpush2.msra.mxu0 0.0
        %3140 = vmatprep.subr.mxu0 0.0
        %3141 = vmatpush2.msra.mxu0 0.0
        %3142 = vmatprep.subr.mxu0 0.0
        %3143 = vmatpush2.msra.mxu0 0.0
        %3144 = vmatprep.subr.mxu0 0.0
        %3145 = vmatpush2.msra.mxu0 0.0
        %3146 = vmatprep.subr.mxu0 0.0
        %3147 = vmatpush2.msra.mxu0 0.0
        %3148 = vmatprep.subr.mxu0 0.0
        %3149 = vmatpush2.msra.mxu0 0.0
        %3150 = vmatprep.subr.mxu0 0.0
        %3151 = vmatpush2.msra.mxu0 0.0
        %3152 = vmatprep.subr.mxu0 0.0
        %3153 = vmatpush2.msra.mxu0 0.0
        %3154 = vmatprep.subr.mxu0 0.0
        %3155 = vmatpush2.msra.mxu0 0.0
        %3156 = vmatprep.subr.mxu0 0.0
        %3157 = vmatpush2.msra.mxu0 0.0
        %3158 = vmatprep.subr.mxu0 0.0
        %3159 = vmatpush2.msra.mxu0 0.0
        %3160 = vmatprep.subr.mxu0 0.0
        %3161 = vmatpush2.msra.mxu0 0.0
        %3162 = vmatprep.subr.mxu0 0.0
        %3163 = vmatpush2.msra.mxu0 0.0
        %3164 = vmatprep.subr.mxu0 0.0
        %3165 = vmatpush2.msra.mxu0 0.0
        %3166 = vmatprep.mubr.f32.mxu0 0.0
        %3167 = vmatmul.mubr.f32.gmra.mxu0 %v3007
        %v3168 = vpop.f32.mrf.mxu0
        %v3169 = vadd.f32 %v827, %v3168
        %v3170 = vpop.f32.mrf.mxu0
        %3171 = vmatprep.mubr.f32.mxu0 0.0
        %3172 = vmatmul.mubr.f32.gmra.mxu0 %v3010
        %v3173 = vpop.f32.mrf.mxu0
        %v3174 = vadd.f32 %v827, %v3173
        %v3175 = vpop.f32.mrf.mxu0
        %3176 = vmatprep.mubr.f32.mxu0 0.0
        %3177 = vmatmul.mubr.f32.gmra.mxu0 %v3013
        %v3178 = vpop.f32.mrf.mxu0
        %v3179 = vadd.f32 %v827, %v3178
        %v3180 = vpop.f32.mrf.mxu0
        %3181 = vmatprep.mubr.f32.mxu0 0.0
        %3182 = vmatmul.mubr.f32.gmra.mxu0 %v3016
        %v3183 = vpop.f32.mrf.mxu0
        %v3184 = vadd.f32 %v827, %v3183
        %v3185 = vpop.f32.mrf.mxu0
        %3186 = vmatprep.mubr.f32.mxu0 0.0
        %3187 = vmatmul.mubr.f32.gmra.mxu0 %v3019
        %v3188 = vpop.f32.mrf.mxu0
        %v3189 = vadd.f32 %v827, %v3188
        %v3190 = vpop.f32.mrf.mxu0
        %3191 = vmatprep.mubr.f32.mxu0 0.0
        %3192 = vmatmul.mubr.f32.gmra.mxu0 %v3022
        %v3193 = vpop.f32.mrf.mxu0
        %v3194 = vadd.f32 %v827, %v3193
        %v3195 = vpop.f32.mrf.mxu0
        %3196 = vmatprep.mubr.f32.mxu0 0.0
        %3197 = vmatmul.mubr.f32.gmra.mxu0 %v3025
        %v3198 = vpop.f32.mrf.mxu0
        %v3199 = vadd.f32 %v827, %v3198
        %v3200 = vpop.f32.mrf.mxu0
        %3201 = vmatprep.mubr.f32.mxu0 0.0
        %3202 = vmatmul.mubr.f32.gmra.mxu0 %v3028
        %v3203 = vpop.f32.mrf.mxu0
        %v3204 = vadd.f32 %v827, %v3203
        %v3205 = vpop.f32.mrf.mxu0
        %3206 = vmatprep.mubr.f32.mxu0 0.0
        %3207 = vmatmul.mubr.f32.gmra.mxu0 %v3031
        %v3208 = vpop.f32.mrf.mxu0
        %v3209 = vadd.f32 %v827, %v3208
        %v3210 = vpop.f32.mrf.mxu0
        %3211 = vmatprep.mubr.f32.mxu0 0.0
        %3212 = vmatmul.mubr.f32.gmra.mxu0 %v3034
        %v3213 = vpop.f32.mrf.mxu0
        %v3214 = vadd.f32 %v827, %v3213
        %v3215 = vpop.f32.mrf.mxu0
        %3216 = vmatprep.mubr.f32.mxu0 0.0
        %3217 = vmatmul.mubr.f32.gmra.mxu0 %v3037
        %v3218 = vpop.f32.mrf.mxu0
        %v3219 = vadd.f32 %v827, %v3218
        %v3220 = vpop.f32.mrf.mxu0
        %3221 = vmatprep.mubr.f32.mxu0 0.0
        %3222 = vmatmul.mubr.f32.gmra.mxu0 %v3040
        %v3223 = vpop.f32.mrf.mxu0
        %v3224 = vadd.f32 %v827, %v3223
        %v3225 = vpop.f32.mrf.mxu0
        %3226 = vmatprep.mubr.f32.mxu0 0.0
        %3227 = vmatmul.mubr.f32.gmra.mxu0 %v3043
        %v3228 = vpop.f32.mrf.mxu0
        %v3229 = vadd.f32 %v827, %v3228
        %v3230 = vpop.f32.mrf.mxu0
        %3231 = vmatprep.mubr.f32.mxu0 0.0
        %3232 = vmatmul.mubr.f32.gmra.mxu0 %v3046
        %v3233 = vpop.f32.mrf.mxu0
        %v3234 = vadd.f32 %v827, %v3233
        %v3235 = vpop.f32.mrf.mxu0
        %3236 = vmatprep.mubr.f32.mxu0 0.0
        %3237 = vmatmul.mubr.f32.gmra.mxu0 %v3049
        %v3238 = vpop.f32.mrf.mxu0
        %v3239 = vadd.f32 %v827, %v3238
        %v3240 = vpop.f32.mrf.mxu0
        %3241 = vmatprep.mubr.f32.mxu0 0.0
        %3242 = vmatmul.mubr.f32.gmra.mxu0 %v3052
        %v3243 = vpop.f32.mrf.mxu0
        %v3244 = vadd.f32 %v827, %v3243
        %v3245 = vpop.f32.mrf.mxu0
        %3246 = vmatprep.mubr.f32.mxu0 0.0
        %3247 = vmatmul.mubr.f32.gmra.mxu0 %v3055
        %v3248 = vpop.f32.mrf.mxu0
        %v3249 = vadd.f32 %v827, %v3248
        %v3250 = vpop.f32.mrf.mxu0
        %3251 = vmatprep.mubr.f32.mxu0 0.0
        %3252 = vmatmul.mubr.f32.gmra.mxu0 %v3058
        %v3253 = vpop.f32.mrf.mxu0
        %v3254 = vadd.f32 %v827, %v3253
        %v3255 = vpop.f32.mrf.mxu0
        %3256 = vmatprep.mubr.f32.mxu0 0.0
        %3257 = vmatmul.mubr.f32.gmra.mxu0 %v3061
        %v3258 = vpop.f32.mrf.mxu0
        %v3259 = vadd.f32 %v827, %v3258
        %v3260 = vpop.f32.mrf.mxu0
        %3261 = vmatprep.mubr.f32.mxu0 0.0
        %3262 = vmatmul.mubr.f32.gmra.mxu0 %v3064
        %v3263 = vpop.f32.mrf.mxu0
        %v3264 = vadd.f32 %v827, %v3263
        %v3265 = vpop.f32.mrf.mxu0
        %3266 = vmatprep.mubr.f32.mxu0 0.0
        %3267 = vmatmul.mubr.f32.gmra.mxu0 %v3067
        %v3268 = vpop.f32.mrf.mxu0
        %v3269 = vadd.f32 %v827, %v3268
        %v3270 = vpop.f32.mrf.mxu0
        %3271 = vmatprep.mubr.f32.mxu0 0.0
        %3272 = vmatmul.mubr.f32.gmra.mxu0 %v3070
        %v3273 = vpop.f32.mrf.mxu0
        %v3274 = vadd.f32 %v827, %v3273
        %v3275 = vpop.f32.mrf.mxu0
        %3276 = vmatprep.mubr.f32.mxu0 0.0
        %3277 = vmatmul.mubr.f32.gmra.mxu0 %v3073
        %v3278 = vpop.f32.mrf.mxu0
        %v3279 = vadd.f32 %v827, %v3278
        %v3280 = vpop.f32.mrf.mxu0
        %3281 = vmatprep.mubr.f32.mxu0 0.0
        %3282 = vmatmul.mubr.f32.gmra.mxu0 %v3076
        %v3283 = vpop.f32.mrf.mxu0
        %v3284 = vadd.f32 %v827, %v3283
        %v3285 = vpop.f32.mrf.mxu0
        %3286 = vmatprep.mubr.f32.mxu0 0.0
        %3287 = vmatmul.mubr.f32.gmra.mxu0 %v3079
        %v3288 = vpop.f32.mrf.mxu0
        %v3289 = vadd.f32 %v827, %v3288
        %v3290 = vpop.f32.mrf.mxu0
        %3291 = vmatprep.mubr.f32.mxu0 0.0
        %3292 = vmatmul.mubr.f32.gmra.mxu0 %v3082
        %v3293 = vpop.f32.mrf.mxu0
        %v3294 = vadd.f32 %v827, %v3293
        %v3295 = vpop.f32.mrf.mxu0
        %3296 = vmatprep.mubr.f32.mxu0 0.0
        %3297 = vmatmul.mubr.f32.gmra.mxu0 %v3085
        %v3298 = vpop.f32.mrf.mxu0
        %v3299 = vadd.f32 %v827, %v3298
        %v3300 = vpop.f32.mrf.mxu0
        %3301 = vmatprep.mubr.f32.mxu0 0.0
        %3302 = vmatmul.mubr.f32.gmra.mxu0 %v3088
        %v3303 = vpop.f32.mrf.mxu0
        %v3304 = vadd.f32 %v827, %v3303
        %v3305 = vpop.f32.mrf.mxu0
        %3306 = vmatprep.mubr.f32.mxu0 0.0
        %3307 = vmatmul.mubr.f32.gmra.mxu0 %v3091
        %v3308 = vpop.f32.mrf.mxu0
        %v3309 = vadd.f32 %v827, %v3308
        %v3310 = vpop.f32.mrf.mxu0
        %3311 = vmatprep.mubr.f32.mxu0 0.0
        %3312 = vmatmul.mubr.f32.gmra.mxu0 %v3094
        %v3313 = vpop.f32.mrf.mxu0
        %v3314 = vadd.f32 %v827, %v3313
        %v3315 = vpop.f32.mrf.mxu0
        %3316 = vmatprep.mubr.f32.mxu0 0.0
        %3317 = vmatmul.mubr.f32.gmra.mxu0 %v3097
        %v3318 = vpop.f32.mrf.mxu0
        %v3319 = vadd.f32 %v827, %v3318
        %v3320 = vpop.f32.mrf.mxu0
        %3321 = vmatprep.mubr.f32.mxu0 0.0
        %3322 = vmatmul.mubr.f32.gmra.mxu0 %v3100
        %v3323 = vpop.f32.mrf.mxu0
        %v3324 = vadd.f32 %v827, %v3323
        %v3325 = vpop.f32.mrf.mxu0
        %3326 = vdwg.mxu0
        %v3327 = vxor.u32 %v3169, 2147483648
        %v3328 = vxor.u32 %v3174, 2147483648
        %v3329 = vxor.u32 %v3179, 2147483648
        %v3330 = vxor.u32 %v3184, 2147483648
        %v3331 = vxor.u32 %v3189, 2147483648
        %v3332 = vxor.u32 %v3194, 2147483648
        %v3333 = vxor.u32 %v3199, 2147483648
        %v3334 = vxor.u32 %v3204, 2147483648
        %v3335 = vxor.u32 %v3209, 2147483648
        %v3336 = vxor.u32 %v3214, 2147483648
        %v3337 = vxor.u32 %v3219, 2147483648
        %v3338 = vxor.u32 %v3224, 2147483648
        %v3339 = vxor.u32 %v3229, 2147483648
        %v3340 = vxor.u32 %v3234, 2147483648
        %v3341 = vxor.u32 %v3239, 2147483648
        %v3342 = vxor.u32 %v3244, 2147483648
        %v3343 = vxor.u32 %v3249, 2147483648
        %v3344 = vxor.u32 %v3254, 2147483648
        %v3345 = vxor.u32 %v3259, 2147483648
        %v3346 = vxor.u32 %v3264, 2147483648
        %v3347 = vxor.u32 %v3269, 2147483648
        %v3348 = vxor.u32 %v3274, 2147483648
        %v3349 = vxor.u32 %v3279, 2147483648
        %v3350 = vxor.u32 %v3284, 2147483648
        %v3351 = vxor.u32 %v3289, 2147483648
        %v3352 = vxor.u32 %v3294, 2147483648
        %v3353 = vxor.u32 %v3299, 2147483648
        %v3354 = vxor.u32 %v3304, 2147483648
        %v3355 = vxor.u32 %v3309, 2147483648
        %v3356 = vxor.u32 %v3314, 2147483648
        %v3357 = vxor.u32 %v3319, 2147483648
        %v3358 = vxor.u32 %v3324, 2147483648
        %v3359 = vmul.f32 %v3327, 1.442695
        %v3360 = vpow.pop %v3359
        %v3361 = vmul.f32 %v3328, 1.442695
        %v3362 = vpow.pop %v3361
        %v3363 = vmul.f32 %v3329, 1.442695
        %v3364 = vpow.pop %v3363
        %v3365 = vmul.f32 %v3330, 1.442695
        %v3366 = vpow.pop %v3365
        %v3367 = vmul.f32 %v3331, 1.442695
        %v3368 = vpow.pop %v3367
        %v3369 = vmul.f32 %v3332, 1.442695
        %v3370 = vpow.pop %v3369
        %v3371 = vmul.f32 %v3333, 1.442695
        %v3372 = vpow.pop %v3371
        %v3373 = vmul.f32 %v3334, 1.442695
        %v3374 = vpow.pop %v3373
        %v3375 = vmul.f32 %v3335, 1.442695
        %v3376 = vpow.pop %v3375
        %v3377 = vmul.f32 %v3336, 1.442695
        %v3378 = vpow.pop %v3377
        %v3379 = vmul.f32 %v3337, 1.442695
        %v3380 = vpow.pop %v3379
        %v3381 = vmul.f32 %v3338, 1.442695
        %v3382 = vpow.pop %v3381
        %v3383 = vmul.f32 %v3339, 1.442695
        %v3384 = vpow.pop %v3383
        %v3385 = vmul.f32 %v3340, 1.442695
        %v3386 = vpow.pop %v3385
        %v3387 = vmul.f32 %v3341, 1.442695
        %v3388 = vpow.pop %v3387
        %v3389 = vmul.f32 %v3342, 1.442695
        %v3390 = vpow.pop %v3389
        %v3391 = vmul.f32 %v3343, 1.442695
        %v3392 = vpow.pop %v3391
        %v3393 = vmul.f32 %v3344, 1.442695
        %v3394 = vpow.pop %v3393
        %v3395 = vmul.f32 %v3345, 1.442695
        %v3396 = vpow.pop %v3395
        %v3397 = vmul.f32 %v3346, 1.442695
        %v3398 = vpow.pop %v3397
        %v3399 = vmul.f32 %v3347, 1.442695
        %v3400 = vpow.pop %v3399
        %v3401 = vmul.f32 %v3348, 1.442695
        %v3402 = vpow.pop %v3401
        %v3403 = vmul.f32 %v3349, 1.442695
        %v3404 = vpow.pop %v3403
        %v3405 = vmul.f32 %v3350, 1.442695
        %v3406 = vpow.pop %v3405
        %v3407 = vmul.f32 %v3351, 1.442695
        %v3408 = vpow.pop %v3407
        %v3409 = vmul.f32 %v3352, 1.442695
        %v3410 = vpow.pop %v3409
        %v3411 = vmul.f32 %v3353, 1.442695
        %v3412 = vpow.pop %v3411
        %v3413 = vmul.f32 %v3354, 1.442695
        %v3414 = vpow.pop %v3413
        %v3415 = vmul.f32 %v3355, 1.442695
        %v3416 = vpow.pop %v3415
        %v3417 = vmul.f32 %v3356, 1.442695
        %v3418 = vpow.pop %v3417
        %v3419 = vmul.f32 %v3357, 1.442695
        %v3420 = vpow.pop %v3419
        %v3421 = vmul.f32 %v3358, 1.442695
        %v3422 = vpow.pop %v3421
        %v3423 = vadd.f32 %v3360, 1.0
        %v3424 = vadd.f32 %v3362, 1.0
        %v3425 = vadd.f32 %v3364, 1.0
        %v3426 = vadd.f32 %v3366, 1.0
        %v3427 = vadd.f32 %v3368, 1.0
        %v3428 = vadd.f32 %v3370, 1.0
        %v3429 = vadd.f32 %v3372, 1.0
        %v3430 = vadd.f32 %v3374, 1.0
        %v3431 = vadd.f32 %v3376, 1.0
        %v3432 = vadd.f32 %v3378, 1.0
        %v3433 = vadd.f32 %v3380, 1.0
        %v3434 = vadd.f32 %v3382, 1.0
        %v3435 = vadd.f32 %v3384, 1.0
        %v3436 = vadd.f32 %v3386, 1.0
        %v3437 = vadd.f32 %v3388, 1.0
        %v3438 = vadd.f32 %v3390, 1.0
        %v3439 = vadd.f32 %v3392, 1.0
        %v3440 = vadd.f32 %v3394, 1.0
        %v3441 = vadd.f32 %v3396, 1.0
        %v3442 = vadd.f32 %v3398, 1.0
        %v3443 = vadd.f32 %v3400, 1.0
        %v3444 = vadd.f32 %v3402, 1.0
        %v3445 = vadd.f32 %v3404, 1.0
        %v3446 = vadd.f32 %v3406, 1.0
        %v3447 = vadd.f32 %v3408, 1.0
        %v3448 = vadd.f32 %v3410, 1.0
        %v3449 = vadd.f32 %v3412, 1.0
        %v3450 = vadd.f32 %v3414, 1.0
        %v3451 = vadd.f32 %v3416, 1.0
        %v3452 = vadd.f32 %v3418, 1.0
        %v3453 = vadd.f32 %v3420, 1.0
        %v3454 = vadd.f32 %v3422, 1.0
        %v3455 = vrcp.pop %v3423
        %v3456 = vmul.f32 1.0, %v3455
        %v3457 = vrcp.pop %v3424
        %v3458 = vmul.f32 1.0, %v3457
        %v3459 = vrcp.pop %v3425
        %v3460 = vmul.f32 1.0, %v3459
        %v3461 = vrcp.pop %v3426
        %v3462 = vmul.f32 1.0, %v3461
        %v3463 = vrcp.pop %v3427
        %v3464 = vmul.f32 1.0, %v3463
        %v3465 = vrcp.pop %v3428
        %v3466 = vmul.f32 1.0, %v3465
        %v3467 = vrcp.pop %v3429
        %v3468 = vmul.f32 1.0, %v3467
        %v3469 = vrcp.pop %v3430
        %v3470 = vmul.f32 1.0, %v3469
        %v3471 = vrcp.pop %v3431
        %v3472 = vmul.f32 1.0, %v3471
        %v3473 = vrcp.pop %v3432
        %v3474 = vmul.f32 1.0, %v3473
        %v3475 = vrcp.pop %v3433
        %v3476 = vmul.f32 1.0, %v3475
        %v3477 = vrcp.pop %v3434
        %v3478 = vmul.f32 1.0, %v3477
        %v3479 = vrcp.pop %v3435
        %v3480 = vmul.f32 1.0, %v3479
        %v3481 = vrcp.pop %v3436
        %v3482 = vmul.f32 1.0, %v3481
        %v3483 = vrcp.pop %v3437
        %v3484 = vmul.f32 1.0, %v3483
        %v3485 = vrcp.pop %v3438
        %v3486 = vmul.f32 1.0, %v3485
        %v3487 = vrcp.pop %v3439
        %v3488 = vmul.f32 1.0, %v3487
        %v3489 = vrcp.pop %v3440
        %v3490 = vmul.f32 1.0, %v3489
        %v3491 = vrcp.pop %v3441
        %v3492 = vmul.f32 1.0, %v3491
        %v3493 = vrcp.pop %v3442
        %v3494 = vmul.f32 1.0, %v3493
        %v3495 = vrcp.pop %v3443
        %v3496 = vmul.f32 1.0, %v3495
        %v3497 = vrcp.pop %v3444
        %v3498 = vmul.f32 1.0, %v3497
        %v3499 = vrcp.pop %v3445
        %v3500 = vmul.f32 1.0, %v3499
        %v3501 = vrcp.pop %v3446
        %v3502 = vmul.f32 1.0, %v3501
        %v3503 = vrcp.pop %v3447
        %v3504 = vmul.f32 1.0, %v3503
        %v3505 = vrcp.pop %v3448
        %v3506 = vmul.f32 1.0, %v3505
        %v3507 = vrcp.pop %v3449
        %v3508 = vmul.f32 1.0, %v3507
        %v3509 = vrcp.pop %v3450
        %v3510 = vmul.f32 1.0, %v3509
        %v3511 = vrcp.pop %v3451
        %v3512 = vmul.f32 1.0, %v3511
        %v3513 = vrcp.pop %v3452
        %v3514 = vmul.f32 1.0, %v3513
        %v3515 = vrcp.pop %v3453
        %v3516 = vmul.f32 1.0, %v3515
        %v3517 = vrcp.pop %v3454
        %v3518 = vmul.f32 1.0, %v3517
        %v3519 = vsel %vm1343, %v3456, 0.0
        %v3520 = vsel %vm1343, %v3458, 0.0
        %v3521 = vadd.f32 %v3519, %v3520
        %v3522 = vsel %vm1343, %v3460, 0.0
        %v3523 = vadd.f32 %v3521, %v3522
        %v3524 = vsel %vm1343, %v3462, 0.0
        %v3525 = vadd.f32 %v3523, %v3524
        %v3526 = vsel %vm1343, %v3464, 0.0
        %v3527 = vadd.f32 %v3525, %v3526
        %v3528 = vsel %vm1343, %v3466, 0.0
        %v3529 = vadd.f32 %v3527, %v3528
        %v3530 = vsel %vm1343, %v3468, 0.0
        %v3531 = vadd.f32 %v3529, %v3530
        %v3532 = vsel %vm1343, %v3470, 0.0
        %v3533 = vadd.f32 %v3531, %v3532
        %v3534 = vsel %vm1343, %v3472, 0.0
        %v3535 = vadd.f32 %v3533, %v3534
        %v3536 = vsel %vm1343, %v3474, 0.0
        %v3537 = vadd.f32 %v3535, %v3536
        %v3538 = vsel %vm1343, %v3476, 0.0
        %v3539 = vadd.f32 %v3537, %v3538
        %v3540 = vsel %vm1343, %v3478, 0.0
        %v3541 = vadd.f32 %v3539, %v3540
        %v3542 = vsel %vm1343, %v3480, 0.0
        %v3543 = vadd.f32 %v3541, %v3542
        %v3544 = vsel %vm1343, %v3482, 0.0
        %v3545 = vadd.f32 %v3543, %v3544
        %v3546 = vsel %vm1343, %v3484, 0.0
        %v3547 = vadd.f32 %v3545, %v3546
        %v3548 = vsel %vm1343, %v3486, 0.0
        %v3549 = vadd.f32 %v3547, %v3548
        %v3550 = vsel %vm1343, %v3488, 0.0
        %v3551 = vadd.f32 %v3549, %v3550
        %v3552 = vsel %vm1343, %v3490, 0.0
        %v3553 = vadd.f32 %v3551, %v3552
        %v3554 = vsel %vm1343, %v3492, 0.0
        %v3555 = vadd.f32 %v3553, %v3554
        %v3556 = vsel %vm1343, %v3494, 0.0
        %v3557 = vadd.f32 %v3555, %v3556
        %v3558 = vsel %vm1343, %v3496, 0.0
        %v3559 = vadd.f32 %v3557, %v3558
        %v3560 = vsel %vm1343, %v3498, 0.0
        %v3561 = vadd.f32 %v3559, %v3560
        %v3562 = vsel %vm1343, %v3500, 0.0
        %v3563 = vadd.f32 %v3561, %v3562
        %v3564 = vsel %vm1343, %v3502, 0.0
        %v3565 = vadd.f32 %v3563, %v3564
        %v3566 = vsel %vm1343, %v3504, 0.0
        %v3567 = vadd.f32 %v3565, %v3566
        %v3568 = vsel %vm1343, %v3506, 0.0
        %v3569 = vadd.f32 %v3567, %v3568
        %v3570 = vsel %vm1343, %v3508, 0.0
        %v3571 = vadd.f32 %v3569, %v3570
        %v3572 = vsel %vm1343, %v3510, 0.0
        %v3573 = vadd.f32 %v3571, %v3572
        %v3574 = vsel %vm1343, %v3512, 0.0
        %v3575 = vadd.f32 %v3573, %v3574
        %v3576 = vsel %vm1343, %v3514, 0.0
        %v3577 = vadd.f32 %v3575, %v3576
        %v3578 = vsel %vm1343, %v3516, 0.0
        %v3579 = vadd.f32 %v3577, %v3578
        %v3580 = vsel %vm1343, %v3518, 0.0
        %v3581 = vadd.f32 %v3579, %v3580
        %v3582 = vrot.slane %v3581, 4
        %v3583 = vadd.f32 %v3581, %v3582
        %v3584 = vrot.slane %v3583, 2
        %v3585 = vadd.f32 %v3583, %v3584
        %v3586 = vrot.slane %v3585, 1
        %v3587 = vadd.f32 %v3585, %v3586
        %v3588 = vmul.f32 %v3587, %v1413
        %s3589 = scalar_lea.vmem %s292, 2 [#allocation2]
        %3590 = vst.msk [vmem:[%s3589] sm:$0x1] %vm1415, %v3588
        %s3591 = scalar_lea.vmem %s298, 48
        %v3592 = vld [vmem:[%s3591] sm:$0xff]
        %v3593 = vld [vmem:[%s3591 + $0x8] sm:$0xff]
        %v3595 = vsel %vm318, %v3592, 0
        %v3598 = vsel %vm318, %v3593, 0
        %3600 = vmatprep.subr.mxu0 0.0
        %3601 = vmatpush1.msra.mxu0 0.0
        %3602 = vmatprep.subr.mxu0 0.0
        %3603 = vmatpush1.msra.mxu0 0.0
        %3604 = vmatprep.subr.mxu0 0.0
        %3605 = vmatpush1.msra.mxu0 0.0
        %3606 = vmatprep.subr.mxu0 0.0
        %3607 = vmatpush1.msra.mxu0 0.0
        %3608 = vmatprep.subr.mxu0 0.0
        %3609 = vmatpush1.msra.mxu0 0.0
        %3610 = vmatprep.subr.mxu0 0.0
        %3611 = vmatpush1.msra.mxu0 0.0
        %3612 = vmatprep.subr.mxu0 0.0
        %3613 = vmatpush1.msra.mxu0 0.0
        %3614 = vmatprep.subr.mxu0 0.0
        %3615 = vmatpush1.msra.mxu0 0.0
        %3616 = vmatprep.subr.mxu0 0.0
        %3617 = vmatpush1.msra.mxu0 0.0
        %3618 = vmatprep.subr.mxu0 0.0
        %3619 = vmatpush1.msra.mxu0 0.0
        %3620 = vmatprep.subr.mxu0 0.0
        %3621 = vmatpush1.msra.mxu0 0.0
        %3622 = vmatprep.subr.mxu0 0.0
        %3623 = vmatpush1.msra.mxu0 0.0
        %3624 = vmatprep.subr.mxu0 0.0
        %3625 = vmatpush1.msra.mxu0 0.0
        %3626 = vmatprep.subr.mxu0 0.0
        %3627 = vmatpush1.msra.mxu0 0.0
        %3628 = vmatprep.subr.mxu0 0.0
        %3629 = vmatpush1.msra.mxu0 0.0
        %3630 = vmatprep.subr.mxu0 0.0
        %3631 = vmatpush1.msra.mxu0 %v308
        %3632 = vmatprep.subr.mxu0 0.0
        %3633 = vmatpush2.msra.mxu0 0.0
        %3634 = vmatprep.subr.mxu0 0.0
        %3635 = vmatpush2.msra.mxu0 0.0
        %3636 = vmatprep.subr.mxu0 0.0
        %3637 = vmatpush2.msra.mxu0 0.0
        %3638 = vmatprep.subr.mxu0 0.0
        %3639 = vmatpush2.msra.mxu0 0.0
        %3640 = vmatprep.subr.mxu0 0.0
        %3641 = vmatpush2.msra.mxu0 0.0
        %3642 = vmatprep.subr.mxu0 0.0
        %3643 = vmatpush2.msra.mxu0 0.0
        %3644 = vmatprep.subr.mxu0 0.0
        %3645 = vmatpush2.msra.mxu0 0.0
        %3646 = vmatprep.subr.mxu0 0.0
        %3647 = vmatpush2.msra.mxu0 0.0
        %3648 = vmatprep.subr.mxu0 0.0
        %3649 = vmatpush2.msra.mxu0 0.0
        %3650 = vmatprep.subr.mxu0 0.0
        %3651 = vmatpush2.msra.mxu0 0.0
        %3652 = vmatprep.subr.mxu0 0.0
        %3653 = vmatpush2.msra.mxu0 0.0
        %3654 = vmatprep.subr.mxu0 0.0
        %3655 = vmatpush2.msra.mxu0 0.0
        %3656 = vmatprep.subr.mxu0 0.0
        %3657 = vmatpush2.msra.mxu0 0.0
        %3658 = vmatprep.subr.mxu0 0.0
        %3659 = vmatpush2.msra.mxu0 0.0
        %3660 = vmatprep.subr.mxu0 0.0
        %3661 = vmatpush2.msra.mxu0 0.0
        %3662 = vmatprep.subr.mxu0 0.0
        %3663 = vmatpush2.msra.mxu0 0.0
        %3664 = vmatprep.mubr.f32.mxu0 0.0
        %3665 = vmatmul.mubr.f32.gmra.mxu0 %v3595
        %v3666 = vpop.f32.mrf.mxu0
        %v3667 = vadd.f32 0.0, %v3666
        %v3668 = vpop.f32.mrf.mxu0
        %3669 = vmatprep.mubr.f32.mxu0 0.0
        %3670 = vmatmul.mubr.f32.gmra.mxu0 %v3598
        %v3671 = vpop.f32.mrf.mxu0
        %v3672 = vadd.f32 0.0, %v3671
        %v3673 = vpop.f32.mrf.mxu0
        %3674 = vdwg.mxu0
        %s3675 = scalar_lea.vmem %s305, 768
        %v3676 = vld [vmem:[%s3675] sm:$0xff]
        %v3677 = vld [vmem:[%s3675 + $0x8] sm:$0xff]
        %v3678 = vld [vmem:[%s3675 + $0x10] sm:$0xff]
        %v3679 = vld [vmem:[%s3675 + $0x18] sm:$0xff]
        %v3680 = vld [vmem:[%s3675 + $0x20] sm:$0xff]
        %v3681 = vld [vmem:[%s3675 + $0x28] sm:$0xff]
        %v3682 = vld [vmem:[%s3675 + $0x30] sm:$0xff]
        %v3683 = vld [vmem:[%s3675 + $0x38] sm:$0xff]
        %v3684 = vld [vmem:[%s3675 + $0x40] sm:$0xff]
        %v3685 = vld [vmem:[%s3675 + $0x48] sm:$0xff]
        %v3686 = vld [vmem:[%s3675 + $0x50] sm:$0xff]
        %v3687 = vld [vmem:[%s3675 + $0x58] sm:$0xff]
        %v3688 = vld [vmem:[%s3675 + $0x60] sm:$0xff]
        %v3689 = vld [vmem:[%s3675 + $0x68] sm:$0xff]
        %v3690 = vld [vmem:[%s3675 + $0x70] sm:$0xff]
        %v3691 = vld [vmem:[%s3675 + $0x78] sm:$0xff]
        %v3692 = vld [vmem:[%s3675 + $0x80] sm:$0xff]
        %v3693 = vld [vmem:[%s3675 + $0x88] sm:$0xff]
        %v3694 = vld [vmem:[%s3675 + $0x90] sm:$0xff]
        %v3695 = vld [vmem:[%s3675 + $0x98] sm:$0xff]
        %v3696 = vld [vmem:[%s3675 + $0xa0] sm:$0xff]
        %v3697 = vld [vmem:[%s3675 + $0xa8] sm:$0xff]
        %v3698 = vld [vmem:[%s3675 + $0xb0] sm:$0xff]
        %v3699 = vld [vmem:[%s3675 + $0xb8] sm:$0xff]
        %v3700 = vld [vmem:[%s3675 + $0xc0] sm:$0xff]
        %v3701 = vld [vmem:[%s3675 + $0xc8] sm:$0xff]
        %v3702 = vld [vmem:[%s3675 + $0xd0] sm:$0xff]
        %v3703 = vld [vmem:[%s3675 + $0xd8] sm:$0xff]
        %v3704 = vld [vmem:[%s3675 + $0xe0] sm:$0xff]
        %v3705 = vld [vmem:[%s3675 + $0xe8] sm:$0xff]
        %v3706 = vld [vmem:[%s3675 + $0xf0] sm:$0xff]
        %v3707 = vld [vmem:[%s3675 + $0xf8] sm:$0xff]
        %v3709 = vsel %vm318, %v3676, 0
        %v3712 = vsel %vm318, %v3677, 0
        %v3715 = vsel %vm318, %v3678, 0
        %v3718 = vsel %vm318, %v3679, 0
        %v3721 = vsel %vm318, %v3680, 0
        %v3724 = vsel %vm318, %v3681, 0
        %v3727 = vsel %vm318, %v3682, 0
        %v3730 = vsel %vm318, %v3683, 0
        %v3733 = vsel %vm318, %v3684, 0
        %v3736 = vsel %vm318, %v3685, 0
        %v3739 = vsel %vm318, %v3686, 0
        %v3742 = vsel %vm318, %v3687, 0
        %v3745 = vsel %vm318, %v3688, 0
        %v3748 = vsel %vm318, %v3689, 0
        %v3751 = vsel %vm318, %v3690, 0
        %v3754 = vsel %vm318, %v3691, 0
        %v3757 = vsel %vm318, %v3692, 0
        %v3760 = vsel %vm318, %v3693, 0
        %v3763 = vsel %vm318, %v3694, 0
        %v3766 = vsel %vm318, %v3695, 0
        %v3769 = vsel %vm318, %v3696, 0
        %v3772 = vsel %vm318, %v3697, 0
        %v3775 = vsel %vm318, %v3698, 0
        %v3778 = vsel %vm318, %v3699, 0
        %v3781 = vsel %vm318, %v3700, 0
        %v3784 = vsel %vm318, %v3701, 0
        %v3787 = vsel %vm318, %v3702, 0
        %v3790 = vsel %vm318, %v3703, 0
        %v3793 = vsel %vm318, %v3704, 0
        %v3796 = vsel %vm318, %v3705, 0
        %v3799 = vsel %vm318, %v3706, 0
        %v3802 = vsel %vm318, %v3707, 0
        %3804 = vmatprep.subr.mxu0 0.0
        %3805 = vmatpush1.msra.mxu0 0.0
        %3806 = vmatprep.subr.mxu0 0.0
        %3807 = vmatpush1.msra.mxu0 0.0
        %3808 = vmatprep.subr.mxu0 0.0
        %3809 = vmatpush1.msra.mxu0 0.0
        %3810 = vmatprep.subr.mxu0 0.0
        %3811 = vmatpush1.msra.mxu0 0.0
        %3812 = vmatprep.subr.mxu0 0.0
        %3813 = vmatpush1.msra.mxu0 0.0
        %3814 = vmatprep.subr.mxu0 0.0
        %3815 = vmatpush1.msra.mxu0 0.0
        %3816 = vmatprep.subr.mxu0 0.0
        %3817 = vmatpush1.msra.mxu0 0.0
        %3818 = vmatprep.subr.mxu0 0.0
        %3819 = vmatpush1.msra.mxu0 0.0
        %3820 = vmatprep.subr.mxu0 0.0
        %3821 = vmatpush1.msra.mxu0 0.0
        %3822 = vmatprep.subr.mxu0 0.0
        %3823 = vmatpush1.msra.mxu0 0.0
        %3824 = vmatprep.subr.mxu0 0.0
        %3825 = vmatpush1.msra.mxu0 0.0
        %3826 = vmatprep.subr.mxu0 0.0
        %3827 = vmatpush1.msra.mxu0 0.0
        %3828 = vmatprep.subr.mxu0 0.0
        %3829 = vmatpush1.msra.mxu0 0.0
        %3830 = vmatprep.subr.mxu0 0.0
        %3831 = vmatpush1.msra.mxu0 0.0
        %3832 = vmatprep.subr.mxu0 0.0
        %3833 = vmatpush1.msra.mxu0 0.0
        %3834 = vmatprep.subr.mxu0 0.0
        %3835 = vmatpush1.msra.mxu0 %v309
        %3836 = vmatprep.subr.mxu0 0.0
        %3837 = vmatpush2.msra.mxu0 0.0
        %3838 = vmatprep.subr.mxu0 0.0
        %3839 = vmatpush2.msra.mxu0 0.0
        %3840 = vmatprep.subr.mxu0 0.0
        %3841 = vmatpush2.msra.mxu0 0.0
        %3842 = vmatprep.subr.mxu0 0.0
        %3843 = vmatpush2.msra.mxu0 0.0
        %3844 = vmatprep.subr.mxu0 0.0
        %3845 = vmatpush2.msra.mxu0 0.0
        %3846 = vmatprep.subr.mxu0 0.0
        %3847 = vmatpush2.msra.mxu0 0.0
        %3848 = vmatprep.subr.mxu0 0.0
        %3849 = vmatpush2.msra.mxu0 0.0
        %3850 = vmatprep.subr.mxu0 0.0
        %3851 = vmatpush2.msra.mxu0 0.0
        %3852 = vmatprep.subr.mxu0 0.0
        %3853 = vmatpush2.msra.mxu0 0.0
        %3854 = vmatprep.subr.mxu0 0.0
        %3855 = vmatpush2.msra.mxu0 0.0
        %3856 = vmatprep.subr.mxu0 0.0
        %3857 = vmatpush2.msra.mxu0 0.0
        %3858 = vmatprep.subr.mxu0 0.0
        %3859 = vmatpush2.msra.mxu0 0.0
        %3860 = vmatprep.subr.mxu0 0.0
        %3861 = vmatpush2.msra.mxu0 0.0
        %3862 = vmatprep.subr.mxu0 0.0
        %3863 = vmatpush2.msra.mxu0 0.0
        %3864 = vmatprep.subr.mxu0 0.0
        %3865 = vmatpush2.msra.mxu0 0.0
        %3866 = vmatprep.subr.mxu0 0.0
        %3867 = vmatpush2.msra.mxu0 0.0
        %3868 = vmatprep.mubr.f32.mxu0 0.0
        %3869 = vmatmul.mubr.f32.gmra.mxu0 %v3709
        %v3870 = vpop.f32.mrf.mxu0
        %v3871 = vadd.f32 %v3667, %v3870
        %v3872 = vpop.f32.mrf.mxu0
        %3873 = vmatprep.mubr.f32.mxu0 0.0
        %3874 = vmatmul.mubr.f32.gmra.mxu0 %v3712
        %v3875 = vpop.f32.mrf.mxu0
        %v3876 = vadd.f32 %v3672, %v3875
        %v3877 = vpop.f32.mrf.mxu0
        %3878 = vmatprep.mubr.f32.mxu0 0.0
        %3879 = vmatmul.mubr.f32.gmra.mxu0 %v3715
        %v3880 = vpop.f32.mrf.mxu0
        %v3881 = vadd.f32 %v3667, %v3880
        %v3882 = vpop.f32.mrf.mxu0
        %3883 = vmatprep.mubr.f32.mxu0 0.0
        %3884 = vmatmul.mubr.f32.gmra.mxu0 %v3718
        %v3885 = vpop.f32.mrf.mxu0
        %v3886 = vadd.f32 %v3672, %v3885
        %v3887 = vpop.f32.mrf.mxu0
        %3888 = vmatprep.mubr.f32.mxu0 0.0
        %3889 = vmatmul.mubr.f32.gmra.mxu0 %v3721
        %v3890 = vpop.f32.mrf.mxu0
        %v3891 = vadd.f32 %v3667, %v3890
        %v3892 = vpop.f32.mrf.mxu0
        %3893 = vmatprep.mubr.f32.mxu0 0.0
        %3894 = vmatmul.mubr.f32.gmra.mxu0 %v3724
        %v3895 = vpop.f32.mrf.mxu0
        %v3896 = vadd.f32 %v3672, %v3895
        %v3897 = vpop.f32.mrf.mxu0
        %3898 = vmatprep.mubr.f32.mxu0 0.0
        %3899 = vmatmul.mubr.f32.gmra.mxu0 %v3727
        %v3900 = vpop.f32.mrf.mxu0
        %v3901 = vadd.f32 %v3667, %v3900
        %v3902 = vpop.f32.mrf.mxu0
        %3903 = vmatprep.mubr.f32.mxu0 0.0
        %3904 = vmatmul.mubr.f32.gmra.mxu0 %v3730
        %v3905 = vpop.f32.mrf.mxu0
        %v3906 = vadd.f32 %v3672, %v3905
        %v3907 = vpop.f32.mrf.mxu0
        %3908 = vmatprep.mubr.f32.mxu0 0.0
        %3909 = vmatmul.mubr.f32.gmra.mxu0 %v3733
        %v3910 = vpop.f32.mrf.mxu0
        %v3911 = vadd.f32 %v3667, %v3910
        %v3912 = vpop.f32.mrf.mxu0
        %3913 = vmatprep.mubr.f32.mxu0 0.0
        %3914 = vmatmul.mubr.f32.gmra.mxu0 %v3736
        %v3915 = vpop.f32.mrf.mxu0
        %v3916 = vadd.f32 %v3672, %v3915
        %v3917 = vpop.f32.mrf.mxu0
        %3918 = vmatprep.mubr.f32.mxu0 0.0
        %3919 = vmatmul.mubr.f32.gmra.mxu0 %v3739
        %v3920 = vpop.f32.mrf.mxu0
        %v3921 = vadd.f32 %v3667, %v3920
        %v3922 = vpop.f32.mrf.mxu0
        %3923 = vmatprep.mubr.f32.mxu0 0.0
        %3924 = vmatmul.mubr.f32.gmra.mxu0 %v3742
        %v3925 = vpop.f32.mrf.mxu0
        %v3926 = vadd.f32 %v3672, %v3925
        %v3927 = vpop.f32.mrf.mxu0
        %3928 = vmatprep.mubr.f32.mxu0 0.0
        %3929 = vmatmul.mubr.f32.gmra.mxu0 %v3745
        %v3930 = vpop.f32.mrf.mxu0
        %v3931 = vadd.f32 %v3667, %v3930
        %v3932 = vpop.f32.mrf.mxu0
        %3933 = vmatprep.mubr.f32.mxu0 0.0
        %3934 = vmatmul.mubr.f32.gmra.mxu0 %v3748
        %v3935 = vpop.f32.mrf.mxu0
        %v3936 = vadd.f32 %v3672, %v3935
        %v3937 = vpop.f32.mrf.mxu0
        %3938 = vmatprep.mubr.f32.mxu0 0.0
        %3939 = vmatmul.mubr.f32.gmra.mxu0 %v3751
        %v3940 = vpop.f32.mrf.mxu0
        %v3941 = vadd.f32 %v3667, %v3940
        %v3942 = vpop.f32.mrf.mxu0
        %3943 = vmatprep.mubr.f32.mxu0 0.0
        %3944 = vmatmul.mubr.f32.gmra.mxu0 %v3754
        %v3945 = vpop.f32.mrf.mxu0
        %v3946 = vadd.f32 %v3672, %v3945
        %v3947 = vpop.f32.mrf.mxu0
        %3948 = vmatprep.mubr.f32.mxu0 0.0
        %3949 = vmatmul.mubr.f32.gmra.mxu0 %v3757
        %v3950 = vpop.f32.mrf.mxu0
        %v3951 = vadd.f32 %v3667, %v3950
        %v3952 = vpop.f32.mrf.mxu0
        %3953 = vmatprep.mubr.f32.mxu0 0.0
        %3954 = vmatmul.mubr.f32.gmra.mxu0 %v3760
        %v3955 = vpop.f32.mrf.mxu0
        %v3956 = vadd.f32 %v3672, %v3955
        %v3957 = vpop.f32.mrf.mxu0
        %3958 = vmatprep.mubr.f32.mxu0 0.0
        %3959 = vmatmul.mubr.f32.gmra.mxu0 %v3763
        %v3960 = vpop.f32.mrf.mxu0
        %v3961 = vadd.f32 %v3667, %v3960
        %v3962 = vpop.f32.mrf.mxu0
        %3963 = vmatprep.mubr.f32.mxu0 0.0
        %3964 = vmatmul.mubr.f32.gmra.mxu0 %v3766
        %v3965 = vpop.f32.mrf.mxu0
        %v3966 = vadd.f32 %v3672, %v3965
        %v3967 = vpop.f32.mrf.mxu0
        %3968 = vmatprep.mubr.f32.mxu0 0.0
        %3969 = vmatmul.mubr.f32.gmra.mxu0 %v3769
        %v3970 = vpop.f32.mrf.mxu0
        %v3971 = vadd.f32 %v3667, %v3970
        %v3972 = vpop.f32.mrf.mxu0
        %3973 = vmatprep.mubr.f32.mxu0 0.0
        %3974 = vmatmul.mubr.f32.gmra.mxu0 %v3772
        %v3975 = vpop.f32.mrf.mxu0
        %v3976 = vadd.f32 %v3672, %v3975
        %v3977 = vpop.f32.mrf.mxu0
        %3978 = vmatprep.mubr.f32.mxu0 0.0
        %3979 = vmatmul.mubr.f32.gmra.mxu0 %v3775
        %v3980 = vpop.f32.mrf.mxu0
        %v3981 = vadd.f32 %v3667, %v3980
        %v3982 = vpop.f32.mrf.mxu0
        %3983 = vmatprep.mubr.f32.mxu0 0.0
        %3984 = vmatmul.mubr.f32.gmra.mxu0 %v3778
        %v3985 = vpop.f32.mrf.mxu0
        %v3986 = vadd.f32 %v3672, %v3985
        %v3987 = vpop.f32.mrf.mxu0
        %3988 = vmatprep.mubr.f32.mxu0 0.0
        %3989 = vmatmul.mubr.f32.gmra.mxu0 %v3781
        %v3990 = vpop.f32.mrf.mxu0
        %v3991 = vadd.f32 %v3667, %v3990
        %v3992 = vpop.f32.mrf.mxu0
        %3993 = vmatprep.mubr.f32.mxu0 0.0
        %3994 = vmatmul.mubr.f32.gmra.mxu0 %v3784
        %v3995 = vpop.f32.mrf.mxu0
        %v3996 = vadd.f32 %v3672, %v3995
        %v3997 = vpop.f32.mrf.mxu0
        %3998 = vmatprep.mubr.f32.mxu0 0.0
        %3999 = vmatmul.mubr.f32.gmra.mxu0 %v3787
        %v4000 = vpop.f32.mrf.mxu0
        %v4001 = vadd.f32 %v3667, %v4000
        %v4002 = vpop.f32.mrf.mxu0
        %4003 = vmatprep.mubr.f32.mxu0 0.0
        %4004 = vmatmul.mubr.f32.gmra.mxu0 %v3790
        %v4005 = vpop.f32.mrf.mxu0
        %v4006 = vadd.f32 %v3672, %v4005
        %v4007 = vpop.f32.mrf.mxu0
        %4008 = vmatprep.mubr.f32.mxu0 0.0
        %4009 = vmatmul.mubr.f32.gmra.mxu0 %v3793
        %v4010 = vpop.f32.mrf.mxu0
        %v4011 = vadd.f32 %v3667, %v4010
        %v4012 = vpop.f32.mrf.mxu0
        %4013 = vmatprep.mubr.f32.mxu0 0.0
        %4014 = vmatmul.mubr.f32.gmra.mxu0 %v3796
        %v4015 = vpop.f32.mrf.mxu0
        %v4016 = vadd.f32 %v3672, %v4015
        %v4017 = vpop.f32.mrf.mxu0
        %4018 = vmatprep.mubr.f32.mxu0 0.0
        %4019 = vmatmul.mubr.f32.gmra.mxu0 %v3799
        %v4020 = vpop.f32.mrf.mxu0
        %v4021 = vadd.f32 %v3667, %v4020
        %v4022 = vpop.f32.mrf.mxu0
        %4023 = vmatprep.mubr.f32.mxu0 0.0
        %4024 = vmatmul.mubr.f32.gmra.mxu0 %v3802
        %v4025 = vpop.f32.mrf.mxu0
        %v4026 = vadd.f32 %v3672, %v4025
        %v4027 = vpop.f32.mrf.mxu0
        %4028 = vdwg.mxu0
        %v4029 = vadd.f32 %v3871, %v757
        %v4030 = vadd.f32 %v3876, %v757
        %v4031 = vadd.f32 %v3881, %v757
        %v4032 = vadd.f32 %v3886, %v757
        %v4033 = vadd.f32 %v3891, %v757
        %v4034 = vadd.f32 %v3896, %v757
        %v4035 = vadd.f32 %v3901, %v757
        %v4036 = vadd.f32 %v3906, %v757
        %v4037 = vadd.f32 %v3911, %v757
        %v4038 = vadd.f32 %v3916, %v757
        %v4039 = vadd.f32 %v3921, %v757
        %v4040 = vadd.f32 %v3926, %v757
        %v4041 = vadd.f32 %v3931, %v757
        %v4042 = vadd.f32 %v3936, %v757
        %v4043 = vadd.f32 %v3941, %v757
        %v4044 = vadd.f32 %v3946, %v757
        %v4045 = vadd.f32 %v3951, %v757
        %v4046 = vadd.f32 %v3956, %v757
        %v4047 = vadd.f32 %v3961, %v757
        %v4048 = vadd.f32 %v3966, %v757
        %v4049 = vadd.f32 %v3971, %v757
        %v4050 = vadd.f32 %v3976, %v757
        %v4051 = vadd.f32 %v3981, %v757
        %v4052 = vadd.f32 %v3986, %v757
        %v4053 = vadd.f32 %v3991, %v757
        %v4054 = vadd.f32 %v3996, %v757
        %v4055 = vadd.f32 %v4001, %v757
        %v4056 = vadd.f32 %v4006, %v757
        %v4057 = vadd.f32 %v4011, %v757
        %v4058 = vadd.f32 %v4016, %v757
        %v4059 = vadd.f32 %v4021, %v757
        %v4060 = vadd.f32 %v4026, %v757
        %v4061 = vmax.f32 %v4029, 0.0
        %v4062 = vmax.f32 %v4030, 0.0
        %v4063 = vmax.f32 %v4031, 0.0
        %v4064 = vmax.f32 %v4032, 0.0
        %v4065 = vmax.f32 %v4033, 0.0
        %v4066 = vmax.f32 %v4034, 0.0
        %v4067 = vmax.f32 %v4035, 0.0
        %v4068 = vmax.f32 %v4036, 0.0
        %v4069 = vmax.f32 %v4037, 0.0
        %v4070 = vmax.f32 %v4038, 0.0
        %v4071 = vmax.f32 %v4039, 0.0
        %v4072 = vmax.f32 %v4040, 0.0
        %v4073 = vmax.f32 %v4041, 0.0
        %v4074 = vmax.f32 %v4042, 0.0
        %v4075 = vmax.f32 %v4043, 0.0
        %v4076 = vmax.f32 %v4044, 0.0
        %v4077 = vmax.f32 %v4045, 0.0
        %v4078 = vmax.f32 %v4046, 0.0
        %v4079 = vmax.f32 %v4047, 0.0
        %v4080 = vmax.f32 %v4048, 0.0
        %v4081 = vmax.f32 %v4049, 0.0
        %v4082 = vmax.f32 %v4050, 0.0
        %v4083 = vmax.f32 %v4051, 0.0
        %v4084 = vmax.f32 %v4052, 0.0
        %v4085 = vmax.f32 %v4053, 0.0
        %v4086 = vmax.f32 %v4054, 0.0
        %v4087 = vmax.f32 %v4055, 0.0
        %v4088 = vmax.f32 %v4056, 0.0
        %v4089 = vmax.f32 %v4057, 0.0
        %v4090 = vmax.f32 %v4058, 0.0
        %v4091 = vmax.f32 %v4059, 0.0
        %v4092 = vmax.f32 %v4060, 0.0
        %v4094 = vsel %vm829, %v4061, 0
        %v4097 = vsel %vm829, %v4062, 0
        %v4100 = vsel %vm829, %v4063, 0
        %v4103 = vsel %vm829, %v4064, 0
        %v4106 = vsel %vm829, %v4065, 0
        %v4109 = vsel %vm829, %v4066, 0
        %v4112 = vsel %vm829, %v4067, 0
        %v4115 = vsel %vm829, %v4068, 0
        %v4118 = vsel %vm829, %v4069, 0
        %v4121 = vsel %vm829, %v4070, 0
        %v4124 = vsel %vm829, %v4071, 0
        %v4127 = vsel %vm829, %v4072, 0
        %v4130 = vsel %vm829, %v4073, 0
        %v4133 = vsel %vm829, %v4074, 0
        %v4136 = vsel %vm829, %v4075, 0
        %v4139 = vsel %vm829, %v4076, 0
        %v4142 = vsel %vm829, %v4077, 0
        %v4145 = vsel %vm829, %v4078, 0
        %v4148 = vsel %vm829, %v4079, 0
        %v4151 = vsel %vm829, %v4080, 0
        %v4154 = vsel %vm829, %v4081, 0
        %v4157 = vsel %vm829, %v4082, 0
        %v4160 = vsel %vm829, %v4083, 0
        %v4163 = vsel %vm829, %v4084, 0
        %v4166 = vsel %vm829, %v4085, 0
        %v4169 = vsel %vm829, %v4086, 0
        %v4172 = vsel %vm829, %v4087, 0
        %v4175 = vsel %vm829, %v4088, 0
        %v4178 = vsel %vm829, %v4089, 0
        %v4181 = vsel %vm829, %v4090, 0
        %v4184 = vsel %vm829, %v4091, 0
        %v4187 = vsel %vm829, %v4092, 0
        %4189 = vmatprep.subr.mxu0 0.0
        %4190 = vmatpush1.msra.mxu0 0.0
        %4191 = vmatprep.subr.mxu0 0.0
        %4192 = vmatpush1.msra.mxu0 0.0
        %4193 = vmatprep.subr.mxu0 0.0
        %4194 = vmatpush1.msra.mxu0 0.0
        %4195 = vmatprep.subr.mxu0 0.0
        %4196 = vmatpush1.msra.mxu0 0.0
        %4197 = vmatprep.subr.mxu0 0.0
        %4198 = vmatpush1.msra.mxu0 0.0
        %4199 = vmatprep.subr.mxu0 0.0
        %4200 = vmatpush1.msra.mxu0 0.0
        %4201 = vmatprep.subr.mxu0 0.0
        %4202 = vmatpush1.msra.mxu0 0.0
        %4203 = vmatprep.subr.mxu0 0.0
        %4204 = vmatpush1.msra.mxu0 0.0
        %4205 = vmatprep.subr.mxu0 0.0
        %4206 = vmatpush1.msra.mxu0 0.0
        %4207 = vmatprep.subr.mxu0 0.0
        %4208 = vmatpush1.msra.mxu0 0.0
        %4209 = vmatprep.subr.mxu0 0.0
        %4210 = vmatpush1.msra.mxu0 0.0
        %4211 = vmatprep.subr.mxu0 0.0
        %4212 = vmatpush1.msra.mxu0 0.0
        %4213 = vmatprep.subr.mxu0 0.0
        %4214 = vmatpush1.msra.mxu0 %v313
        %4215 = vmatprep.subr.mxu0 0.0
        %4216 = vmatpush1.msra.mxu0 %v312
        %4217 = vmatprep.subr.mxu0 0.0
        %4218 = vmatpush1.msra.mxu0 %v311
        %4219 = vmatprep.subr.mxu0 0.0
        %4220 = vmatpush1.msra.mxu0 %v310
        %4221 = vmatprep.subr.mxu0 0.0
        %4222 = vmatpush2.msra.mxu0 0.0
        %4223 = vmatprep.subr.mxu0 0.0
        %4224 = vmatpush2.msra.mxu0 0.0
        %4225 = vmatprep.subr.mxu0 0.0
        %4226 = vmatpush2.msra.mxu0 0.0
        %4227 = vmatprep.subr.mxu0 0.0
        %4228 = vmatpush2.msra.mxu0 0.0
        %4229 = vmatprep.subr.mxu0 0.0
        %4230 = vmatpush2.msra.mxu0 0.0
        %4231 = vmatprep.subr.mxu0 0.0
        %4232 = vmatpush2.msra.mxu0 0.0
        %4233 = vmatprep.subr.mxu0 0.0
        %4234 = vmatpush2.msra.mxu0 0.0
        %4235 = vmatprep.subr.mxu0 0.0
        %4236 = vmatpush2.msra.mxu0 0.0
        %4237 = vmatprep.subr.mxu0 0.0
        %4238 = vmatpush2.msra.mxu0 0.0
        %4239 = vmatprep.subr.mxu0 0.0
        %4240 = vmatpush2.msra.mxu0 0.0
        %4241 = vmatprep.subr.mxu0 0.0
        %4242 = vmatpush2.msra.mxu0 0.0
        %4243 = vmatprep.subr.mxu0 0.0
        %4244 = vmatpush2.msra.mxu0 0.0
        %4245 = vmatprep.subr.mxu0 0.0
        %4246 = vmatpush2.msra.mxu0 0.0
        %4247 = vmatprep.subr.mxu0 0.0
        %4248 = vmatpush2.msra.mxu0 0.0
        %4249 = vmatprep.subr.mxu0 0.0
        %4250 = vmatpush2.msra.mxu0 0.0
        %4251 = vmatprep.subr.mxu0 0.0
        %4252 = vmatpush2.msra.mxu0 0.0
        %4253 = vmatprep.mubr.f32.mxu0 0.0
        %4254 = vmatmul.mubr.f32.gmra.mxu0 %v4094
        %v4255 = vpop.f32.mrf.mxu0
        %v4256 = vadd.f32 %v827, %v4255
        %v4257 = vpop.f32.mrf.mxu0
        %4258 = vmatprep.mubr.f32.mxu0 0.0
        %4259 = vmatmul.mubr.f32.gmra.mxu0 %v4097
        %v4260 = vpop.f32.mrf.mxu0
        %v4261 = vadd.f32 %v827, %v4260
        %v4262 = vpop.f32.mrf.mxu0
        %4263 = vmatprep.mubr.f32.mxu0 0.0
        %4264 = vmatmul.mubr.f32.gmra.mxu0 %v4100
        %v4265 = vpop.f32.mrf.mxu0
        %v4266 = vadd.f32 %v827, %v4265
        %v4267 = vpop.f32.mrf.mxu0
        %4268 = vmatprep.mubr.f32.mxu0 0.0
        %4269 = vmatmul.mubr.f32.gmra.mxu0 %v4103
        %v4270 = vpop.f32.mrf.mxu0
        %v4271 = vadd.f32 %v827, %v4270
        %v4272 = vpop.f32.mrf.mxu0
        %4273 = vmatprep.mubr.f32.mxu0 0.0
        %4274 = vmatmul.mubr.f32.gmra.mxu0 %v4106
        %v4275 = vpop.f32.mrf.mxu0
        %v4276 = vadd.f32 %v827, %v4275
        %v4277 = vpop.f32.mrf.mxu0
        %4278 = vmatprep.mubr.f32.mxu0 0.0
        %4279 = vmatmul.mubr.f32.gmra.mxu0 %v4109
        %v4280 = vpop.f32.mrf.mxu0
        %v4281 = vadd.f32 %v827, %v4280
        %v4282 = vpop.f32.mrf.mxu0
        %4283 = vmatprep.mubr.f32.mxu0 0.0
        %4284 = vmatmul.mubr.f32.gmra.mxu0 %v4112
        %v4285 = vpop.f32.mrf.mxu0
        %v4286 = vadd.f32 %v827, %v4285
        %v4287 = vpop.f32.mrf.mxu0
        %4288 = vmatprep.mubr.f32.mxu0 0.0
        %4289 = vmatmul.mubr.f32.gmra.mxu0 %v4115
        %v4290 = vpop.f32.mrf.mxu0
        %v4291 = vadd.f32 %v827, %v4290
        %v4292 = vpop.f32.mrf.mxu0
        %4293 = vmatprep.mubr.f32.mxu0 0.0
        %4294 = vmatmul.mubr.f32.gmra.mxu0 %v4118
        %v4295 = vpop.f32.mrf.mxu0
        %v4296 = vadd.f32 %v827, %v4295
        %v4297 = vpop.f32.mrf.mxu0
        %4298 = vmatprep.mubr.f32.mxu0 0.0
        %4299 = vmatmul.mubr.f32.gmra.mxu0 %v4121
        %v4300 = vpop.f32.mrf.mxu0
        %v4301 = vadd.f32 %v827, %v4300
        %v4302 = vpop.f32.mrf.mxu0
        %4303 = vmatprep.mubr.f32.mxu0 0.0
        %4304 = vmatmul.mubr.f32.gmra.mxu0 %v4124
        %v4305 = vpop.f32.mrf.mxu0
        %v4306 = vadd.f32 %v827, %v4305
        %v4307 = vpop.f32.mrf.mxu0
        %4308 = vmatprep.mubr.f32.mxu0 0.0
        %4309 = vmatmul.mubr.f32.gmra.mxu0 %v4127
        %v4310 = vpop.f32.mrf.mxu0
        %v4311 = vadd.f32 %v827, %v4310
        %v4312 = vpop.f32.mrf.mxu0
        %4313 = vmatprep.mubr.f32.mxu0 0.0
        %4314 = vmatmul.mubr.f32.gmra.mxu0 %v4130
        %v4315 = vpop.f32.mrf.mxu0
        %v4316 = vadd.f32 %v827, %v4315
        %v4317 = vpop.f32.mrf.mxu0
        %4318 = vmatprep.mubr.f32.mxu0 0.0
        %4319 = vmatmul.mubr.f32.gmra.mxu0 %v4133
        %v4320 = vpop.f32.mrf.mxu0
        %v4321 = vadd.f32 %v827, %v4320
        %v4322 = vpop.f32.mrf.mxu0
        %4323 = vmatprep.mubr.f32.mxu0 0.0
        %4324 = vmatmul.mubr.f32.gmra.mxu0 %v4136
        %v4325 = vpop.f32.mrf.mxu0
        %v4326 = vadd.f32 %v827, %v4325
        %v4327 = vpop.f32.mrf.mxu0
        %4328 = vmatprep.mubr.f32.mxu0 0.0
        %4329 = vmatmul.mubr.f32.gmra.mxu0 %v4139
        %v4330 = vpop.f32.mrf.mxu0
        %v4331 = vadd.f32 %v827, %v4330
        %v4332 = vpop.f32.mrf.mxu0
        %4333 = vmatprep.mubr.f32.mxu0 0.0
        %4334 = vmatmul.mubr.f32.gmra.mxu0 %v4142
        %v4335 = vpop.f32.mrf.mxu0
        %v4336 = vadd.f32 %v827, %v4335
        %v4337 = vpop.f32.mrf.mxu0
        %4338 = vmatprep.mubr.f32.mxu0 0.0
        %4339 = vmatmul.mubr.f32.gmra.mxu0 %v4145
        %v4340 = vpop.f32.mrf.mxu0
        %v4341 = vadd.f32 %v827, %v4340
        %v4342 = vpop.f32.mrf.mxu0
        %4343 = vmatprep.mubr.f32.mxu0 0.0
        %4344 = vmatmul.mubr.f32.gmra.mxu0 %v4148
        %v4345 = vpop.f32.mrf.mxu0
        %v4346 = vadd.f32 %v827, %v4345
        %v4347 = vpop.f32.mrf.mxu0
        %4348 = vmatprep.mubr.f32.mxu0 0.0
        %4349 = vmatmul.mubr.f32.gmra.mxu0 %v4151
        %v4350 = vpop.f32.mrf.mxu0
        %v4351 = vadd.f32 %v827, %v4350
        %v4352 = vpop.f32.mrf.mxu0
        %4353 = vmatprep.mubr.f32.mxu0 0.0
        %4354 = vmatmul.mubr.f32.gmra.mxu0 %v4154
        %v4355 = vpop.f32.mrf.mxu0
        %v4356 = vadd.f32 %v827, %v4355
        %v4357 = vpop.f32.mrf.mxu0
        %4358 = vmatprep.mubr.f32.mxu0 0.0
        %4359 = vmatmul.mubr.f32.gmra.mxu0 %v4157
        %v4360 = vpop.f32.mrf.mxu0
        %v4361 = vadd.f32 %v827, %v4360
        %v4362 = vpop.f32.mrf.mxu0
        %4363 = vmatprep.mubr.f32.mxu0 0.0
        %4364 = vmatmul.mubr.f32.gmra.mxu0 %v4160
        %v4365 = vpop.f32.mrf.mxu0
        %v4366 = vadd.f32 %v827, %v4365
        %v4367 = vpop.f32.mrf.mxu0
        %4368 = vmatprep.mubr.f32.mxu0 0.0
        %4369 = vmatmul.mubr.f32.gmra.mxu0 %v4163
        %v4370 = vpop.f32.mrf.mxu0
        %v4371 = vadd.f32 %v827, %v4370
        %v4372 = vpop.f32.mrf.mxu0
        %4373 = vmatprep.mubr.f32.mxu0 0.0
        %4374 = vmatmul.mubr.f32.gmra.mxu0 %v4166
        %v4375 = vpop.f32.mrf.mxu0
        %v4376 = vadd.f32 %v827, %v4375
        %v4377 = vpop.f32.mrf.mxu0
        %4378 = vmatprep.mubr.f32.mxu0 0.0
        %4379 = vmatmul.mubr.f32.gmra.mxu0 %v4169
        %v4380 = vpop.f32.mrf.mxu0
        %v4381 = vadd.f32 %v827, %v4380
        %v4382 = vpop.f32.mrf.mxu0
        %4383 = vmatprep.mubr.f32.mxu0 0.0
        %4384 = vmatmul.mubr.f32.gmra.mxu0 %v4172
        %v4385 = vpop.f32.mrf.mxu0
        %v4386 = vadd.f32 %v827, %v4385
        %v4387 = vpop.f32.mrf.mxu0
        %4388 = vmatprep.mubr.f32.mxu0 0.0
        %4389 = vmatmul.mubr.f32.gmra.mxu0 %v4175
        %v4390 = vpop.f32.mrf.mxu0
        %v4391 = vadd.f32 %v827, %v4390
        %v4392 = vpop.f32.mrf.mxu0
        %4393 = vmatprep.mubr.f32.mxu0 0.0
        %4394 = vmatmul.mubr.f32.gmra.mxu0 %v4178
        %v4395 = vpop.f32.mrf.mxu0
        %v4396 = vadd.f32 %v827, %v4395
        %v4397 = vpop.f32.mrf.mxu0
        %4398 = vmatprep.mubr.f32.mxu0 0.0
        %4399 = vmatmul.mubr.f32.gmra.mxu0 %v4181
        %v4400 = vpop.f32.mrf.mxu0
        %v4401 = vadd.f32 %v827, %v4400
        %v4402 = vpop.f32.mrf.mxu0
        %4403 = vmatprep.mubr.f32.mxu0 0.0
        %4404 = vmatmul.mubr.f32.gmra.mxu0 %v4184
        %v4405 = vpop.f32.mrf.mxu0
        %v4406 = vadd.f32 %v827, %v4405
        %v4407 = vpop.f32.mrf.mxu0
        %4408 = vmatprep.mubr.f32.mxu0 0.0
        %4409 = vmatmul.mubr.f32.gmra.mxu0 %v4187
        %v4410 = vpop.f32.mrf.mxu0
        %v4411 = vadd.f32 %v827, %v4410
        %v4412 = vpop.f32.mrf.mxu0
        %4413 = vdwg.mxu0
        %v4414 = vxor.u32 %v4256, 2147483648
        %v4415 = vxor.u32 %v4261, 2147483648
        %v4416 = vxor.u32 %v4266, 2147483648
        %v4417 = vxor.u32 %v4271, 2147483648
        %v4418 = vxor.u32 %v4276, 2147483648
        %v4419 = vxor.u32 %v4281, 2147483648
        %v4420 = vxor.u32 %v4286, 2147483648
        %v4421 = vxor.u32 %v4291, 2147483648
        %v4422 = vxor.u32 %v4296, 2147483648
        %v4423 = vxor.u32 %v4301, 2147483648
        %v4424 = vxor.u32 %v4306, 2147483648
        %v4425 = vxor.u32 %v4311, 2147483648
        %v4426 = vxor.u32 %v4316, 2147483648
        %v4427 = vxor.u32 %v4321, 2147483648
        %v4428 = vxor.u32 %v4326, 2147483648
        %v4429 = vxor.u32 %v4331, 2147483648
        %v4430 = vxor.u32 %v4336, 2147483648
        %v4431 = vxor.u32 %v4341, 2147483648
        %v4432 = vxor.u32 %v4346, 2147483648
        %v4433 = vxor.u32 %v4351, 2147483648
        %v4434 = vxor.u32 %v4356, 2147483648
        %v4435 = vxor.u32 %v4361, 2147483648
        %v4436 = vxor.u32 %v4366, 2147483648
        %v4437 = vxor.u32 %v4371, 2147483648
        %v4438 = vxor.u32 %v4376, 2147483648
        %v4439 = vxor.u32 %v4381, 2147483648
        %v4440 = vxor.u32 %v4386, 2147483648
        %v4441 = vxor.u32 %v4391, 2147483648
        %v4442 = vxor.u32 %v4396, 2147483648
        %v4443 = vxor.u32 %v4401, 2147483648
        %v4444 = vxor.u32 %v4406, 2147483648
        %v4445 = vxor.u32 %v4411, 2147483648
        %v4446 = vmul.f32 %v4414, 1.442695
        %v4447 = vpow.pop %v4446
        %v4448 = vmul.f32 %v4415, 1.442695
        %v4449 = vpow.pop %v4448
        %v4450 = vmul.f32 %v4416, 1.442695
        %v4451 = vpow.pop %v4450
        %v4452 = vmul.f32 %v4417, 1.442695
        %v4453 = vpow.pop %v4452
        %v4454 = vmul.f32 %v4418, 1.442695
        %v4455 = vpow.pop %v4454
        %v4456 = vmul.f32 %v4419, 1.442695
        %v4457 = vpow.pop %v4456
        %v4458 = vmul.f32 %v4420, 1.442695
        %v4459 = vpow.pop %v4458
        %v4460 = vmul.f32 %v4421, 1.442695
        %v4461 = vpow.pop %v4460
        %v4462 = vmul.f32 %v4422, 1.442695
        %v4463 = vpow.pop %v4462
        %v4464 = vmul.f32 %v4423, 1.442695
        %v4465 = vpow.pop %v4464
        %v4466 = vmul.f32 %v4424, 1.442695
        %v4467 = vpow.pop %v4466
        %v4468 = vmul.f32 %v4425, 1.442695
        %v4469 = vpow.pop %v4468
        %v4470 = vmul.f32 %v4426, 1.442695
        %v4471 = vpow.pop %v4470
        %v4472 = vmul.f32 %v4427, 1.442695
        %v4473 = vpow.pop %v4472
        %v4474 = vmul.f32 %v4428, 1.442695
        %v4475 = vpow.pop %v4474
        %v4476 = vmul.f32 %v4429, 1.442695
        %v4477 = vpow.pop %v4476
        %v4478 = vmul.f32 %v4430, 1.442695
        %v4479 = vpow.pop %v4478
        %v4480 = vmul.f32 %v4431, 1.442695
        %v4481 = vpow.pop %v4480
        %v4482 = vmul.f32 %v4432, 1.442695
        %v4483 = vpow.pop %v4482
        %v4484 = vmul.f32 %v4433, 1.442695
        %v4485 = vpow.pop %v4484
        %v4486 = vmul.f32 %v4434, 1.442695
        %v4487 = vpow.pop %v4486
        %v4488 = vmul.f32 %v4435, 1.442695
        %v4489 = vpow.pop %v4488
        %v4490 = vmul.f32 %v4436, 1.442695
        %v4491 = vpow.pop %v4490
        %v4492 = vmul.f32 %v4437, 1.442695
        %v4493 = vpow.pop %v4492
        %v4494 = vmul.f32 %v4438, 1.442695
        %v4495 = vpow.pop %v4494
        %v4496 = vmul.f32 %v4439, 1.442695
        %v4497 = vpow.pop %v4496
        %v4498 = vmul.f32 %v4440, 1.442695
        %v4499 = vpow.pop %v4498
        %v4500 = vmul.f32 %v4441, 1.442695
        %v4501 = vpow.pop %v4500
        %v4502 = vmul.f32 %v4442, 1.442695
        %v4503 = vpow.pop %v4502
        %v4504 = vmul.f32 %v4443, 1.442695
        %v4505 = vpow.pop %v4504
        %v4506 = vmul.f32 %v4444, 1.442695
        %v4507 = vpow.pop %v4506
        %v4508 = vmul.f32 %v4445, 1.442695
        %v4509 = vpow.pop %v4508
        %v4510 = vadd.f32 %v4447, 1.0
        %v4511 = vadd.f32 %v4449, 1.0
        %v4512 = vadd.f32 %v4451, 1.0
        %v4513 = vadd.f32 %v4453, 1.0
        %v4514 = vadd.f32 %v4455, 1.0
        %v4515 = vadd.f32 %v4457, 1.0
        %v4516 = vadd.f32 %v4459, 1.0
        %v4517 = vadd.f32 %v4461, 1.0
        %v4518 = vadd.f32 %v4463, 1.0
        %v4519 = vadd.f32 %v4465, 1.0
        %v4520 = vadd.f32 %v4467, 1.0
        %v4521 = vadd.f32 %v4469, 1.0
        %v4522 = vadd.f32 %v4471, 1.0
        %v4523 = vadd.f32 %v4473, 1.0
        %v4524 = vadd.f32 %v4475, 1.0
        %v4525 = vadd.f32 %v4477, 1.0
        %v4526 = vadd.f32 %v4479, 1.0
        %v4527 = vadd.f32 %v4481, 1.0
        %v4528 = vadd.f32 %v4483, 1.0
        %v4529 = vadd.f32 %v4485, 1.0
        %v4530 = vadd.f32 %v4487, 1.0
        %v4531 = vadd.f32 %v4489, 1.0
        %v4532 = vadd.f32 %v4491, 1.0
        %v4533 = vadd.f32 %v4493, 1.0
        %v4534 = vadd.f32 %v4495, 1.0
        %v4535 = vadd.f32 %v4497, 1.0
        %v4536 = vadd.f32 %v4499, 1.0
        %v4537 = vadd.f32 %v4501, 1.0
        %v4538 = vadd.f32 %v4503, 1.0
        %v4539 = vadd.f32 %v4505, 1.0
        %v4540 = vadd.f32 %v4507, 1.0
        %v4541 = vadd.f32 %v4509, 1.0
        %v4542 = vrcp.pop %v4510
        %v4543 = vmul.f32 1.0, %v4542
        %v4544 = vrcp.pop %v4511
        %v4545 = vmul.f32 1.0, %v4544
        %v4546 = vrcp.pop %v4512
        %v4547 = vmul.f32 1.0, %v4546
        %v4548 = vrcp.pop %v4513
        %v4549 = vmul.f32 1.0, %v4548
        %v4550 = vrcp.pop %v4514
        %v4551 = vmul.f32 1.0, %v4550
        %v4552 = vrcp.pop %v4515
        %v4553 = vmul.f32 1.0, %v4552
        %v4554 = vrcp.pop %v4516
        %v4555 = vmul.f32 1.0, %v4554
        %v4556 = vrcp.pop %v4517
        %v4557 = vmul.f32 1.0, %v4556
        %v4558 = vrcp.pop %v4518
        %v4559 = vmul.f32 1.0, %v4558
        %v4560 = vrcp.pop %v4519
        %v4561 = vmul.f32 1.0, %v4560
        %v4562 = vrcp.pop %v4520
        %v4563 = vmul.f32 1.0, %v4562
        %v4564 = vrcp.pop %v4521
        %v4565 = vmul.f32 1.0, %v4564
        %v4566 = vrcp.pop %v4522
        %v4567 = vmul.f32 1.0, %v4566
        %v4568 = vrcp.pop %v4523
        %v4569 = vmul.f32 1.0, %v4568
        %v4570 = vrcp.pop %v4524
        %v4571 = vmul.f32 1.0, %v4570
        %v4572 = vrcp.pop %v4525
        %v4573 = vmul.f32 1.0, %v4572
        %v4574 = vrcp.pop %v4526
        %v4575 = vmul.f32 1.0, %v4574
        %v4576 = vrcp.pop %v4527
        %v4577 = vmul.f32 1.0, %v4576
        %v4578 = vrcp.pop %v4528
        %v4579 = vmul.f32 1.0, %v4578
        %v4580 = vrcp.pop %v4529
        %v4581 = vmul.f32 1.0, %v4580
        %v4582 = vrcp.pop %v4530
        %v4583 = vmul.f32 1.0, %v4582
        %v4584 = vrcp.pop %v4531
        %v4585 = vmul.f32 1.0, %v4584
        %v4586 = vrcp.pop %v4532
        %v4587 = vmul.f32 1.0, %v4586
        %v4588 = vrcp.pop %v4533
        %v4589 = vmul.f32 1.0, %v4588
        %v4590 = vrcp.pop %v4534
        %v4591 = vmul.f32 1.0, %v4590
        %v4592 = vrcp.pop %v4535
        %v4593 = vmul.f32 1.0, %v4592
        %v4594 = vrcp.pop %v4536
        %v4595 = vmul.f32 1.0, %v4594
        %v4596 = vrcp.pop %v4537
        %v4597 = vmul.f32 1.0, %v4596
        %v4598 = vrcp.pop %v4538
        %v4599 = vmul.f32 1.0, %v4598
        %v4600 = vrcp.pop %v4539
        %v4601 = vmul.f32 1.0, %v4600
        %v4602 = vrcp.pop %v4540
        %v4603 = vmul.f32 1.0, %v4602
        %v4604 = vrcp.pop %v4541
        %v4605 = vmul.f32 1.0, %v4604
        %v4606 = vsel %vm1343, %v4543, 0.0
        %v4607 = vsel %vm1343, %v4545, 0.0
        %v4608 = vadd.f32 %v4606, %v4607
        %v4609 = vsel %vm1343, %v4547, 0.0
        %v4610 = vadd.f32 %v4608, %v4609
        %v4611 = vsel %vm1343, %v4549, 0.0
        %v4612 = vadd.f32 %v4610, %v4611
        %v4613 = vsel %vm1343, %v4551, 0.0
        %v4614 = vadd.f32 %v4612, %v4613
        %v4615 = vsel %vm1343, %v4553, 0.0
        %v4616 = vadd.f32 %v4614, %v4615
        %v4617 = vsel %vm1343, %v4555, 0.0
        %v4618 = vadd.f32 %v4616, %v4617
        %v4619 = vsel %vm1343, %v4557, 0.0
        %v4620 = vadd.f32 %v4618, %v4619
        %v4621 = vsel %vm1343, %v4559, 0.0
        %v4622 = vadd.f32 %v4620, %v4621
        %v4623 = vsel %vm1343, %v4561, 0.0
        %v4624 = vadd.f32 %v4622, %v4623
        %v4625 = vsel %vm1343, %v4563, 0.0
        %v4626 = vadd.f32 %v4624, %v4625
        %v4627 = vsel %vm1343, %v4565, 0.0
        %v4628 = vadd.f32 %v4626, %v4627
        %v4629 = vsel %vm1343, %v4567, 0.0
        %v4630 = vadd.f32 %v4628, %v4629
        %v4631 = vsel %vm1343, %v4569, 0.0
        %v4632 = vadd.f32 %v4630, %v4631
        %v4633 = vsel %vm1343, %v4571, 0.0
        %v4634 = vadd.f32 %v4632, %v4633
        %v4635 = vsel %vm1343, %v4573, 0.0
        %v4636 = vadd.f32 %v4634, %v4635
        %v4637 = vsel %vm1343, %v4575, 0.0
        %v4638 = vadd.f32 %v4636, %v4637
        %v4639 = vsel %vm1343, %v4577, 0.0
        %v4640 = vadd.f32 %v4638, %v4639
        %v4641 = vsel %vm1343, %v4579, 0.0
        %v4642 = vadd.f32 %v4640, %v4641
        %v4643 = vsel %vm1343, %v4581, 0.0
        %v4644 = vadd.f32 %v4642, %v4643
        %v4645 = vsel %vm1343, %v4583, 0.0
        %v4646 = vadd.f32 %v4644, %v4645
        %v4647 = vsel %vm1343, %v4585, 0.0
        %v4648 = vadd.f32 %v4646, %v4647
        %v4649 = vsel %vm1343, %v4587, 0.0
        %v4650 = vadd.f32 %v4648, %v4649
        %v4651 = vsel %vm1343, %v4589, 0.0
        %v4652 = vadd.f32 %v4650, %v4651
        %v4653 = vsel %vm1343, %v4591, 0.0
        %v4654 = vadd.f32 %v4652, %v4653
        %v4655 = vsel %vm1343, %v4593, 0.0
        %v4656 = vadd.f32 %v4654, %v4655
        %v4657 = vsel %vm1343, %v4595, 0.0
        %v4658 = vadd.f32 %v4656, %v4657
        %v4659 = vsel %vm1343, %v4597, 0.0
        %v4660 = vadd.f32 %v4658, %v4659
        %v4661 = vsel %vm1343, %v4599, 0.0
        %v4662 = vadd.f32 %v4660, %v4661
        %v4663 = vsel %vm1343, %v4601, 0.0
        %v4664 = vadd.f32 %v4662, %v4663
        %v4665 = vsel %vm1343, %v4603, 0.0
        %v4666 = vadd.f32 %v4664, %v4665
        %v4667 = vsel %vm1343, %v4605, 0.0
        %v4668 = vadd.f32 %v4666, %v4667
        %v4669 = vrot.slane %v4668, 4
        %v4670 = vadd.f32 %v4668, %v4669
        %v4671 = vrot.slane %v4670, 2
        %v4672 = vadd.f32 %v4670, %v4671
        %v4673 = vrot.slane %v4672, 1
        %v4674 = vadd.f32 %v4672, %v4673
        %v4675 = vmul.f32 %v4674, %v1413
        %s4676 = scalar_lea.vmem %s292, 3 [#allocation2]
        %4677 = vst.msk [vmem:[%s4676] sm:$0x1] %vm1415, %v4675
        %s4678 = sand.u32 %s186, 1
        %s4679 = scalar_lea.sflag [#allocation3], %s4678
        %s4680 = sand.u32 %s186, 1
        %s4681 = smul.addr %s4680, 4
        %s4682 = scalar_lea.vmem [#allocation2], %s4681
        // Predicated region
        $region49: #{tpu_custom_call.1} parent=47 // pred_check
          %p4683 = pneg %p196
        $region50: #{tpu_custom_call.1} parent=47 // pred_check_branch
          %4685 = sbr.rel (%p4683) target = $region52
        $region51: #{tpu_custom_call.1} parent=47 // pred_region
          %s4686 = smul.u32 4, %s21
          %s4688 = ssub.s32 64, 64
          %4689 = vsyncadd %s4679, %s4688
          %s4690 = smul.addr %s4686, 16
          %s4691 = scalar_lea.hbm %s7, %s4690
          %s4692 = sshll.u32 %s4682, 4
          %s4693 = int_to_ptr.vmem [resolvable:$true] %s4692
          %4698 = dma.vmem_to_hbm [thread:$0]  %s4693, 64, %s4691, %s4679, 16, 16, 1
        $region52: #{tpu_custom_call.1} parent=47 // pred_fallthru
          _
      $region48: #{tpu_custom_call.1} parent=5 // pred_fallthru
        _
      %p4699 = scmp.le.s32.totalorder 2, %s16
      // Predicated region
      $region53: #{tpu_custom_call.1} parent=5 // pred_check
        %p4700 = pneg %p4699
      $region54: #{tpu_custom_call.1} parent=5 // pred_check_branch
        %4702 = sbr.rel (%p4700) target = $region56
      $region55: #{tpu_custom_call.1} parent=5 // pred_region
        %s4703 = ssub.s32 %s16, 2
        // Predicated region
        $region57: #{tpu_custom_call.1} parent=55 // pred_check
          %p4704 = pneg %p202
        $region58: #{tpu_custom_call.1} parent=55 // pred_check_branch
          %4706 = sbr.rel (%p4704) target = $region60
        $region59: #{tpu_custom_call.1} parent=55 // pred_region
          %s4707 = sand.u32 %s187, 1
          %s4708 = scalar_lea.sflag [#allocation3], %s4707
          %s4709 = sand.u32 %s187, 1
          %s4710 = smul.addr %s4709, 4
          %s4711 = scalar_lea.vmem [#allocation2], %s4710
          %4712 = dma.done %s4708, 64
        $region60: #{tpu_custom_call.1} parent=55 // pred_fallthru
          _
      $region56: #{tpu_custom_call.1} parent=5 // pred_fallthru
        _
    $region6: #{tpu_custom_call.1} parent=1 // loop_footer
      %s20 = sadd.s32 1, %s16
    $region7: #{tpu_custom_call.1} parent=1 // loop_footer_branch
      %15 = sbr.rel target = $region3
    $region8: #{tpu_custom_call.1} parent=1 // loop_exit
      _
    %4713 = vsyncpa [#allocation3], 1
    %s4714 = scalar_lea.sflag [#allocation3], 1
    %4715 = vsyncpa %s4714, 1

</llo_original>
